<compile_context>
chip_gen: v5e
topology: v5e:2x2
jax: 0.10.0
libtpu: 0.0.40
codegen_flags: <defaults>
</compile_context>

<pallas_src>
import functools

import jax
import jax.numpy as jnp
from jax.experimental import pallas as pl
from jax.experimental.pallas import tpu as pltpu

_VMEM_LIMIT = 64 * 1024 * 1024  # scoped-VMEM budget; actual tile usage is far below


def _pick_tile(n, pref, align):
    """Largest aligned divisor of n that is <= pref; full dim if n small."""
    if n <= pref:
        return n
    t = (pref // align) * align
    while t >= align:
        if n % t == 0:
            return t
        t -= align
    return n  # TODO(synk): prime/odd dims fall back to a single full block


# ----------------------------- Pallas kernels -----------------------------

def _linear_kernel(x_ref, w_ref, b_ref, o_ref, acc_ref, *, nk):
    """Tiled y = x @ w + b with K-accumulation in VMEM (bf16 MXU, f32 acc)."""
    @pl.when(pl.program_id(2) == 0)
    def _():
        acc_ref[...] = jnp.zeros_like(acc_ref)

    acc_ref[...] += jnp.dot(x_ref[...].astype(jnp.bfloat16), w_ref[...],
                            preferred_element_type=jnp.float32)

    @pl.when(pl.program_id(2) == nk - 1)
    def _():
        o_ref[...] = acc_ref[...] + b_ref[...]


def linear(x2d, w_bf16, b):
    """y = x2d @ w + b.  x2d:[M,K] f32   w:[K,N] bf16   b:[1,N] f32."""
    M, K = x2d.shape
    N = w_bf16.shape[1]
    tm = _pick_tile(M, 512, 8)
    tn = _pick_tile(N, 1024, 128)
    tk = _pick_tile(K, 512, 128)
    nm, nn_, nk = M // tm, N // tn, K // tk
    kern = functools.partial(_linear_kernel, nk=nk)
    return pl.pallas_call(
        kern,
        out_shape=jax.ShapeDtypeStruct((M, N), jnp.float32),
        grid=(nm, nn_, nk),
        in_specs=[
            pl.BlockSpec((tm, tk), lambda i, j, k: (i, k)),
            pl.BlockSpec((tk, tn), lambda i, j, k: (k, j)),
            pl.BlockSpec((1, tn), lambda i, j, k: (0, j)),
        ],
        out_specs=pl.BlockSpec((tm, tn), lambda i, j, k: (i, j)),
        scratch_shapes=[pltpu.VMEM((tm, tn), jnp.float32)],
        compiler_params=pltpu.CompilerParams(
            dimension_semantics=("parallel", "parallel", "arbitrary"),
            vmem_limit_bytes=_VMEM_LIMIT),
    )(x2d, w_bf16, b)


def _mha_ln_kernel(x_ref, src_ref, kpad_ref, wq_ref, wk_ref, wv_ref, wo_ref,
                   g_ref, b_ref, o_ref, k_scr, v_scr, *, heads, causal):
    """Fused MHA + output proj + residual + LayerNorm for one (batch, q-tile).

    x:[1,tq,D] query-side input (also the residual);  src:[1,Sk,D] K/V source;
    kpad:[1,1,Sk] key-padding flags (1.0 = padded);   per-head bf16 weights
    wq/wk/wv:[H,D,kd], wo:[H,kd,D];  g/b:[1,D] LayerNorm affine.
    K/V per head live in persistent VMEM scratch, computed at q-tile 0.
    """
    qi = pl.program_id(1)
    tq = x_ref.shape[1]
    D = x_ref.shape[2]
    Sk = src_ref.shape[1]
    kd = D // heads
    scale = 1.0 / (float(kd) ** 0.5)   # attention() scale: key.shape[-1] == kd

    @pl.when(qi == 0)
    def _():
        sb = src_ref[0].astype(jnp.bfloat16)                    # [Sk, D]
        for h in range(heads):
            k_scr[h] = jnp.dot(sb, wk_ref[h],
                               preferred_element_type=jnp.float32).astype(jnp.bfloat16)
            v_scr[h] = jnp.dot(sb, wv_ref[h],
                               preferred_element_type=jnp.float32).astype(jnp.bfloat16)

    x = x_ref[0]                                                # [tq, D] f32
    xb = x.astype(jnp.bfloat16)

    kpad = kpad_ref[0] > 0.5                                    # [1, Sk] bool
    if causal:
        row = jax.lax.broadcasted_iota(jnp.int32, (tq, Sk), 0) + qi * tq
        col = jax.lax.broadcasted_iota(jnp.int32, (tq, Sk), 1)
        masked = kpad | (col > row)                             # [tq, Sk]
    else:
        masked = kpad                                           # [1, Sk]

    acc = None
    for h in range(heads):
        qh = jnp.dot(xb, wq_ref[h], preferred_element_type=jnp.float32) * scale
        s = jax.lax.dot_general(qh.astype(jnp.bfloat16), k_scr[h],
                                (((1,), (1,)), ((), ())),
                                preferred_element_type=jnp.float32)   # [tq, Sk]
        s = jnp.where(masked, jnp.float32(-1e9), s)
        s = s - jnp.max(s, axis=-1, keepdims=True)
        p = jnp.exp(s)
        p = p * pl.reciprocal(jnp.sum(p, axis=-1, keepdims=True), approx=True)
        oh = jnp.dot(p.astype(jnp.bfloat16), v_scr[h],
                     preferred_element_type=jnp.float32)              # [tq, kd]
        contrib = jnp.dot(oh.astype(jnp.bfloat16), wo_ref[h],
                          preferred_element_type=jnp.float32)         # [tq, D]
        acc = contrib if acc is None else acc + contrib

    # residual add + LayerNorm (f32)
    z = x + acc
    mu = jnp.mean(z, axis=-1, keepdims=True)
    var = jnp.mean(jnp.square(z - mu), axis=-1, keepdims=True)
    o_ref[0] = (z - mu) * jax.lax.rsqrt(var + 1e-5) * g_ref[...] + b_ref[...]


def mha_add_ln(p, x3, src3, kpad, heads, gamma, beta, causal):
    """LayerNorm(x + MHA(x, src, src, mask)); mask = key-padding (+ causal)."""
    B, Sq, D = x3.shape
    Sk = src3.shape[1]
    kd = D // heads
    tq = _pick_tile(Sq, 128, 8)
    nq = Sq // tq
    kern = functools.partial(_mha_ln_kernel, heads=heads, causal=causal)
    return pl.pallas_call(
        kern,
        out_shape=jax.ShapeDtypeStruct((B, Sq, D), jnp.float32),
        grid=(B, nq),
        in_specs=[
            pl.BlockSpec((1, tq, D), lambda b, q: (b, q, 0)),
            pl.BlockSpec((1, Sk, D), lambda b, q: (b, 0, 0)),
            pl.BlockSpec((1, 1, Sk), lambda b, q: (b, 0, 0)),
            pl.BlockSpec((heads, D, kd), lambda b, q: (0, 0, 0)),
            pl.BlockSpec((heads, D, kd), lambda b, q: (0, 0, 0)),
            pl.BlockSpec((heads, D, kd), lambda b, q: (0, 0, 0)),
            pl.BlockSpec((heads, kd, D), lambda b, q: (0, 0, 0)),
            pl.BlockSpec((1, D), lambda b, q: (0, 0)),
            pl.BlockSpec((1, D), lambda b, q: (0, 0)),
        ],
        out_specs=pl.BlockSpec((1, tq, D), lambda b, q: (b, q, 0)),
        scratch_shapes=[
            pltpu.VMEM((heads, Sk, kd), jnp.bfloat16),   # K per head
            pltpu.VMEM((heads, Sk, kd), jnp.bfloat16),   # V per head
        ],
        compiler_params=pltpu.CompilerParams(
            dimension_semantics=("parallel", "arbitrary"),
            vmem_limit_bytes=_VMEM_LIMIT),
    )(x3, src3, kpad, p["wq"], p["wk"], p["wv"], p["wo"], gamma, beta)
    # TODO(synk): no flash-style Sk tiling; [tq,Sk] scores are materialized per head.


def _ffn_ln_kernel(x_ref, w1_ref, b1_ref, w2_ref, b2_ref, g_ref, b_ref,
                   o_ref, acc_ref, *, nf):
    """Linear->ReLU->Linear (d_ff-tiled accumulation) + residual + LayerNorm."""
    f = pl.program_id(1)

    @pl.when(f == 0)
    def _():
        acc_ref[...] = jnp.zeros_like(acc_ref)

    xb = x_ref[...].astype(jnp.bfloat16)                         # [tm, D]
    h = jnp.dot(xb, w1_ref[...], preferred_element_type=jnp.float32) + b1_ref[...]
    h = jnp.maximum(h, 0.0)                                      # [tm, tf]
    acc_ref[...] += jnp.dot(h.astype(jnp.bfloat16), w2_ref[...],
                            preferred_element_type=jnp.float32)  # [tm, D]

    @pl.when(f == nf - 1)
    def _():
        x = x_ref[...]
        z = x + acc_ref[...] + b2_ref[...]
        mu = jnp.mean(z, axis=-1, keepdims=True)
        var = jnp.mean(jnp.square(z - mu), axis=-1, keepdims=True)
        o_ref[...] = (z - mu) * jax.lax.rsqrt(var + 1e-5) * g_ref[...] + b_ref[...]


def ffn_add_ln(p, x3, gamma, beta):
    B, S, D = x3.shape
    M = B * S
    d_ff = p["w1"].shape[1]
    x2 = x3.reshape(M, D)
    tm = _pick_tile(M, 256, 8)
    tf = _pick_tile(d_ff, 512, 128)
    nm, nf = M // tm, d_ff // tf
    kern = functools.partial(_ffn_ln_kernel, nf=nf)
    out = pl.pallas_call(
        kern,
        out_shape=jax.ShapeDtypeStruct((M, D), jnp.float32),
        grid=(nm, nf),
        in_specs=[
            pl.BlockSpec((tm, D), lambda i, f: (i, 0)),
            pl.BlockSpec((D, tf), lambda i, f: (0, f)),
            pl.BlockSpec((1, tf), lambda i, f: (0, f)),
            pl.BlockSpec((tf, D), lambda i, f: (f, 0)),
            pl.BlockSpec((1, D), lambda i, f: (0, 0)),
            pl.BlockSpec((1, D), lambda i, f: (0, 0)),
            pl.BlockSpec((1, D), lambda i, f: (0, 0)),
        ],
        out_specs=pl.BlockSpec((tm, D), lambda i, f: (i, 0)),
        scratch_shapes=[pltpu.VMEM((tm, D), jnp.float32)],
        compiler_params=pltpu.CompilerParams(
            dimension_semantics=("parallel", "arbitrary"),
            vmem_limit_bytes=_VMEM_LIMIT),
    )(x2, p["w1"], p["b1"], p["w2"], p["b2"], gamma, beta)
    return out.reshape(B, S, D)


# ----------------------------- model glue -----------------------------

def encoder_layer(p, x, src_kpad, heads):
    x1 = mha_add_ln(p["mha"], x, x, src_kpad, heads,
                    p["ln0_g"], p["ln0_b"], causal=False)
    return ffn_add_ln(p["ff"], x1, p["ln1_g"], p["ln1_b"])


def decoder_layer(p, x, enc_out, dst_kpad, src_kpad, heads):
    x1 = mha_add_ln(p["mha1"], x, x, dst_kpad, heads,
                    p["ln0_g"], p["ln0_b"], causal=True)
    x2 = mha_add_ln(p["mha2"], x1, enc_out, src_kpad, heads,
                    p["ln1_g"], p["ln1_b"], causal=False)
    return ffn_add_ln(p["ff"], x2, p["ln2_g"], p["ln2_b"])


def position_encoding_table(d_model, max_seq_len):
    pos = jnp.arange(max_seq_len, dtype=jnp.float32)[:, None]
    weight = 1.0 / (10000.0 ** (jnp.arange(0, d_model, 2, dtype=jnp.float32) / d_model))
    item = pos * weight[None, :]
    pe = jnp.zeros((max_seq_len, d_model), jnp.float32)
    pe = pe.at[:, 0::2].set(jnp.sin(item))
    pe = pe.at[:, 1::2].set(jnp.cos(item))
    return pe


def transformer_forward(params, inputs, outputs, heads, padding_idx):
    # Tiny key-padding vectors instead of dense [B,Sq,Sk] masks; causal mask is
    # rebuilt in-kernel with broadcasted_iota.
    src_kpad = (inputs == padding_idx)[:, None, :].astype(jnp.float32)   # [B,1,S_in]
    dst_kpad = (outputs == padding_idx)[:, None, :].astype(jnp.float32)  # [B,1,S_out]

    # encoder
    x = jnp.take(params["enc_embed"], inputs, axis=0)
    x = x + params["pe"][None, :x.shape[1], :]
    for lp in params["enc_layers"]:
        x = encoder_layer(lp, x, src_kpad, heads)
    enc_out = x

    # decoder
    y = jnp.take(params["dec_embed"], outputs, axis=0)
    y = y + params["pe"][None, :y.shape[1], :]
    for lp in params["dec_layers"]:
        y = decoder_layer(lp, y, enc_out, dst_kpad, src_kpad, heads)

    # final vocabulary projection (f32 logits, like the PyTorch reference)
    B, S, D = y.shape
    logits = linear(y.reshape(B * S, D), params["out_w"], params["out_b"])
    return logits.reshape(B, S, -1)
    # TODO(synk): dropout layers are identity (eval mode); no Pallas RNG path implemented.


# ----------------------------- parameter init -----------------------------

def _uniform_linear(key, d_in, d_out, bias=True):
    k1, k2 = jax.random.split(key)
    bound = 1.0 / (d_in ** 0.5)
    w = jax.random.uniform(k1, (d_in, d_out), jnp.float32, -bound, bound)
    if bias:
        b = jax.random.uniform(k2, (1, d_out), jnp.float32, -bound, bound)
    else:
        b = jnp.zeros((1, d_out), jnp.float32)
    return w, b


def init_mha(key, d_model, heads):
    """Weights pre-cast to bf16 and pre-split per head (no in-kernel lane slices)."""
    kd = d_model // heads
    ks = jax.random.split(key, 4)
    wq = _uniform_linear(ks[0], d_model, d_model, bias=False)[0]
    wk = _uniform_linear(ks[1], d_model, d_model, bias=False)[0]
    wv = _uniform_linear(ks[2], d_model, d_model, bias=False)[0]
    wo = _uniform_linear(ks[3], d_model, d_model, bias=False)[0]

    def split_in(w):   # [D, D] -> [H, D, kd]  (columns h*kd:(h+1)*kd per head)
        return jnp.transpose(w.reshape(d_model, heads, kd), (1, 0, 2)).astype(jnp.bfloat16)

    return {
        "wq": split_in(wq),
        "wk": split_in(wk),
        "wv": split_in(wv),
        "wo": wo.reshape(heads, kd, d_model).astype(jnp.bfloat16),  # rows per head
    }


def init_ff(key, d_model, d_ff):
    k1, k2 = jax.random.split(key)
    w1, b1 = _uniform_linear(k1, d_model, d_ff)
    w2, b2 = _uniform_linear(k2, d_ff, d_model)
    return {"w1": w1.astype(jnp.bfloat16), "b1": b1,
            "w2": w2.astype(jnp.bfloat16), "b2": b2}


def _ln_pair(d):
    return jnp.ones((1, d), jnp.float32), jnp.zeros((1, d), jnp.float32)


def init_encoder_layer(key, d_model, d_ff, heads):
    k1, k2 = jax.random.split(key)
    g0, b0 = _ln_pair(d_model)
    g1, b1 = _ln_pair(d_model)
    return {"mha": init_mha(k1, d_model, heads), "ff": init_ff(k2, d_model, d_ff),
            "ln0_g": g0, "ln0_b": b0, "ln1_g": g1, "ln1_b": b1}


def init_decoder_layer(key, d_model, d_ff, heads):
    k1, k2, k3 = jax.random.split(key, 3)
    g0, b0 = _ln_pair(d_model)
    g1, b1 = _ln_pair(d_model)
    g2, b2 = _ln_pair(d_model)
    return {"mha1": init_mha(k1, d_model, heads), "mha2": init_mha(k2, d_model, heads),
            "ff": init_ff(k3, d_model, d_ff),
            "ln0_g": g0, "ln0_b": b0, "ln1_g": g1, "ln1_b": b1,
            "ln2_g": g2, "ln2_b": b2}


def init_transformer(key, enc_vocab, dec_vocab, layer_num, padding_idx,
                     heads, d_model, d_ff, max_seq_len=512):
    keys = jax.random.split(key, 3 + 2 * layer_num)
    enc_embed = jax.random.normal(keys[0], (enc_vocab, d_model), jnp.float32)
    enc_embed = enc_embed.at[padding_idx].set(0.0)
    dec_embed = jax.random.normal(keys[1], (dec_vocab, d_model), jnp.float32)
    dec_embed = dec_embed.at[padding_idx].set(0.0)
    out_w, out_b = _uniform_linear(keys[2], d_model, dec_vocab)
    enc_layers = [init_encoder_layer(keys[3 + i], d_model, d_ff, heads)
                  for i in range(layer_num)]
    dec_layers = [init_decoder_layer(keys[3 + layer_num + i], d_model, d_ff, heads)
                  for i in range(layer_num)]
    return {
        "enc_embed": enc_embed, "dec_embed": dec_embed,
        "pe": position_encoding_table(d_model, max_seq_len),
        "enc_layers": enc_layers, "dec_layers": dec_layers,
        "out_w": out_w.astype(jnp.bfloat16), "out_b": out_b,
    }


# ----------------------------- main -----------------------------

if __name__ == "__main__":
    enc_vocab, dec_vocab = 50, 40
    layer_num, heads, d_model, d_ff = 2, 4, 32, 64
    padding_idx = 0
    B, S_in, S_out = 2, 8, 8

    key = jax.random.PRNGKey(0)
    kp, ki, ko = jax.random.split(key, 3)

    params = init_transformer(kp, enc_vocab, dec_vocab, layer_num,
                              padding_idx, heads, d_model, d_ff, max_seq_len=64)

    inputs = jax.random.randint(ki, (B, S_in), 1, enc_vocab, dtype=jnp.int32)
    outputs = jax.random.randint(ko, (B, S_out), 1, dec_vocab, dtype=jnp.int32)
    inputs = inputs.at[:, -2:].set(padding_idx)   # exercise the padding mask

    fwd = jax.jit(functools.partial(transformer_forward,
                                    heads=heads, padding_idx=padding_idx))
    result = fwd(params, inputs, outputs)
    jax.block_until_ready(result)
    assert result.shape == (B, S_out, dec_vocab)
    print("KERNEL_OK")
</pallas_src>

<mosaic_0001>
module attributes {stable_mosaic.version = 11 : i64} {
  func.func @_ffn_ln_kernel(%arg0: i32, %arg1: i32, %arg2: memref<16x32xf32, #tpu.memory_space<vmem>>, %arg3: memref<32x64xbf16, #tpu.memory_space<vmem>>, %arg4: memref<1x64xf32, #tpu.memory_space<vmem>>, %arg5: memref<64x32xbf16, #tpu.memory_space<vmem>>, %arg6: memref<1x32xf32, #tpu.memory_space<vmem>>, %arg7: memref<1x32xf32, #tpu.memory_space<vmem>>, %arg8: memref<1x32xf32, #tpu.memory_space<vmem>>, %arg9: memref<16x32xf32, #tpu.memory_space<vmem>>, %arg10: memref<16x32xf32, #tpu.memory_space<vmem>>) attributes {dimension_semantics = [#tpu.dimension_semantics<parallel>, #tpu.dimension_semantics<arbitrary>], iteration_bounds = array<i64: 1, 1>, scalar_prefetch = 0 : i64, scratch_operands = 1 : i64, tpu.core_type = #tpu.core_type<tc>, window_params = [{transform_indices = @transform_0, window_bounds = array<i64: 16, 32>}, {transform_indices = @transform_1, window_bounds = array<i64: 32, 64>}, {transform_indices = @transform_2, window_bounds = array<i64: 1, 64>}, {transform_indices = @transform_3, window_bounds = array<i64: 64, 32>}, {pipeline_mode = #tpu.pipeline_mode<synchronous>, transform_indices = @transform_4, window_bounds = array<i64: 1, 32>}, {pipeline_mode = #tpu.pipeline_mode<synchronous>, transform_indices = @transform_5, window_bounds = array<i64: 1, 32>}, {pipeline_mode = #tpu.pipeline_mode<synchronous>, transform_indices = @transform_6, window_bounds = array<i64: 1, 32>}, {transform_indices = @transform_7, window_bounds = array<i64: 16, 32>}]} {
    %c0_i32 = arith.constant 0 : i32
    %0 = arith.cmpi eq, %arg1, %c0_i32 : i32
    %1 = arith.extui %0 : i1 to i32
    %c0_i32_0 = arith.constant 0 : i32
    %2 = arith.cmpi ne, %1, %c0_i32_0 : i32
    scf.if %2 {
      %cst_16 = arith.constant 0.000000e+00 : f32
      %21 = vector.broadcast %cst_16 : f32 to vector<16x32xf32>
      %c0_17 = arith.constant 0 : index
      %c0_18 = arith.constant 0 : index
      %22 = vector.load %arg10[%c0_17, %c0_18] : memref<16x32xf32, #tpu.memory_space<vmem>>, vector<16x32xf32>
      tpu.vector_store %arg10[%c0_17, %c0_18], %21 {strides = array<i32>} : memref<16x32xf32, #tpu.memory_space<vmem>>, vector<16x32xf32>,
    } else {
    }
    %c0 = arith.constant 0 : index
    %c0_1 = arith.constant 0 : index
    %3 = vector.load %arg2[%c0, %c0_1] : memref<16x32xf32, #tpu.memory_space<vmem>>, vector<16x32xf32>
    %4 = arith.truncf %3 : vector<16x32xf32> to vector<16x32xbf16>
    %c0_2 = arith.constant 0 : index
    %c0_3 = arith.constant 0 : index
    %5 = vector.load %arg3[%c0_2, %c0_3] : memref<32x64xbf16, #tpu.memory_space<vmem>>, vector<32x64xbf16>
    %cst = arith.constant dense<0.000000e+00> : vector<16x64xf32>
    %6 = tpu.matmul %4, %5, %cst {dimension_numbers = #tpu.dot_dimension_numbers<[1], [0], [0], [1], [0, 0, 1, 1], [], []>} : vector<16x32xbf16>, vector<32x64xbf16>, vector<16x64xf32> -> vector<16x64xf32>
    %c0_4 = arith.constant 0 : index
    %c0_5 = arith.constant 0 : index
    %7 = vector.load %arg4[%c0_4, %c0_5] : memref<1x64xf32, #tpu.memory_space<vmem>>, vector<1x64xf32>
    %8 = vector.broadcast %7 : vector<1x64xf32> to vector<16x64xf32>
    %9 = arith.addf %6, %8 : vector<16x64xf32>
    %cst_6 = arith.constant 0.000000e+00 : f32
    %10 = vector.broadcast %cst_6 : f32 to vector<16x64xf32>
    %11 = arith.maximumf %9, %10 : vector<16x64xf32>
    %c0_7 = arith.constant 0 : index
    %c0_8 = arith.constant 0 : index
    %12 = vector.load %arg10[%c0_7, %c0_8] : memref<16x32xf32, #tpu.memory_space<vmem>>, vector<16x32xf32>
    %13 = arith.truncf %11 : vector<16x64xf32> to vector<16x64xbf16>
    %c0_9 = arith.constant 0 : index
    %c0_10 = arith.constant 0 : index
    %14 = vector.load %arg5[%c0_9, %c0_10] : memref<64x32xbf16, #tpu.memory_space<vmem>>, vector<64x32xbf16>
    %cst_11 = arith.constant dense<0.000000e+00> : vector<16x32xf32>
    %15 = tpu.matmul %13, %14, %cst_11 {dimension_numbers = #tpu.dot_dimension_numbers<[1], [0], [0], [1], [0, 0, 1, 1], [], []>} : vector<16x64xbf16>, vector<64x32xbf16>, vector<16x32xf32> -> vector<16x32xf32>
    %16 = arith.addf %12, %15 : vector<16x32xf32>
    %c0_12 = arith.constant 0 : index
    %c0_13 = arith.constant 0 : index
    %17 = vector.load %arg10[%c0_12, %c0_13] : memref<16x32xf32, #tpu.memory_space<vmem>>, vector<16x32xf32>
    tpu.vector_store %arg10[%c0_12, %c0_13], %16 {strides = array<i32>} : memref<16x32xf32, #tpu.memory_space<vmem>>, vector<16x32xf32>,
    %c0_i32_14 = arith.constant 0 : i32
    %18 = arith.cmpi eq, %arg1, %c0_i32_14 : i32
    %19 = arith.extui %18 : i1 to i32
    %c0_i32_15 = arith.constant 0 : i32
    %20 = arith.cmpi ne, %19, %c0_i32_15 : i32
    scf.if %20 {
      %c0_16 = arith.constant 0 : index
      %c0_17 = arith.constant 0 : index
      %21 = vector.load %arg2[%c0_16, %c0_17] : memref<16x32xf32, #tpu.memory_space<vmem>>, vector<16x32xf32>
      %c0_18 = arith.constant 0 : index
      %c0_19 = arith.constant 0 : index
      %22 = vector.load %arg10[%c0_18, %c0_19] : memref<16x32xf32, #tpu.memory_space<vmem>>, vector<16x32xf32>
      %23 = arith.addf %21, %22 : vector<16x32xf32>
      %c0_20 = arith.constant 0 : index
      %c0_21 = arith.constant 0 : index
      %24 = vector.load %arg6[%c0_20, %c0_21] : memref<1x32xf32, #tpu.memory_space<vmem>>, vector<1x32xf32>
      %25 = vector.broadcast %24 : vector<1x32xf32> to vector<16x32xf32>
      %26 = arith.addf %23, %25 : vector<16x32xf32>
      %cst_22 = arith.constant dense<0.000000e+00> : vector<16xf32>
      %27 = vector.multi_reduction <add>, %26, %cst_22 [1] : vector<16x32xf32> to vector<16xf32>
      %28 = vector.shape_cast %27 : vector<16xf32> to vector<16x1xf32>
      %cst_23 = arith.constant 3.200000e+01 : f32
      %29 = vector.broadcast %cst_23 : f32 to vector<16x1xf32>
      %30 = arith.divf %28, %29 : vector<16x1xf32>
      %31 = vector.broadcast %30 : vector<16x1xf32> to vector<16x32xf32>
      %32 = arith.subf %26, %31 : vector<16x32xf32>
      %33 = arith.mulf %32, %32 : vector<16x32xf32>
      %cst_24 = arith.constant dense<0.000000e+00> : vector<16xf32>
      %34 = vector.multi_reduction <add>, %33, %cst_24 [1] : vector<16x32xf32> to vector<16xf32>
      %35 = vector.shape_cast %34 : vector<16xf32> to vector<16x1xf32>
      %cst_25 = arith.constant 3.200000e+01 : f32
      %36 = vector.broadcast %cst_25 : f32 to vector<16x1xf32>
      %37 = arith.divf %35, %36 : vector<16x1xf32>
      %38 = vector.broadcast %30 : vector<16x1xf32> to vector<16x32xf32>
      %39 = arith.subf %26, %38 : vector<16x32xf32>
      %cst_26 = arith.constant 9.99999974E-6 : f32
      %40 = vector.broadcast %cst_26 : f32 to vector<16x1xf32>
      %41 = arith.addf %37, %40 : vector<16x1xf32>
      %42 = math.rsqrt %41 : vector<16x1xf32>
      %43 = vector.broadcast %42 : vector<16x1xf32> to vector<16x32xf32>
      %44 = arith.mulf %39, %43 : vector<16x32xf32>
      %c0_27 = arith.constant 0 : index
      %c0_28 = arith.constant 0 : index
      %45 = vector.load %arg7[%c0_27, %c0_28] : memref<1x32xf32, #tpu.memory_space<vmem>>, vector<1x32xf32>
      %46 = vector.broadcast %45 : vector<1x32xf32> to vector<16x32xf32>
      %47 = arith.mulf %44, %46 : vector<16x32xf32>
      %c0_29 = arith.constant 0 : index
      %c0_30 = arith.constant 0 : index
      %48 = vector.load %arg8[%c0_29, %c0_30] : memref<1x32xf32, #tpu.memory_space<vmem>>, vector<1x32xf32>
      %49 = vector.broadcast %48 : vector<1x32xf32> to vector<16x32xf32>
      %50 = arith.addf %47, %49 : vector<16x32xf32>
      %c0_31 = arith.constant 0 : index
      %c0_32 = arith.constant 0 : index
      %51 = vector.load %arg9[%c0_31, %c0_32] : memref<16x32xf32, #tpu.memory_space<vmem>>, vector<16x32xf32>
      tpu.vector_store %arg9[%c0_31, %c0_32], %50 {strides = array<i32>} : memref<16x32xf32, #tpu.memory_space<vmem>>, vector<16x32xf32>,
    } else {
    }
    return
  }
  func.func @transform_0(%arg0: i32, %arg1: i32) -> (i32, i32) {
    %c0_i32 = arith.constant 0 : i32
    %c0_i32_0 = arith.constant 0 : i32
    return %arg0, %c0_i32 : i32, i32
  }
  func.func @transform_1(%arg0: i32, %arg1: i32) -> (i32, i32) {
    %c0_i32 = arith.constant 0 : i32
    %c0_i32_0 = arith.constant 0 : i32
    return %c0_i32, %arg1 : i32, i32
  }
  func.func @transform_2(%arg0: i32, %arg1: i32) -> (i32, i32) {
    %c0_i32 = arith.constant 0 : i32
    %c0_i32_0 = arith.constant 0 : i32
    return %c0_i32, %arg1 : i32, i32
  }
  func.func @transform_3(%arg0: i32, %arg1: i32) -> (i32, i32) {
    %c0_i32 = arith.constant 0 : i32
    %c0_i32_0 = arith.constant 0 : i32
    return %arg1, %c0_i32 : i32, i32
  }
  func.func @transform_4(%arg0: i32, %arg1: i32) -> (i32, i32) {
    %c0_i32 = arith.constant 0 : i32
    %c0_i32_0 = arith.constant 0 : i32
    %c0_i32_1 = arith.constant 0 : i32
    return %c0_i32, %c0_i32_0 : i32, i32
  }
  func.func @transform_5(%arg0: i32, %arg1: i32) -> (i32, i32) {
    %c0_i32 = arith.constant 0 : i32
    %c0_i32_0 = arith.constant 0 : i32
    %c0_i32_1 = arith.constant 0 : i32
    return %c0_i32, %c0_i32_0 : i32, i32
  }
  func.func @transform_6(%arg0: i32, %arg1: i32) -> (i32, i32) {
    %c0_i32 = arith.constant 0 : i32
    %c0_i32_0 = arith.constant 0 : i32
    %c0_i32_1 = arith.constant 0 : i32
    return %c0_i32, %c0_i32_0 : i32, i32
  }
  func.func @transform_7(%arg0: i32, %arg1: i32) -> (i32, i32) {
    %c0_i32 = arith.constant 0 : i32
    %c0_i32_0 = arith.constant 0 : i32
    return %arg0, %c0_i32 : i32, i32
  }
}

module attributes {stable_mosaic.version = 11 : i64} {
  func.func @_linear_kernel(%arg0: i32, %arg1: i32, %arg2: i32, %arg3: memref<16x32xf32, #tpu.memory_space<vmem>>, %arg4: memref<32x40xbf16, #tpu.memory_space<vmem>>, %arg5: memref<1x40xf32, #tpu.memory_space<vmem>>, %arg6: memref<16x40xf32, #tpu.memory_space<vmem>>, %arg7: memref<16x40xf32, #tpu.memory_space<vmem>>) attributes {dimension_semantics = [#tpu.dimension_semantics<parallel>, #tpu.dimension_semantics<parallel>, #tpu.dimension_semantics<arbitrary>], iteration_bounds = array<i64: 1, 1, 1>, scalar_prefetch = 0 : i64, scratch_operands = 1 : i64, tpu.core_type = #tpu.core_type<tc>, window_params = [{transform_indices = @transform_0, window_bounds = array<i64: 16, 32>}, {transform_indices = @transform_1, window_bounds = array<i64: 32, 40>}, {transform_indices = @transform_2, window_bounds = array<i64: 1, 40>}, {transform_indices = @transform_3, window_bounds = array<i64: 16, 40>}]} {
    %c0_i32 = arith.constant 0 : i32
    %0 = arith.cmpi eq, %arg2, %c0_i32 : i32
    %1 = arith.extui %0 : i1 to i32
    %c0_i32_0 = arith.constant 0 : i32
    %2 = arith.cmpi ne, %1, %c0_i32_0 : i32
    scf.if %2 {
      %cst_10 = arith.constant 0.000000e+00 : f32
      %13 = vector.broadcast %cst_10 : f32 to vector<16x40xf32>
      %c0_11 = arith.constant 0 : index
      %c0_12 = arith.constant 0 : index
      %14 = vector.load %arg7[%c0_11, %c0_12] : memref<16x40xf32, #tpu.memory_space<vmem>>, vector<16x40xf32>
      tpu.vector_store %arg7[%c0_11, %c0_12], %13 {strides = array<i32>} : memref<16x40xf32, #tpu.memory_space<vmem>>, vector<16x40xf32>,
    } else {
    }
    %c0 = arith.constant 0 : index
    %c0_1 = arith.constant 0 : index
    %3 = vector.load %arg7[%c0, %c0_1] : memref<16x40xf32, #tpu.memory_space<vmem>>, vector<16x40xf32>
    %c0_2 = arith.constant 0 : index
    %c0_3 = arith.constant 0 : index
    %4 = vector.load %arg3[%c0_2, %c0_3] : memref<16x32xf32, #tpu.memory_space<vmem>>, vector<16x32xf32>
    %5 = arith.truncf %4 : vector<16x32xf32> to vector<16x32xbf16>
    %c0_4 = arith.constant 0 : index
    %c0_5 = arith.constant 0 : index
    %6 = vector.load %arg4[%c0_4, %c0_5] : memref<32x40xbf16, #tpu.memory_space<vmem>>, vector<32x40xbf16>
    %cst = arith.constant dense<0.000000e+00> : vector<16x40xf32>
    %7 = tpu.matmul %5, %6, %cst {dimension_numbers = #tpu.dot_dimension_numbers<[1], [0], [0], [1], [0, 0, 1, 1], [], []>} : vector<16x32xbf16>, vector<32x40xbf16>, vector<16x40xf32> -> vector<16x40xf32>
    %8 = arith.addf %3, %7 : vector<16x40xf32>
    %c0_6 = arith.constant 0 : index
    %c0_7 = arith.constant 0 : index
    %9 = vector.load %arg7[%c0_6, %c0_7] : memref<16x40xf32, #tpu.memory_space<vmem>>, vector<16x40xf32>
    tpu.vector_store %arg7[%c0_6, %c0_7], %8 {strides = array<i32>} : memref<16x40xf32, #tpu.memory_space<vmem>>, vector<16x40xf32>,
    %c0_i32_8 = arith.constant 0 : i32
    %10 = arith.cmpi eq, %arg2, %c0_i32_8 : i32
    %11 = arith.extui %10 : i1 to i32
    %c0_i32_9 = arith.constant 0 : i32
    %12 = arith.cmpi ne, %11, %c0_i32_9 : i32
    scf.if %12 {
      %c0_10 = arith.constant 0 : index
      %c0_11 = arith.constant 0 : index
      %13 = vector.load %arg7[%c0_10, %c0_11] : memref<16x40xf32, #tpu.memory_space<vmem>>, vector<16x40xf32>
      %c0_12 = arith.constant 0 : index
      %c0_13 = arith.constant 0 : index
      %14 = vector.load %arg5[%c0_12, %c0_13] : memref<1x40xf32, #tpu.memory_space<vmem>>, vector<1x40xf32>
      %15 = vector.broadcast %14 : vector<1x40xf32> to vector<16x40xf32>
      %16 = arith.addf %13, %15 : vector<16x40xf32>
      %c0_14 = arith.constant 0 : index
      %c0_15 = arith.constant 0 : index
      %17 = vector.load %arg6[%c0_14, %c0_15] : memref<16x40xf32, #tpu.memory_space<vmem>>, vector<16x40xf32>
      tpu.vector_store %arg6[%c0_14, %c0_15], %16 {strides = array<i32>} : memref<16x40xf32, #tpu.memory_space<vmem>>, vector<16x40xf32>,
    } else {
    }
    return
  }
  func.func @transform_0(%arg0: i32, %arg1: i32, %arg2: i32) -> (i32, i32) {
    %c0_i32 = arith.constant 0 : i32
    return %arg0, %arg2 : i32, i32
  }
  func.func @transform_1(%arg0: i32, %arg1: i32, %arg2: i32) -> (i32, i32) {
    %c0_i32 = arith.constant 0 : i32
    return %arg2, %arg1 : i32, i32
  }
  func.func @transform_2(%arg0: i32, %arg1: i32, %arg2: i32) -> (i32, i32) {
    %c0_i32 = arith.constant 0 : i32
    %c0_i32_0 = arith.constant 0 : i32
    return %c0_i32, %arg1 : i32, i32
  }
  func.func @transform_3(%arg0: i32, %arg1: i32, %arg2: i32) -> (i32, i32) {
    %c0_i32 = arith.constant 0 : i32
    return %arg0, %arg1 : i32, i32
  }
}

module attributes {stable_mosaic.version = 11 : i64} {
  func.func @_mha_ln_kernel(%arg0: i32, %arg1: i32, %arg2: memref<1x8x32xf32, #tpu.memory_space<vmem>>, %arg3: memref<1x8x32xf32, #tpu.memory_space<vmem>>, %arg4: memref<1x1x8xf32, #tpu.memory_space<vmem>>, %arg5: memref<4x32x8xbf16, #tpu.memory_space<vmem>>, %arg6: memref<4x32x8xbf16, #tpu.memory_space<vmem>>, %arg7: memref<4x32x8xbf16, #tpu.memory_space<vmem>>, %arg8: memref<4x8x32xbf16, #tpu.memory_space<vmem>>, %arg9: memref<1x32xf32, #tpu.memory_space<vmem>>, %arg10: memref<1x32xf32, #tpu.memory_space<vmem>>, %arg11: memref<1x8x32xf32, #tpu.memory_space<vmem>>, %arg12: memref<4x8x8xbf16, #tpu.memory_space<vmem>>, %arg13: memref<4x8x8xbf16, #tpu.memory_space<vmem>>) attributes {dimension_semantics = [#tpu.dimension_semantics<parallel>, #tpu.dimension_semantics<arbitrary>], iteration_bounds = array<i64: 2, 1>, scalar_prefetch = 0 : i64, scratch_operands = 2 : i64, tpu.core_type = #tpu.core_type<tc>, window_params = [{transform_indices = @transform_0, window_bounds = array<i64: 1, 8, 32>}, {transform_indices = @transform_1, window_bounds = array<i64: 1, 8, 32>}, {transform_indices = @transform_2, window_bounds = array<i64: 1, 1, 8>}, {pipeline_mode = #tpu.pipeline_mode<synchronous>, transform_indices = @transform_3, window_bounds = array<i64: 4, 32, 8>}, {pipeline_mode = #tpu.pipeline_mode<synchronous>, transform_indices = @transform_4, window_bounds = array<i64: 4, 32, 8>}, {pipeline_mode = #tpu.pipeline_mode<synchronous>, transform_indices = @transform_5, window_bounds = array<i64: 4, 32, 8>}, {pipeline_mode = #tpu.pipeline_mode<synchronous>, transform_indices = @transform_6, window_bounds = array<i64: 4, 8, 32>}, {pipeline_mode = #tpu.pipeline_mode<synchronous>, transform_indices = @transform_7, window_bounds = array<i64: 1, 32>}, {pipeline_mode = #tpu.pipeline_mode<synchronous>, transform_indices = @transform_8, window_bounds = array<i64: 1, 32>}, {transform_indices = @transform_9, window_bounds = array<i64: 1, 8, 32>}]} {
    %c0_i32 = arith.constant 0 : i32
    %0 = arith.cmpi eq, %arg1, %c0_i32 : i32
    %1 = arith.extui %0 : i1 to i32
    %c0_i32_0 = arith.constant 0 : i32
    %2 = arith.cmpi ne, %1, %c0_i32_0 : i32
    scf.if %2 {
      %c0_95 = arith.constant 0 : index
      %c0_96 = arith.constant 0 : index
      %c0_97 = arith.constant 0 : index
      %165 = vector.load %arg3[%c0_95, %c0_96, %c0_97] : memref<1x8x32xf32, #tpu.memory_space<vmem>>, vector<1x8x32xf32>
      %166 = vector.shape_cast %165 : vector<1x8x32xf32> to vector<8x32xf32>
      %167 = arith.truncf %166 : vector<8x32xf32> to vector<8x32xbf16>
      %c0_98 = arith.constant 0 : index
      %c0_99 = arith.constant 0 : index
      %c0_100 = arith.constant 0 : index
      %168 = vector.load %arg6[%c0_98, %c0_99, %c0_100] : memref<4x32x8xbf16, #tpu.memory_space<vmem>>, vector<1x32x8xbf16>
      %169 = vector.shape_cast %168 : vector<1x32x8xbf16> to vector<32x8xbf16>
      %cst_101 = arith.constant dense<0.000000e+00> : vector<8x8xf32>
      %170 = tpu.matmul %167, %169, %cst_101 {dimension_numbers = #tpu.dot_dimension_numbers<[1], [0], [0], [1], [0, 0, 1, 1], [], []>} : vector<8x32xbf16>, vector<32x8xbf16>, vector<8x8xf32> -> vector<8x8xf32>
      %171 = arith.truncf %170 : vector<8x8xf32> to vector<8x8xbf16>
      %c0_102 = arith.constant 0 : index
      %c0_103 = arith.constant 0 : index
      %c0_104 = arith.constant 0 : index
      %172 = vector.load %arg12[%c0_102, %c0_103, %c0_104] : memref<4x8x8xbf16, #tpu.memory_space<vmem>>, vector<1x8x8xbf16>
      %173 = vector.shape_cast %172 : vector<1x8x8xbf16> to vector<8x8xbf16>
      %174 = vector.shape_cast %171 : vector<8x8xbf16> to vector<1x8x8xbf16>
      tpu.vector_store %arg12[%c0_102, %c0_103, %c0_104], %174 {strides = array<i32>} : memref<4x8x8xbf16, #tpu.memory_space<vmem>>, vector<1x8x8xbf16>,
      %c0_105 = arith.constant 0 : index
      %c0_106 = arith.constant 0 : index
      %c0_107 = arith.constant 0 : index
      %175 = vector.load %arg7[%c0_105, %c0_106, %c0_107] : memref<4x32x8xbf16, #tpu.memory_space<vmem>>, vector<1x32x8xbf16>
      %176 = vector.shape_cast %175 : vector<1x32x8xbf16> to vector<32x8xbf16>
      %cst_108 = arith.constant dense<0.000000e+00> : vector<8x8xf32>
      %177 = tpu.matmul %167, %176, %cst_108 {dimension_numbers = #tpu.dot_dimension_numbers<[1], [0], [0], [1], [0, 0, 1, 1], [], []>} : vector<8x32xbf16>, vector<32x8xbf16>, vector<8x8xf32> -> vector<8x8xf32>
      %178 = arith.truncf %177 : vector<8x8xf32> to vector<8x8xbf16>
      %c0_109 = arith.constant 0 : index
      %c0_110 = arith.constant 0 : index
      %c0_111 = arith.constant 0 : index
      %179 = vector.load %arg13[%c0_109, %c0_110, %c0_111] : memref<4x8x8xbf16, #tpu.memory_space<vmem>>, vector<1x8x8xbf16>
      %180 = vector.shape_cast %179 : vector<1x8x8xbf16> to vector<8x8xbf16>
      %181 = vector.shape_cast %178 : vector<8x8xbf16> to vector<1x8x8xbf16>
      tpu.vector_store %arg13[%c0_109, %c0_110, %c0_111], %181 {strides = array<i32>} : memref<4x8x8xbf16, #tpu.memory_space<vmem>>, vector<1x8x8xbf16>,
      %c1_112 = arith.constant 1 : index
      %c0_113 = arith.constant 0 : index
      %c0_114 = arith.constant 0 : index
      %182 = vector.load %arg6[%c1_112, %c0_113, %c0_114] : memref<4x32x8xbf16, #tpu.memory_space<vmem>>, vector<1x32x8xbf16>
      %183 = vector.shape_cast %182 : vector<1x32x8xbf16> to vector<32x8xbf16>
      %cst_115 = arith.constant dense<0.000000e+00> : vector<8x8xf32>
      %184 = tpu.matmul %167, %183, %cst_115 {dimension_numbers = #tpu.dot_dimension_numbers<[1], [0], [0], [1], [0, 0, 1, 1], [], []>} : vector<8x32xbf16>, vector<32x8xbf16>, vector<8x8xf32> -> vector<8x8xf32>
      %185 = arith.truncf %184 : vector<8x8xf32> to vector<8x8xbf16>
      %c1_116 = arith.constant 1 : index
      %c0_117 = arith.constant 0 : index
      %c0_118 = arith.constant 0 : index
      %186 = vector.load %arg12[%c1_116, %c0_117, %c0_118] : memref<4x8x8xbf16, #tpu.memory_space<vmem>>, vector<1x8x8xbf16>
      %187 = vector.shape_cast %186 : vector<1x8x8xbf16> to vector<8x8xbf16>
      %188 = vector.shape_cast %185 : vector<8x8xbf16> to vector<1x8x8xbf16>
      tpu.vector_store %arg12[%c1_116, %c0_117, %c0_118], %188 {strides = array<i32>} : memref<4x8x8xbf16, #tpu.memory_space<vmem>>, vector<1x8x8xbf16>,
      %c1_119 = arith.constant 1 : index
      %c0_120 = arith.constant 0 : index
      %c0_121 = arith.constant 0 : index
      %189 = vector.load %arg7[%c1_119, %c0_120, %c0_121] : memref<4x32x8xbf16, #tpu.memory_space<vmem>>, vector<1x32x8xbf16>
      %190 = vector.shape_cast %189 : vector<1x32x8xbf16> to vector<32x8xbf16>
      %cst_122 = arith.constant dense<0.000000e+00> : vector<8x8xf32>
      %191 = tpu.matmul %167, %190, %cst_122 {dimension_numbers = #tpu.dot_dimension_numbers<[1], [0], [0], [1], [0, 0, 1, 1], [], []>} : vector<8x32xbf16>, vector<32x8xbf16>, vector<8x8xf32> -> vector<8x8xf32>
      %192 = arith.truncf %191 : vector<8x8xf32> to vector<8x8xbf16>
      %c1_123 = arith.constant 1 : index
      %c0_124 = arith.constant 0 : index
      %c0_125 = arith.constant 0 : index
      %193 = vector.load %arg13[%c1_123, %c0_124, %c0_125] : memref<4x8x8xbf16, #tpu.memory_space<vmem>>, vector<1x8x8xbf16>
      %194 = vector.shape_cast %193 : vector<1x8x8xbf16> to vector<8x8xbf16>
      %195 = vector.shape_cast %192 : vector<8x8xbf16> to vector<1x8x8xbf16>
      tpu.vector_store %arg13[%c1_123, %c0_124, %c0_125], %195 {strides = array<i32>} : memref<4x8x8xbf16, #tpu.memory_space<vmem>>, vector<1x8x8xbf16>,
      %c2_126 = arith.constant 2 : index
      %c0_127 = arith.constant 0 : index
      %c0_128 = arith.constant 0 : index
      %196 = vector.load %arg6[%c2_126, %c0_127, %c0_128] : memref<4x32x8xbf16, #tpu.memory_space<vmem>>, vector<1x32x8xbf16>
      %197 = vector.shape_cast %196 : vector<1x32x8xbf16> to vector<32x8xbf16>
      %cst_129 = arith.constant dense<0.000000e+00> : vector<8x8xf32>
      %198 = tpu.matmul %167, %197, %cst_129 {dimension_numbers = #tpu.dot_dimension_numbers<[1], [0], [0], [1], [0, 0, 1, 1], [], []>} : vector<8x32xbf16>, vector<32x8xbf16>, vector<8x8xf32> -> vector<8x8xf32>
      %199 = arith.truncf %198 : vector<8x8xf32> to vector<8x8xbf16>
      %c2_130 = arith.constant 2 : index
      %c0_131 = arith.constant 0 : index
      %c0_132 = arith.constant 0 : index
      %200 = vector.load %arg12[%c2_130, %c0_131, %c0_132] : memref<4x8x8xbf16, #tpu.memory_space<vmem>>, vector<1x8x8xbf16>
      %201 = vector.shape_cast %200 : vector<1x8x8xbf16> to vector<8x8xbf16>
      %202 = vector.shape_cast %199 : vector<8x8xbf16> to vector<1x8x8xbf16>
      tpu.vector_store %arg12[%c2_130, %c0_131, %c0_132], %202 {strides = array<i32>} : memref<4x8x8xbf16, #tpu.memory_space<vmem>>, vector<1x8x8xbf16>,
      %c2_133 = arith.constant 2 : index
      %c0_134 = arith.constant 0 : index
      %c0_135 = arith.constant 0 : index
      %203 = vector.load %arg7[%c2_133, %c0_134, %c0_135] : memref<4x32x8xbf16, #tpu.memory_space<vmem>>, vector<1x32x8xbf16>
      %204 = vector.shape_cast %203 : vector<1x32x8xbf16> to vector<32x8xbf16>
      %cst_136 = arith.constant dense<0.000000e+00> : vector<8x8xf32>
      %205 = tpu.matmul %167, %204, %cst_136 {dimension_numbers = #tpu.dot_dimension_numbers<[1], [0], [0], [1], [0, 0, 1, 1], [], []>} : vector<8x32xbf16>, vector<32x8xbf16>, vector<8x8xf32> -> vector<8x8xf32>
      %206 = arith.truncf %205 : vector<8x8xf32> to vector<8x8xbf16>
      %c2_137 = arith.constant 2 : index
      %c0_138 = arith.constant 0 : index
      %c0_139 = arith.constant 0 : index
      %207 = vector.load %arg13[%c2_137, %c0_138, %c0_139] : memref<4x8x8xbf16, #tpu.memory_space<vmem>>, vector<1x8x8xbf16>
      %208 = vector.shape_cast %207 : vector<1x8x8xbf16> to vector<8x8xbf16>
      %209 = vector.shape_cast %206 : vector<8x8xbf16> to vector<1x8x8xbf16>
      tpu.vector_store %arg13[%c2_137, %c0_138, %c0_139], %209 {strides = array<i32>} : memref<4x8x8xbf16, #tpu.memory_space<vmem>>, vector<1x8x8xbf16>,
      %c3_140 = arith.constant 3 : index
      %c0_141 = arith.constant 0 : index
      %c0_142 = arith.constant 0 : index
      %210 = vector.load %arg6[%c3_140, %c0_141, %c0_142] : memref<4x32x8xbf16, #tpu.memory_space<vmem>>, vector<1x32x8xbf16>
      %211 = vector.shape_cast %210 : vector<1x32x8xbf16> to vector<32x8xbf16>
      %cst_143 = arith.constant dense<0.000000e+00> : vector<8x8xf32>
      %212 = tpu.matmul %167, %211, %cst_143 {dimension_numbers = #tpu.dot_dimension_numbers<[1], [0], [0], [1], [0, 0, 1, 1], [], []>} : vector<8x32xbf16>, vector<32x8xbf16>, vector<8x8xf32> -> vector<8x8xf32>
      %213 = arith.truncf %212 : vector<8x8xf32> to vector<8x8xbf16>
      %c3_144 = arith.constant 3 : index
      %c0_145 = arith.constant 0 : index
      %c0_146 = arith.constant 0 : index
      %214 = vector.load %arg12[%c3_144, %c0_145, %c0_146] : memref<4x8x8xbf16, #tpu.memory_space<vmem>>, vector<1x8x8xbf16>
      %215 = vector.shape_cast %214 : vector<1x8x8xbf16> to vector<8x8xbf16>
      %216 = vector.shape_cast %213 : vector<8x8xbf16> to vector<1x8x8xbf16>
      tpu.vector_store %arg12[%c3_144, %c0_145, %c0_146], %216 {strides = array<i32>} : memref<4x8x8xbf16, #tpu.memory_space<vmem>>, vector<1x8x8xbf16>,
      %c3_147 = arith.constant 3 : index
      %c0_148 = arith.constant 0 : index
      %c0_149 = arith.constant 0 : index
      %217 = vector.load %arg7[%c3_147, %c0_148, %c0_149] : memref<4x32x8xbf16, #tpu.memory_space<vmem>>, vector<1x32x8xbf16>
      %218 = vector.shape_cast %217 : vector<1x32x8xbf16> to vector<32x8xbf16>
      %cst_150 = arith.constant dense<0.000000e+00> : vector<8x8xf32>
      %219 = tpu.matmul %167, %218, %cst_150 {dimension_numbers = #tpu.dot_dimension_numbers<[1], [0], [0], [1], [0, 0, 1, 1], [], []>} : vector<8x32xbf16>, vector<32x8xbf16>, vector<8x8xf32> -> vector<8x8xf32>
      %220 = arith.truncf %219 : vector<8x8xf32> to vector<8x8xbf16>
      %c3_151 = arith.constant 3 : index
      %c0_152 = arith.constant 0 : index
      %c0_153 = arith.constant 0 : index
      %221 = vector.load %arg13[%c3_151, %c0_152, %c0_153] : memref<4x8x8xbf16, #tpu.memory_space<vmem>>, vector<1x8x8xbf16>
      %222 = vector.shape_cast %221 : vector<1x8x8xbf16> to vector<8x8xbf16>
      %223 = vector.shape_cast %220 : vector<8x8xbf16> to vector<1x8x8xbf16>
      tpu.vector_store %arg13[%c3_151, %c0_152, %c0_153], %223 {strides = array<i32>} : memref<4x8x8xbf16, #tpu.memory_space<vmem>>, vector<1x8x8xbf16>,
    } else {
    }
    %c0 = arith.constant 0 : index
    %c0_1 = arith.constant 0 : index
    %c0_2 = arith.constant 0 : index
    %3 = vector.load %arg2[%c0, %c0_1, %c0_2] : memref<1x8x32xf32, #tpu.memory_space<vmem>>, vector<1x8x32xf32>
    %4 = vector.shape_cast %3 : vector<1x8x32xf32> to vector<8x32xf32>
    %5 = arith.truncf %4 : vector<8x32xf32> to vector<8x32xbf16>
    %c0_3 = arith.constant 0 : index
    %c0_4 = arith.constant 0 : index
    %c0_5 = arith.constant 0 : index
    %6 = vector.load %arg4[%c0_3, %c0_4, %c0_5] : memref<1x1x8xf32, #tpu.memory_space<vmem>>, vector<1x1x8xf32>
    %7 = vector.shape_cast %6 : vector<1x1x8xf32> to vector<1x8xf32>
    %cst = arith.constant 5.000000e-01 : f32
    %8 = vector.broadcast %cst : f32 to vector<1x8xf32>
    %9 = arith.cmpf ogt, %7, %8 : vector<1x8xf32>
    %c0_6 = arith.constant 0 : index
    %c0_7 = arith.constant 0 : index
    %c0_8 = arith.constant 0 : index
    %10 = vector.load %arg5[%c0_6, %c0_7, %c0_8] : memref<4x32x8xbf16, #tpu.memory_space<vmem>>, vector<1x32x8xbf16>
    %11 = vector.shape_cast %10 : vector<1x32x8xbf16> to vector<32x8xbf16>
    %cst_9 = arith.constant dense<0.000000e+00> : vector<8x8xf32>
    %12 = tpu.matmul %5, %11, %cst_9 {dimension_numbers = #tpu.dot_dimension_numbers<[1], [0], [0], [1], [0, 0, 1, 1], [], []>} : vector<8x32xbf16>, vector<32x8xbf16>, vector<8x8xf32> -> vector<8x8xf32>
    %cst_10 = arith.constant 0.353553385 : f32
    %13 = vector.broadcast %cst_10 : f32 to vector<8x8xf32>
    %14 = arith.mulf %12, %13 : vector<8x8xf32>
    %15 = arith.truncf %14 : vector<8x8xf32> to vector<8x8xbf16>
    %c0_11 = arith.constant 0 : index
    %c0_12 = arith.constant 0 : index
    %c0_13 = arith.constant 0 : index
    %16 = vector.load %arg12[%c0_11, %c0_12, %c0_13] : memref<4x8x8xbf16, #tpu.memory_space<vmem>>, vector<1x8x8xbf16>
    %17 = vector.shape_cast %16 : vector<1x8x8xbf16> to vector<8x8xbf16>
    %cst_14 = arith.constant dense<0.000000e+00> : vector<8x8xf32>
    %18 = tpu.matmul %15, %17, %cst_14 {dimension_numbers = #tpu.dot_dimension_numbers<[1], [1], [0], [0], [0, 0, 1, 0], [], []>} : vector<8x8xbf16>, vector<8x8xbf16>, vector<8x8xf32> -> vector<8x8xf32>
    %cst_15 = arith.constant -1.000000e+09 : f32
    %19 = vector.shape_cast %9 : vector<1x8xi1> to vector<1x8xi1>
    %20 = vector.broadcast %19 : vector<1x8xi1> to vector<8x8xi1>
    %21 = vector.broadcast %cst_15 : f32 to vector<8x8xf32>
    %22 = arith.select %20, %21, %18 : vector<8x8xi1>, vector<8x8xf32>
    %cst_16 = arith.constant dense<0xFF800000> : vector<8xf32>
    %23 = vector.multi_reduction <maximumf>, %22, %cst_16 [1] : vector<8x8xf32> to vector<8xf32>
    %24 = vector.shape_cast %23 : vector<8xf32> to vector<8x1xf32>
    %25 = vector.broadcast %24 : vector<8x1xf32> to vector<8x8xf32>
    %26 = arith.subf %22, %25 : vector<8x8xf32>
    %27 = math.exp %26 : vector<8x8xf32>
    %cst_17 = arith.constant dense<0.000000e+00> : vector<8xf32>
    %28 = vector.multi_reduction <add>, %27, %cst_17 [1] : vector<8x8xf32> to vector<8xf32>
    %29 = vector.shape_cast %28 : vector<8xf32> to vector<8x1xf32>
    %30 = tpu.reciprocal %29 {approx = true} : vector<8x1xf32> -> vector<8x1xf32>
    %31 = vector.broadcast %30 : vector<8x1xf32> to vector<8x8xf32>
    %32 = arith.mulf %27, %31 : vector<8x8xf32>
    %33 = arith.truncf %32 : vector<8x8xf32> to vector<8x8xbf16>
    %c0_18 = arith.constant 0 : index
    %c0_19 = arith.constant 0 : index
    %c0_20 = arith.constant 0 : index
    %34 = vector.load %arg13[%c0_18, %c0_19, %c0_20] : memref<4x8x8xbf16, #tpu.memory_space<vmem>>, vector<1x8x8xbf16>
    %35 = vector.shape_cast %34 : vector<1x8x8xbf16> to vector<8x8xbf16>
    %cst_21 = arith.constant dense<0.000000e+00> : vector<8x8xf32>
    %36 = tpu.matmul %33, %35, %cst_21 {dimension_numbers = #tpu.dot_dimension_numbers<[1], [0], [0], [1], [0, 0, 1, 1], [], []>} : vector<8x8xbf16>, vector<8x8xbf16>, vector<8x8xf32> -> vector<8x8xf32>
    %37 = arith.truncf %36 : vector<8x8xf32> to vector<8x8xbf16>
    %c0_22 = arith.constant 0 : index
    %c0_23 = arith.constant 0 : index
    %c0_24 = arith.constant 0 : index
    %38 = vector.load %arg8[%c0_22, %c0_23, %c0_24] : memref<4x8x32xbf16, #tpu.memory_space<vmem>>, vector<1x8x32xbf16>
    %39 = vector.shape_cast %38 : vector<1x8x32xbf16> to vector<8x32xbf16>
    %cst_25 = arith.constant dense<0.000000e+00> : vector<8x32xf32>
    %40 = tpu.matmul %37, %39, %cst_25 {dimension_numbers = #tpu.dot_dimension_numbers<[1], [0], [0], [1], [0, 0, 1, 1], [], []>} : vector<8x8xbf16>, vector<8x32xbf16>, vector<8x32xf32> -> vector<8x32xf32>
    %c1 = arith.constant 1 : index
    %c0_26 = arith.constant 0 : index
    %c0_27 = arith.constant 0 : index
    %41 = vector.load %arg5[%c1, %c0_26, %c0_27] : memref<4x32x8xbf16, #tpu.memory_space<vmem>>, vector<1x32x8xbf16>
    %42 = vector.shape_cast %41 : vector<1x32x8xbf16> to vector<32x8xbf16>
    %cst_28 = arith.constant dense<0.000000e+00> : vector<8x8xf32>
    %43 = tpu.matmul %5, %42, %cst_28 {dimension_numbers = #tpu.dot_dimension_numbers<[1], [0], [0], [1], [0, 0, 1, 1], [], []>} : vector<8x32xbf16>, vector<32x8xbf16>, vector<8x8xf32> -> vector<8x8xf32>
    %cst_29 = arith.constant 0.353553385 : f32
    %44 = vector.broadcast %cst_29 : f32 to vector<8x8xf32>
    %45 = arith.mulf %43, %44 : vector<8x8xf32>
    %46 = arith.truncf %45 : vector<8x8xf32> to vector<8x8xbf16>
    %c1_30 = arith.constant 1 : index
    %c0_31 = arith.constant 0 : index
    %c0_32 = arith.constant 0 : index
    %47 = vector.load %arg12[%c1_30, %c0_31, %c0_32] : memref<4x8x8xbf16, #tpu.memory_space<vmem>>, vector<1x8x8xbf16>
    %48 = vector.shape_cast %47 : vector<1x8x8xbf16> to vector<8x8xbf16>
    %cst_33 = arith.constant dense<0.000000e+00> : vector<8x8xf32>
    %49 = tpu.matmul %46, %48, %cst_33 {dimension_numbers = #tpu.dot_dimension_numbers<[1], [1], [0], [0], [0, 0, 1, 0], [], []>} : vector<8x8xbf16>, vector<8x8xbf16>, vector<8x8xf32> -> vector<8x8xf32>
    %cst_34 = arith.constant -1.000000e+09 : f32
    %50 = vector.shape_cast %9 : vector<1x8xi1> to vector<1x8xi1>
    %51 = vector.broadcast %50 : vector<1x8xi1> to vector<8x8xi1>
    %52 = vector.broadcast %cst_34 : f32 to vector<8x8xf32>
    %53 = arith.select %51, %52, %49 : vector<8x8xi1>, vector<8x8xf32>
    %cst_35 = arith.constant dense<0xFF800000> : vector<8xf32>
    %54 = vector.multi_reduction <maximumf>, %53, %cst_35 [1] : vector<8x8xf32> to vector<8xf32>
    %55 = vector.shape_cast %54 : vector<8xf32> to vector<8x1xf32>
    %56 = vector.broadcast %55 : vector<8x1xf32> to vector<8x8xf32>
    %57 = arith.subf %53, %56 : vector<8x8xf32>
    %58 = math.exp %57 : vector<8x8xf32>
    %cst_36 = arith.constant dense<0.000000e+00> : vector<8xf32>
    %59 = vector.multi_reduction <add>, %58, %cst_36 [1] : vector<8x8xf32> to vector<8xf32>
    %60 = vector.shape_cast %59 : vector<8xf32> to vector<8x1xf32>
    %61 = tpu.reciprocal %60 {approx = true} : vector<8x1xf32> -> vector<8x1xf32>
    %62 = vector.broadcast %61 : vector<8x1xf32> to vector<8x8xf32>
    %63 = arith.mulf %58, %62 : vector<8x8xf32>
    %64 = arith.truncf %63 : vector<8x8xf32> to vector<8x8xbf16>
    %c1_37 = arith.constant 1 : index
    %c0_38 = arith.constant 0 : index
    %c0_39 = arith.constant 0 : index
    %65 = vector.load %arg13[%c1_37, %c0_38, %c0_39] : memref<4x8x8xbf16, #tpu.memory_space<vmem>>, vector<1x8x8xbf16>
    %66 = vector.shape_cast %65 : vector<1x8x8xbf16> to vector<8x8xbf16>
    %cst_40 = arith.constant dense<0.000000e+00> : vector<8x8xf32>
    %67 = tpu.matmul %64, %66, %cst_40 {dimension_numbers = #tpu.dot_dimension_numbers<[1], [0], [0], [1], [0, 0, 1, 1], [], []>} : vector<8x8xbf16>, vector<8x8xbf16>, vector<8x8xf32> -> vector<8x8xf32>
    %68 = arith.truncf %67 : vector<8x8xf32> to vector<8x8xbf16>
    %c1_41 = arith.constant 1 : index
    %c0_42 = arith.constant 0 : index
    %c0_43 = arith.constant 0 : index
    %69 = vector.load %arg8[%c1_41, %c0_42, %c0_43] : memref<4x8x32xbf16, #tpu.memory_space<vmem>>, vector<1x8x32xbf16>
    %70 = vector.shape_cast %69 : vector<1x8x32xbf16> to vector<8x32xbf16>
    %cst_44 = arith.constant dense<0.000000e+00> : vector<8x32xf32>
    %71 = tpu.matmul %68, %70, %cst_44 {dimension_numbers = #tpu.dot_dimension_numbers<[1], [0], [0], [1], [0, 0, 1, 1], [], []>} : vector<8x8xbf16>, vector<8x32xbf16>, vector<8x32xf32> -> vector<8x32xf32>
    %72 = arith.addf %40, %71 : vector<8x32xf32>
    %c2 = arith.constant 2 : index
    %c0_45 = arith.constant 0 : index
    %c0_46 = arith.constant 0 : index
    %73 = vector.load %arg5[%c2, %c0_45, %c0_46] : memref<4x32x8xbf16, #tpu.memory_space<vmem>>, vector<1x32x8xbf16>
    %74 = vector.shape_cast %73 : vector<1x32x8xbf16> to vector<32x8xbf16>
    %cst_47 = arith.constant dense<0.000000e+00> : vector<8x8xf32>
    %75 = tpu.matmul %5, %74, %cst_47 {dimension_numbers = #tpu.dot_dimension_numbers<[1], [0], [0], [1], [0, 0, 1, 1], [], []>} : vector<8x32xbf16>, vector<32x8xbf16>, vector<8x8xf32> -> vector<8x8xf32>
    %cst_48 = arith.constant 0.353553385 : f32
    %76 = vector.broadcast %cst_48 : f32 to vector<8x8xf32>
    %77 = arith.mulf %75, %76 : vector<8x8xf32>
    %78 = arith.truncf %77 : vector<8x8xf32> to vector<8x8xbf16>
    %c2_49 = arith.constant 2 : index
    %c0_50 = arith.constant 0 : index
    %c0_51 = arith.constant 0 : index
    %79 = vector.load %arg12[%c2_49, %c0_50, %c0_51] : memref<4x8x8xbf16, #tpu.memory_space<vmem>>, vector<1x8x8xbf16>
    %80 = vector.shape_cast %79 : vector<1x8x8xbf16> to vector<8x8xbf16>
    %cst_52 = arith.constant dense<0.000000e+00> : vector<8x8xf32>
    %81 = tpu.matmul %78, %80, %cst_52 {dimension_numbers = #tpu.dot_dimension_numbers<[1], [1], [0], [0], [0, 0, 1, 0], [], []>} : vector<8x8xbf16>, vector<8x8xbf16>, vector<8x8xf32> -> vector<8x8xf32>
    %cst_53 = arith.constant -1.000000e+09 : f32
    %82 = vector.shape_cast %9 : vector<1x8xi1> to vector<1x8xi1>
    %83 = vector.broadcast %82 : vector<1x8xi1> to vector<8x8xi1>
    %84 = vector.broadcast %cst_53 : f32 to vector<8x8xf32>
    %85 = arith.select %83, %84, %81 : vector<8x8xi1>, vector<8x8xf32>
    %cst_54 = arith.constant dense<0xFF800000> : vector<8xf32>
    %86 = vector.multi_reduction <maximumf>, %85, %cst_54 [1] : vector<8x8xf32> to vector<8xf32>
    %87 = vector.shape_cast %86 : vector<8xf32> to vector<8x1xf32>
    %88 = vector.broadcast %87 : vector<8x1xf32> to vector<8x8xf32>
    %89 = arith.subf %85, %88 : vector<8x8xf32>
    %90 = math.exp %89 : vector<8x8xf32>
    %cst_55 = arith.constant dense<0.000000e+00> : vector<8xf32>
    %91 = vector.multi_reduction <add>, %90, %cst_55 [1] : vector<8x8xf32> to vector<8xf32>
    %92 = vector.shape_cast %91 : vector<8xf32> to vector<8x1xf32>
    %93 = tpu.reciprocal %92 {approx = true} : vector<8x1xf32> -> vector<8x1xf32>
    %94 = vector.broadcast %93 : vector<8x1xf32> to vector<8x8xf32>
    %95 = arith.mulf %90, %94 : vector<8x8xf32>
    %96 = arith.truncf %95 : vector<8x8xf32> to vector<8x8xbf16>
    %c2_56 = arith.constant 2 : index
    %c0_57 = arith.constant 0 : index
    %c0_58 = arith.constant 0 : index
    %97 = vector.load %arg13[%c2_56, %c0_57, %c0_58] : memref<4x8x8xbf16, #tpu.memory_space<vmem>>, vector<1x8x8xbf16>
    %98 = vector.shape_cast %97 : vector<1x8x8xbf16> to vector<8x8xbf16>
    %cst_59 = arith.constant dense<0.000000e+00> : vector<8x8xf32>
    %99 = tpu.matmul %96, %98, %cst_59 {dimension_numbers = #tpu.dot_dimension_numbers<[1], [0], [0], [1], [0, 0, 1, 1], [], []>} : vector<8x8xbf16>, vector<8x8xbf16>, vector<8x8xf32> -> vector<8x8xf32>
    %100 = arith.truncf %99 : vector<8x8xf32> to vector<8x8xbf16>
    %c2_60 = arith.constant 2 : index
    %c0_61 = arith.constant 0 : index
    %c0_62 = arith.constant 0 : index
    %101 = vector.load %arg8[%c2_60, %c0_61, %c0_62] : memref<4x8x32xbf16, #tpu.memory_space<vmem>>, vector<1x8x32xbf16>
    %102 = vector.shape_cast %101 : vector<1x8x32xbf16> to vector<8x32xbf16>
    %cst_63 = arith.constant dense<0.000000e+00> : vector<8x32xf32>
    %103 = tpu.matmul %100, %102, %cst_63 {dimension_numbers = #tpu.dot_dimension_numbers<[1], [0], [0], [1], [0, 0, 1, 1], [], []>} : vector<8x8xbf16>, vector<8x32xbf16>, vector<8x32xf32> -> vector<8x32xf32>
    %104 = arith.addf %72, %103 : vector<8x32xf32>
    %c3 = arith.constant 3 : index
    %c0_64 = arith.constant 0 : index
    %c0_65 = arith.constant 0 : index
    %105 = vector.load %arg5[%c3, %c0_64, %c0_65] : memref<4x32x8xbf16, #tpu.memory_space<vmem>>, vector<1x32x8xbf16>
    %106 = vector.shape_cast %105 : vector<1x32x8xbf16> to vector<32x8xbf16>
    %cst_66 = arith.constant dense<0.000000e+00> : vector<8x8xf32>
    %107 = tpu.matmul %5, %106, %cst_66 {dimension_numbers = #tpu.dot_dimension_numbers<[1], [0], [0], [1], [0, 0, 1, 1], [], []>} : vector<8x32xbf16>, vector<32x8xbf16>, vector<8x8xf32> -> vector<8x8xf32>
    %cst_67 = arith.constant 0.353553385 : f32
    %108 = vector.broadcast %cst_67 : f32 to vector<8x8xf32>
    %109 = arith.mulf %107, %108 : vector<8x8xf32>
    %110 = arith.truncf %109 : vector<8x8xf32> to vector<8x8xbf16>
    %c3_68 = arith.constant 3 : index
    %c0_69 = arith.constant 0 : index
    %c0_70 = arith.constant 0 : index
    %111 = vector.load %arg12[%c3_68, %c0_69, %c0_70] : memref<4x8x8xbf16, #tpu.memory_space<vmem>>, vector<1x8x8xbf16>
    %112 = vector.shape_cast %111 : vector<1x8x8xbf16> to vector<8x8xbf16>
    %cst_71 = arith.constant dense<0.000000e+00> : vector<8x8xf32>
    %113 = tpu.matmul %110, %112, %cst_71 {dimension_numbers = #tpu.dot_dimension_numbers<[1], [1], [0], [0], [0, 0, 1, 0], [], []>} : vector<8x8xbf16>, vector<8x8xbf16>, vector<8x8xf32> -> vector<8x8xf32>
    %cst_72 = arith.constant -1.000000e+09 : f32
    %114 = vector.shape_cast %9 : vector<1x8xi1> to vector<1x8xi1>
    %115 = vector.broadcast %114 : vector<1x8xi1> to vector<8x8xi1>
    %116 = vector.broadcast %cst_72 : f32 to vector<8x8xf32>
    %117 = arith.select %115, %116, %113 : vector<8x8xi1>, vector<8x8xf32>
    %cst_73 = arith.constant dense<0xFF800000> : vector<8xf32>
    %118 = vector.multi_reduction <maximumf>, %117, %cst_73 [1] : vector<8x8xf32> to vector<8xf32>
    %119 = vector.shape_cast %118 : vector<8xf32> to vector<8x1xf32>
    %120 = vector.broadcast %119 : vector<8x1xf32> to vector<8x8xf32>
    %121 = arith.subf %117, %120 : vector<8x8xf32>
    %122 = math.exp %121 : vector<8x8xf32>
    %cst_74 = arith.constant dense<0.000000e+00> : vector<8xf32>
    %123 = vector.multi_reduction <add>, %122, %cst_74 [1] : vector<8x8xf32> to vector<8xf32>
    %124 = vector.shape_cast %123 : vector<8xf32> to vector<8x1xf32>
    %125 = tpu.reciprocal %124 {approx = true} : vector<8x1xf32> -> vector<8x1xf32>
    %126 = vector.broadcast %125 : vector<8x1xf32> to vector<8x8xf32>
    %127 = arith.mulf %122, %126 : vector<8x8xf32>
    %128 = arith.truncf %127 : vector<8x8xf32> to vector<8x8xbf16>
    %c3_75 = arith.constant 3 : index
    %c0_76 = arith.constant 0 : index
    %c0_77 = arith.constant 0 : index
    %129 = vector.load %arg13[%c3_75, %c0_76, %c0_77] : memref<4x8x8xbf16, #tpu.memory_space<vmem>>, vector<1x8x8xbf16>
    %130 = vector.shape_cast %129 : vector<1x8x8xbf16> to vector<8x8xbf16>
    %cst_78 = arith.constant dense<0.000000e+00> : vector<8x8xf32>
    %131 = tpu.matmul %128, %130, %cst_78 {dimension_numbers = #tpu.dot_dimension_numbers<[1], [0], [0], [1], [0, 0, 1, 1], [], []>} : vector<8x8xbf16>, vector<8x8xbf16>, vector<8x8xf32> -> vector<8x8xf32>
    %132 = arith.truncf %131 : vector<8x8xf32> to vector<8x8xbf16>
    %c3_79 = arith.constant 3 : index
    %c0_80 = arith.constant 0 : index
    %c0_81 = arith.constant 0 : index
    %133 = vector.load %arg8[%c3_79, %c0_80, %c0_81] : memref<4x8x32xbf16, #tpu.memory_space<vmem>>, vector<1x8x32xbf16>
    %134 = vector.shape_cast %133 : vector<1x8x32xbf16> to vector<8x32xbf16>
    %cst_82 = arith.constant dense<0.000000e+00> : vector<8x32xf32>
    %135 = tpu.matmul %132, %134, %cst_82 {dimension_numbers = #tpu.dot_dimension_numbers<[1], [0], [0], [1], [0, 0, 1, 1], [], []>} : vector<8x8xbf16>, vector<8x32xbf16>, vector<8x32xf32> -> vector<8x32xf32>
    %136 = arith.addf %104, %135 : vector<8x32xf32>
    %137 = arith.addf %4, %136 : vector<8x32xf32>
    %cst_83 = arith.constant dense<0.000000e+00> : vector<8xf32>
    %138 = vector.multi_reduction <add>, %137, %cst_83 [1] : vector<8x32xf32> to vector<8xf32>
    %139 = vector.shape_cast %138 : vector<8xf32> to vector<8x1xf32>
    %cst_84 = arith.constant 3.200000e+01 : f32
    %140 = vector.broadcast %cst_84 : f32 to vector<8x1xf32>
    %141 = arith.divf %139, %140 : vector<8x1xf32>
    %142 = vector.broadcast %141 : vector<8x1xf32> to vector<8x32xf32>
    %143 = arith.subf %137, %142 : vector<8x32xf32>
    %144 = arith.mulf %143, %143 : vector<8x32xf32>
    %cst_85 = arith.constant dense<0.000000e+00> : vector<8xf32>
    %145 = vector.multi_reduction <add>, %144, %cst_85 [1] : vector<8x32xf32> to vector<8xf32>
    %146 = vector.shape_cast %145 : vector<8xf32> to vector<8x1xf32>
    %cst_86 = arith.constant 3.200000e+01 : f32
    %147 = vector.broadcast %cst_86 : f32 to vector<8x1xf32>
    %148 = arith.divf %146, %147 : vector<8x1xf32>
    %149 = vector.broadcast %141 : vector<8x1xf32> to vector<8x32xf32>
    %150 = arith.subf %137, %149 : vector<8x32xf32>
    %cst_87 = arith.constant 9.99999974E-6 : f32
    %151 = vector.broadcast %cst_87 : f32 to vector<8x1xf32>
    %152 = arith.addf %148, %151 : vector<8x1xf32>
    %153 = math.rsqrt %152 : vector<8x1xf32>
    %154 = vector.broadcast %153 : vector<8x1xf32> to vector<8x32xf32>
    %155 = arith.mulf %150, %154 : vector<8x32xf32>
    %c0_88 = arith.constant 0 : index
    %c0_89 = arith.constant 0 : index
    %156 = vector.load %arg9[%c0_88, %c0_89] : memref<1x32xf32, #tpu.memory_space<vmem>>, vector<1x32xf32>
    %157 = vector.broadcast %156 : vector<1x32xf32> to vector<8x32xf32>
    %158 = arith.mulf %155, %157 : vector<8x32xf32>
    %c0_90 = arith.constant 0 : index
    %c0_91 = arith.constant 0 : index
    %159 = vector.load %arg10[%c0_90, %c0_91] : memref<1x32xf32, #tpu.memory_space<vmem>>, vector<1x32xf32>
    %160 = vector.broadcast %159 : vector<1x32xf32> to vector<8x32xf32>
    %161 = arith.addf %158, %160 : vector<8x32xf32>
    %c0_92 = arith.constant 0 : index
    %c0_93 = arith.constant 0 : index
    %c0_94 = arith.constant 0 : index
    %162 = vector.load %arg11[%c0_92, %c0_93, %c0_94] : memref<1x8x32xf32, #tpu.memory_space<vmem>>, vector<1x8x32xf32>
    %163 = vector.shape_cast %162 : vector<1x8x32xf32> to vector<8x32xf32>
    %164 = vector.shape_cast %161 : vector<8x32xf32> to vector<1x8x32xf32>
    tpu.vector_store %arg11[%c0_92, %c0_93, %c0_94], %164 {strides = array<i32>} : memref<1x8x32xf32, #tpu.memory_space<vmem>>, vector<1x8x32xf32>,
    return
  }
  func.func @transform_0(%arg0: i32, %arg1: i32) -> (i32, i32, i32) {
    %c0_i32 = arith.constant 0 : i32
    %c0_i32_0 = arith.constant 0 : i32
    return %arg0, %arg1, %c0_i32 : i32, i32, i32
  }
  func.func @transform_1(%arg0: i32, %arg1: i32) -> (i32, i32, i32) {
    %c0_i32 = arith.constant 0 : i32
    %c0_i32_0 = arith.constant 0 : i32
    %c0_i32_1 = arith.constant 0 : i32
    return %arg0, %c0_i32, %c0_i32_0 : i32, i32, i32
  }
  func.func @transform_2(%arg0: i32, %arg1: i32) -> (i32, i32, i32) {
    %c0_i32 = arith.constant 0 : i32
    %c0_i32_0 = arith.constant 0 : i32
    %c0_i32_1 = arith.constant 0 : i32
    return %arg0, %c0_i32, %c0_i32_0 : i32, i32, i32
  }
  func.func @transform_3(%arg0: i32, %arg1: i32) -> (i32, i32, i32) {
    %c0_i32 = arith.constant 0 : i32
    %c0_i32_0 = arith.constant 0 : i32
    %c0_i32_1 = arith.constant 0 : i32
    %c0_i32_2 = arith.constant 0 : i32
    return %c0_i32, %c0_i32_0, %c0_i32_1 : i32, i32, i32
  }
  func.func @transform_4(%arg0: i32, %arg1: i32) -> (i32, i32, i32) {
    %c0_i32 = arith.constant 0 : i32
    %c0_i32_0 = arith.constant 0 : i32
    %c0_i32_1 = arith.constant 0 : i32
    %c0_i32_2 = arith.constant 0 : i32
    return %c0_i32, %c0_i32_0, %c0_i32_1 : i32, i32, i32
  }
  func.func @transform_5(%arg0: i32, %arg1: i32) -> (i32, i32, i32) {
    %c0_i32 = arith.constant 0 : i32
    %c0_i32_0 = arith.constant 0 : i32
    %c0_i32_1 = arith.constant 0 : i32
    %c0_i32_2 = arith.constant 0 : i32
    return %c0_i32, %c0_i32_0, %c0_i32_1 : i32, i32, i32
  }
  func.func @transform_6(%arg0: i32, %arg1: i32) -> (i32, i32, i32) {
    %c0_i32 = arith.constant 0 : i32
    %c0_i32_0 = arith.constant 0 : i32
    %c0_i32_1 = arith.constant 0 : i32
    %c0_i32_2 = arith.constant 0 : i32
    return %c0_i32, %c0_i32_0, %c0_i32_1 : i32, i32, i32
  }
  func.func @transform_7(%arg0: i32, %arg1: i32) -> (i32, i32) {
    %c0_i32 = arith.constant 0 : i32
    %c0_i32_0 = arith.constant 0 : i32
    %c0_i32_1 = arith.constant 0 : i32
    return %c0_i32, %c0_i32_0 : i32, i32
  }
  func.func @transform_8(%arg0: i32, %arg1: i32) -> (i32, i32) {
    %c0_i32 = arith.constant 0 : i32
    %c0_i32_0 = arith.constant 0 : i32
    %c0_i32_1 = arith.constant 0 : i32
    return %c0_i32, %c0_i32_0 : i32, i32
  }
  func.func @transform_9(%arg0: i32, %arg1: i32) -> (i32, i32, i32) {
    %c0_i32 = arith.constant 0 : i32
    %c0_i32_0 = arith.constant 0 : i32
    return %arg0, %arg1, %c0_i32 : i32, i32, i32
  }
}

module attributes {stable_mosaic.version = 11 : i64} {
  func.func @_mha_ln_kernel(%arg0: i32, %arg1: i32, %arg2: memref<1x8x32xf32, #tpu.memory_space<vmem>>, %arg3: memref<1x8x32xf32, #tpu.memory_space<vmem>>, %arg4: memref<1x1x8xf32, #tpu.memory_space<vmem>>, %arg5: memref<4x32x8xbf16, #tpu.memory_space<vmem>>, %arg6: memref<4x32x8xbf16, #tpu.memory_space<vmem>>, %arg7: memref<4x32x8xbf16, #tpu.memory_space<vmem>>, %arg8: memref<4x8x32xbf16, #tpu.memory_space<vmem>>, %arg9: memref<1x32xf32, #tpu.memory_space<vmem>>, %arg10: memref<1x32xf32, #tpu.memory_space<vmem>>, %arg11: memref<1x8x32xf32, #tpu.memory_space<vmem>>, %arg12: memref<4x8x8xbf16, #tpu.memory_space<vmem>>, %arg13: memref<4x8x8xbf16, #tpu.memory_space<vmem>>) attributes {dimension_semantics = [#tpu.dimension_semantics<parallel>, #tpu.dimension_semantics<arbitrary>], iteration_bounds = array<i64: 2, 1>, scalar_prefetch = 0 : i64, scratch_operands = 2 : i64, tpu.core_type = #tpu.core_type<tc>, window_params = [{transform_indices = @transform_0, window_bounds = array<i64: 1, 8, 32>}, {transform_indices = @transform_1, window_bounds = array<i64: 1, 8, 32>}, {transform_indices = @transform_2, window_bounds = array<i64: 1, 1, 8>}, {pipeline_mode = #tpu.pipeline_mode<synchronous>, transform_indices = @transform_3, window_bounds = array<i64: 4, 32, 8>}, {pipeline_mode = #tpu.pipeline_mode<synchronous>, transform_indices = @transform_4, window_bounds = array<i64: 4, 32, 8>}, {pipeline_mode = #tpu.pipeline_mode<synchronous>, transform_indices = @transform_5, window_bounds = array<i64: 4, 32, 8>}, {pipeline_mode = #tpu.pipeline_mode<synchronous>, transform_indices = @transform_6, window_bounds = array<i64: 4, 8, 32>}, {pipeline_mode = #tpu.pipeline_mode<synchronous>, transform_indices = @transform_7, window_bounds = array<i64: 1, 32>}, {pipeline_mode = #tpu.pipeline_mode<synchronous>, transform_indices = @transform_8, window_bounds = array<i64: 1, 32>}, {transform_indices = @transform_9, window_bounds = array<i64: 1, 8, 32>}]} {
    %c0_i32 = arith.constant 0 : i32
    %0 = arith.cmpi eq, %arg1, %c0_i32 : i32
    %1 = arith.extui %0 : i1 to i32
    %c0_i32_0 = arith.constant 0 : i32
    %2 = arith.cmpi ne, %1, %c0_i32_0 : i32
    scf.if %2 {
      %c0_95 = arith.constant 0 : index
      %c0_96 = arith.constant 0 : index
      %c0_97 = arith.constant 0 : index
      %165 = vector.load %arg3[%c0_95, %c0_96, %c0_97] : memref<1x8x32xf32, #tpu.memory_space<vmem>>, vector<1x8x32xf32>
      %166 = vector.shape_cast %165 : vector<1x8x32xf32> to vector<8x32xf32>
      %167 = arith.truncf %166 : vector<8x32xf32> to vector<8x32xbf16>
      %c0_98 = arith.constant 0 : index
      %c0_99 = arith.constant 0 : index
      %c0_100 = arith.constant 0 : index
      %168 = vector.load %arg6[%c0_98, %c0_99, %c0_100] : memref<4x32x8xbf16, #tpu.memory_space<vmem>>, vector<1x32x8xbf16>
      %169 = vector.shape_cast %168 : vector<1x32x8xbf16> to vector<32x8xbf16>
      %cst_101 = arith.constant dense<0.000000e+00> : vector<8x8xf32>
      %170 = tpu.matmul %167, %169, %cst_101 {dimension_numbers = #tpu.dot_dimension_numbers<[1], [0], [0], [1], [0, 0, 1, 1], [], []>} : vector<8x32xbf16>, vector<32x8xbf16>, vector<8x8xf32> -> vector<8x8xf32>
      %171 = arith.truncf %170 : vector<8x8xf32> to vector<8x8xbf16>
      %c0_102 = arith.constant 0 : index
      %c0_103 = arith.constant 0 : index
      %c0_104 = arith.constant 0 : index
      %172 = vector.load %arg12[%c0_102, %c0_103, %c0_104] : memref<4x8x8xbf16, #tpu.memory_space<vmem>>, vector<1x8x8xbf16>
      %173 = vector.shape_cast %172 : vector<1x8x8xbf16> to vector<8x8xbf16>
      %174 = vector.shape_cast %171 : vector<8x8xbf16> to vector<1x8x8xbf16>
      tpu.vector_store %arg12[%c0_102, %c0_103, %c0_104], %174 {strides = array<i32>} : memref<4x8x8xbf16, #tpu.memory_space<vmem>>, vector<1x8x8xbf16>,
      %c0_105 = arith.constant 0 : index
      %c0_106 = arith.constant 0 : index
      %c0_107 = arith.constant 0 : index
      %175 = vector.load %arg7[%c0_105, %c0_106, %c0_107] : memref<4x32x8xbf16, #tpu.memory_space<vmem>>, vector<1x32x8xbf16>
      %176 = vector.shape_cast %175 : vector<1x32x8xbf16> to vector<32x8xbf16>
      %cst_108 = arith.constant dense<0.000000e+00> : vector<8x8xf32>
      %177 = tpu.matmul %167, %176, %cst_108 {dimension_numbers = #tpu.dot_dimension_numbers<[1], [0], [0], [1], [0, 0, 1, 1], [], []>} : vector<8x32xbf16>, vector<32x8xbf16>, vector<8x8xf32> -> vector<8x8xf32>
      %178 = arith.truncf %177 : vector<8x8xf32> to vector<8x8xbf16>
      %c0_109 = arith.constant 0 : index
      %c0_110 = arith.constant 0 : index
      %c0_111 = arith.constant 0 : index
      %179 = vector.load %arg13[%c0_109, %c0_110, %c0_111] : memref<4x8x8xbf16, #tpu.memory_space<vmem>>, vector<1x8x8xbf16>
      %180 = vector.shape_cast %179 : vector<1x8x8xbf16> to vector<8x8xbf16>
      %181 = vector.shape_cast %178 : vector<8x8xbf16> to vector<1x8x8xbf16>
      tpu.vector_store %arg13[%c0_109, %c0_110, %c0_111], %181 {strides = array<i32>} : memref<4x8x8xbf16, #tpu.memory_space<vmem>>, vector<1x8x8xbf16>,
      %c1_112 = arith.constant 1 : index
      %c0_113 = arith.constant 0 : index
      %c0_114 = arith.constant 0 : index
      %182 = vector.load %arg6[%c1_112, %c0_113, %c0_114] : memref<4x32x8xbf16, #tpu.memory_space<vmem>>, vector<1x32x8xbf16>
      %183 = vector.shape_cast %182 : vector<1x32x8xbf16> to vector<32x8xbf16>
      %cst_115 = arith.constant dense<0.000000e+00> : vector<8x8xf32>
      %184 = tpu.matmul %167, %183, %cst_115 {dimension_numbers = #tpu.dot_dimension_numbers<[1], [0], [0], [1], [0, 0, 1, 1], [], []>} : vector<8x32xbf16>, vector<32x8xbf16>, vector<8x8xf32> -> vector<8x8xf32>
      %185 = arith.truncf %184 : vector<8x8xf32> to vector<8x8xbf16>
      %c1_116 = arith.constant 1 : index
      %c0_117 = arith.constant 0 : index
      %c0_118 = arith.constant 0 : index
      %186 = vector.load %arg12[%c1_116, %c0_117, %c0_118] : memref<4x8x8xbf16, #tpu.memory_space<vmem>>, vector<1x8x8xbf16>
      %187 = vector.shape_cast %186 : vector<1x8x8xbf16> to vector<8x8xbf16>
      %188 = vector.shape_cast %185 : vector<8x8xbf16> to vector<1x8x8xbf16>
      tpu.vector_store %arg12[%c1_116, %c0_117, %c0_118], %188 {strides = array<i32>} : memref<4x8x8xbf16, #tpu.memory_space<vmem>>, vector<1x8x8xbf16>,
      %c1_119 = arith.constant 1 : index
      %c0_120 = arith.constant 0 : index
      %c0_121 = arith.constant 0 : index
      %189 = vector.load %arg7[%c1_119, %c0_120, %c0_121] : memref<4x32x8xbf16, #tpu.memory_space<vmem>>, vector<1x32x8xbf16>
      %190 = vector.shape_cast %189 : vector<1x32x8xbf16> to vector<32x8xbf16>
      %cst_122 = arith.constant dense<0.000000e+00> : vector<8x8xf32>
      %191 = tpu.matmul %167, %190, %cst_122 {dimension_numbers = #tpu.dot_dimension_numbers<[1], [0], [0], [1], [0, 0, 1, 1], [], []>} : vector<8x32xbf16>, vector<32x8xbf16>, vector<8x8xf32> -> vector<8x8xf32>
      %192 = arith.truncf %191 : vector<8x8xf32> to vector<8x8xbf16>
      %c1_123 = arith.constant 1 : index
      %c0_124 = arith.constant 0 : index
      %c0_125 = arith.constant 0 : index
      %193 = vector.load %arg13[%c1_123, %c0_124, %c0_125] : memref<4x8x8xbf16, #tpu.memory_space<vmem>>, vector<1x8x8xbf16>
      %194 = vector.shape_cast %193 : vector<1x8x8xbf16> to vector<8x8xbf16>
      %195 = vector.shape_cast %192 : vector<8x8xbf16> to vector<1x8x8xbf16>
      tpu.vector_store %arg13[%c1_123, %c0_124, %c0_125], %195 {strides = array<i32>} : memref<4x8x8xbf16, #tpu.memory_space<vmem>>, vector<1x8x8xbf16>,
      %c2_126 = arith.constant 2 : index
      %c0_127 = arith.constant 0 : index
      %c0_128 = arith.constant 0 : index
      %196 = vector.load %arg6[%c2_126, %c0_127, %c0_128] : memref<4x32x8xbf16, #tpu.memory_space<vmem>>, vector<1x32x8xbf16>
      %197 = vector.shape_cast %196 : vector<1x32x8xbf16> to vector<32x8xbf16>
      %cst_129 = arith.constant dense<0.000000e+00> : vector<8x8xf32>
      %198 = tpu.matmul %167, %197, %cst_129 {dimension_numbers = #tpu.dot_dimension_numbers<[1], [0], [0], [1], [0, 0, 1, 1], [], []>} : vector<8x32xbf16>, vector<32x8xbf16>, vector<8x8xf32> -> vector<8x8xf32>
      %199 = arith.truncf %198 : vector<8x8xf32> to vector<8x8xbf16>
      %c2_130 = arith.constant 2 : index
      %c0_131 = arith.constant 0 : index
      %c0_132 = arith.constant 0 : index
      %200 = vector.load %arg12[%c2_130, %c0_131, %c0_132] : memref<4x8x8xbf16, #tpu.memory_space<vmem>>, vector<1x8x8xbf16>
      %201 = vector.shape_cast %200 : vector<1x8x8xbf16> to vector<8x8xbf16>
      %202 = vector.shape_cast %199 : vector<8x8xbf16> to vector<1x8x8xbf16>
      tpu.vector_store %arg12[%c2_130, %c0_131, %c0_132], %202 {strides = array<i32>} : memref<4x8x8xbf16, #tpu.memory_space<vmem>>, vector<1x8x8xbf16>,
      %c2_133 = arith.constant 2 : index
      %c0_134 = arith.constant 0 : index
      %c0_135 = arith.constant 0 : index
      %203 = vector.load %arg7[%c2_133, %c0_134, %c0_135] : memref<4x32x8xbf16, #tpu.memory_space<vmem>>, vector<1x32x8xbf16>
      %204 = vector.shape_cast %203 : vector<1x32x8xbf16> to vector<32x8xbf16>
      %cst_136 = arith.constant dense<0.000000e+00> : vector<8x8xf32>
      %205 = tpu.matmul %167, %204, %cst_136 {dimension_numbers = #tpu.dot_dimension_numbers<[1], [0], [0], [1], [0, 0, 1, 1], [], []>} : vector<8x32xbf16>, vector<32x8xbf16>, vector<8x8xf32> -> vector<8x8xf32>
      %206 = arith.truncf %205 : vector<8x8xf32> to vector<8x8xbf16>
      %c2_137 = arith.constant 2 : index
      %c0_138 = arith.constant 0 : index
      %c0_139 = arith.constant 0 : index
      %207 = vector.load %arg13[%c2_137, %c0_138, %c0_139] : memref<4x8x8xbf16, #tpu.memory_space<vmem>>, vector<1x8x8xbf16>
      %208 = vector.shape_cast %207 : vector<1x8x8xbf16> to vector<8x8xbf16>
      %209 = vector.shape_cast %206 : vector<8x8xbf16> to vector<1x8x8xbf16>
      tpu.vector_store %arg13[%c2_137, %c0_138, %c0_139], %209 {strides = array<i32>} : memref<4x8x8xbf16, #tpu.memory_space<vmem>>, vector<1x8x8xbf16>,
      %c3_140 = arith.constant 3 : index
      %c0_141 = arith.constant 0 : index
      %c0_142 = arith.constant 0 : index
      %210 = vector.load %arg6[%c3_140, %c0_141, %c0_142] : memref<4x32x8xbf16, #tpu.memory_space<vmem>>, vector<1x32x8xbf16>
      %211 = vector.shape_cast %210 : vector<1x32x8xbf16> to vector<32x8xbf16>
      %cst_143 = arith.constant dense<0.000000e+00> : vector<8x8xf32>
      %212 = tpu.matmul %167, %211, %cst_143 {dimension_numbers = #tpu.dot_dimension_numbers<[1], [0], [0], [1], [0, 0, 1, 1], [], []>} : vector<8x32xbf16>, vector<32x8xbf16>, vector<8x8xf32> -> vector<8x8xf32>
      %213 = arith.truncf %212 : vector<8x8xf32> to vector<8x8xbf16>
      %c3_144 = arith.constant 3 : index
      %c0_145 = arith.constant 0 : index
      %c0_146 = arith.constant 0 : index
      %214 = vector.load %arg12[%c3_144, %c0_145, %c0_146] : memref<4x8x8xbf16, #tpu.memory_space<vmem>>, vector<1x8x8xbf16>
      %215 = vector.shape_cast %214 : vector<1x8x8xbf16> to vector<8x8xbf16>
      %216 = vector.shape_cast %213 : vector<8x8xbf16> to vector<1x8x8xbf16>
      tpu.vector_store %arg12[%c3_144, %c0_145, %c0_146], %216 {strides = array<i32>} : memref<4x8x8xbf16, #tpu.memory_space<vmem>>, vector<1x8x8xbf16>,
      %c3_147 = arith.constant 3 : index
      %c0_148 = arith.constant 0 : index
      %c0_149 = arith.constant 0 : index
      %217 = vector.load %arg7[%c3_147, %c0_148, %c0_149] : memref<4x32x8xbf16, #tpu.memory_space<vmem>>, vector<1x32x8xbf16>
      %218 = vector.shape_cast %217 : vector<1x32x8xbf16> to vector<32x8xbf16>
      %cst_150 = arith.constant dense<0.000000e+00> : vector<8x8xf32>
      %219 = tpu.matmul %167, %218, %cst_150 {dimension_numbers = #tpu.dot_dimension_numbers<[1], [0], [0], [1], [0, 0, 1, 1], [], []>} : vector<8x32xbf16>, vector<32x8xbf16>, vector<8x8xf32> -> vector<8x8xf32>
      %220 = arith.truncf %219 : vector<8x8xf32> to vector<8x8xbf16>
      %c3_151 = arith.constant 3 : index
      %c0_152 = arith.constant 0 : index
      %c0_153 = arith.constant 0 : index
      %221 = vector.load %arg13[%c3_151, %c0_152, %c0_153] : memref<4x8x8xbf16, #tpu.memory_space<vmem>>, vector<1x8x8xbf16>
      %222 = vector.shape_cast %221 : vector<1x8x8xbf16> to vector<8x8xbf16>
      %223 = vector.shape_cast %220 : vector<8x8xbf16> to vector<1x8x8xbf16>
      tpu.vector_store %arg13[%c3_151, %c0_152, %c0_153], %223 {strides = array<i32>} : memref<4x8x8xbf16, #tpu.memory_space<vmem>>, vector<1x8x8xbf16>,
    } else {
    }
    %c0 = arith.constant 0 : index
    %c0_1 = arith.constant 0 : index
    %c0_2 = arith.constant 0 : index
    %3 = vector.load %arg2[%c0, %c0_1, %c0_2] : memref<1x8x32xf32, #tpu.memory_space<vmem>>, vector<1x8x32xf32>
    %4 = vector.shape_cast %3 : vector<1x8x32xf32> to vector<8x32xf32>
    %5 = arith.truncf %4 : vector<8x32xf32> to vector<8x32xbf16>
    %c0_3 = arith.constant 0 : index
    %c0_4 = arith.constant 0 : index
    %c0_5 = arith.constant 0 : index
    %6 = vector.load %arg4[%c0_3, %c0_4, %c0_5] : memref<1x1x8xf32, #tpu.memory_space<vmem>>, vector<1x1x8xf32>
    %7 = vector.shape_cast %6 : vector<1x1x8xf32> to vector<1x8xf32>
    %cst = arith.constant 5.000000e-01 : f32
    %8 = vector.broadcast %cst : f32 to vector<1x8xf32>
    %9 = arith.cmpf ogt, %7, %8 : vector<1x8xf32>
    %10 = tpu.iota {dimensions = array<i32: 0>} : vector<8x8xi32>
    %c8_i32 = arith.constant 8 : i32
    %11 = arith.muli %arg1, %c8_i32 : i32
    %12 = vector.broadcast %11 : i32 to vector<8x8xi32>
    %13 = arith.addi %10, %12 : vector<8x8xi32>
    %14 = tpu.iota {dimensions = array<i32: 1>} : vector<8x8xi32>
    %15 = arith.cmpi sgt, %14, %13 : vector<8x8xi32>
    %16 = vector.broadcast %9 : vector<1x8xi1> to vector<8x8xi1>
    %17 = arith.ori %16, %15 : vector<8x8xi1>
    %c0_6 = arith.constant 0 : index
    %c0_7 = arith.constant 0 : index
    %c0_8 = arith.constant 0 : index
    %18 = vector.load %arg5[%c0_6, %c0_7, %c0_8] : memref<4x32x8xbf16, #tpu.memory_space<vmem>>, vector<1x32x8xbf16>
    %19 = vector.shape_cast %18 : vector<1x32x8xbf16> to vector<32x8xbf16>
    %cst_9 = arith.constant dense<0.000000e+00> : vector<8x8xf32>
    %20 = tpu.matmul %5, %19, %cst_9 {dimension_numbers = #tpu.dot_dimension_numbers<[1], [0], [0], [1], [0, 0, 1, 1], [], []>} : vector<8x32xbf16>, vector<32x8xbf16>, vector<8x8xf32> -> vector<8x8xf32>
    %cst_10 = arith.constant 0.353553385 : f32
    %21 = vector.broadcast %cst_10 : f32 to vector<8x8xf32>
    %22 = arith.mulf %20, %21 : vector<8x8xf32>
    %23 = arith.truncf %22 : vector<8x8xf32> to vector<8x8xbf16>
    %c0_11 = arith.constant 0 : index
    %c0_12 = arith.constant 0 : index
    %c0_13 = arith.constant 0 : index
    %24 = vector.load %arg12[%c0_11, %c0_12, %c0_13] : memref<4x8x8xbf16, #tpu.memory_space<vmem>>, vector<1x8x8xbf16>
    %25 = vector.shape_cast %24 : vector<1x8x8xbf16> to vector<8x8xbf16>
    %cst_14 = arith.constant dense<0.000000e+00> : vector<8x8xf32>
    %26 = tpu.matmul %23, %25, %cst_14 {dimension_numbers = #tpu.dot_dimension_numbers<[1], [1], [0], [0], [0, 0, 1, 0], [], []>} : vector<8x8xbf16>, vector<8x8xbf16>, vector<8x8xf32> -> vector<8x8xf32>
    %cst_15 = arith.constant -1.000000e+09 : f32
    %27 = vector.broadcast %cst_15 : f32 to vector<8x8xf32>
    %28 = arith.select %17, %27, %26 : vector<8x8xi1>, vector<8x8xf32>
    %cst_16 = arith.constant dense<0xFF800000> : vector<8xf32>
    %29 = vector.multi_reduction <maximumf>, %28, %cst_16 [1] : vector<8x8xf32> to vector<8xf32>
    %30 = vector.shape_cast %29 : vector<8xf32> to vector<8x1xf32>
    %31 = vector.broadcast %30 : vector<8x1xf32> to vector<8x8xf32>
    %32 = arith.subf %28, %31 : vector<8x8xf32>
    %33 = math.exp %32 : vector<8x8xf32>
    %cst_17 = arith.constant dense<0.000000e+00> : vector<8xf32>
    %34 = vector.multi_reduction <add>, %33, %cst_17 [1] : vector<8x8xf32> to vector<8xf32>
    %35 = vector.shape_cast %34 : vector<8xf32> to vector<8x1xf32>
    %36 = tpu.reciprocal %35 {approx = true} : vector<8x1xf32> -> vector<8x1xf32>
    %37 = vector.broadcast %36 : vector<8x1xf32> to vector<8x8xf32>
    %38 = arith.mulf %33, %37 : vector<8x8xf32>
    %39 = arith.truncf %38 : vector<8x8xf32> to vector<8x8xbf16>
    %c0_18 = arith.constant 0 : index
    %c0_19 = arith.constant 0 : index
    %c0_20 = arith.constant 0 : index
    %40 = vector.load %arg13[%c0_18, %c0_19, %c0_20] : memref<4x8x8xbf16, #tpu.memory_space<vmem>>, vector<1x8x8xbf16>
    %41 = vector.shape_cast %40 : vector<1x8x8xbf16> to vector<8x8xbf16>
    %cst_21 = arith.constant dense<0.000000e+00> : vector<8x8xf32>
    %42 = tpu.matmul %39, %41, %cst_21 {dimension_numbers = #tpu.dot_dimension_numbers<[1], [0], [0], [1], [0, 0, 1, 1], [], []>} : vector<8x8xbf16>, vector<8x8xbf16>, vector<8x8xf32> -> vector<8x8xf32>
    %43 = arith.truncf %42 : vector<8x8xf32> to vector<8x8xbf16>
    %c0_22 = arith.constant 0 : index
    %c0_23 = arith.constant 0 : index
    %c0_24 = arith.constant 0 : index
    %44 = vector.load %arg8[%c0_22, %c0_23, %c0_24] : memref<4x8x32xbf16, #tpu.memory_space<vmem>>, vector<1x8x32xbf16>
    %45 = vector.shape_cast %44 : vector<1x8x32xbf16> to vector<8x32xbf16>
    %cst_25 = arith.constant dense<0.000000e+00> : vector<8x32xf32>
    %46 = tpu.matmul %43, %45, %cst_25 {dimension_numbers = #tpu.dot_dimension_numbers<[1], [0], [0], [1], [0, 0, 1, 1], [], []>} : vector<8x8xbf16>, vector<8x32xbf16>, vector<8x32xf32> -> vector<8x32xf32>
    %c1 = arith.constant 1 : index
    %c0_26 = arith.constant 0 : index
    %c0_27 = arith.constant 0 : index
    %47 = vector.load %arg5[%c1, %c0_26, %c0_27] : memref<4x32x8xbf16, #tpu.memory_space<vmem>>, vector<1x32x8xbf16>
    %48 = vector.shape_cast %47 : vector<1x32x8xbf16> to vector<32x8xbf16>
    %cst_28 = arith.constant dense<0.000000e+00> : vector<8x8xf32>
    %49 = tpu.matmul %5, %48, %cst_28 {dimension_numbers = #tpu.dot_dimension_numbers<[1], [0], [0], [1], [0, 0, 1, 1], [], []>} : vector<8x32xbf16>, vector<32x8xbf16>, vector<8x8xf32> -> vector<8x8xf32>
    %cst_29 = arith.constant 0.353553385 : f32
    %50 = vector.broadcast %cst_29 : f32 to vector<8x8xf32>
    %51 = arith.mulf %49, %50 : vector<8x8xf32>
    %52 = arith.truncf %51 : vector<8x8xf32> to vector<8x8xbf16>
    %c1_30 = arith.constant 1 : index
    %c0_31 = arith.constant 0 : index
    %c0_32 = arith.constant 0 : index
    %53 = vector.load %arg12[%c1_30, %c0_31, %c0_32] : memref<4x8x8xbf16, #tpu.memory_space<vmem>>, vector<1x8x8xbf16>
    %54 = vector.shape_cast %53 : vector<1x8x8xbf16> to vector<8x8xbf16>
    %cst_33 = arith.constant dense<0.000000e+00> : vector<8x8xf32>
    %55 = tpu.matmul %52, %54, %cst_33 {dimension_numbers = #tpu.dot_dimension_numbers<[1], [1], [0], [0], [0, 0, 1, 0], [], []>} : vector<8x8xbf16>, vector<8x8xbf16>, vector<8x8xf32> -> vector<8x8xf32>
    %cst_34 = arith.constant -1.000000e+09 : f32
    %56 = vector.broadcast %cst_34 : f32 to vector<8x8xf32>
    %57 = arith.select %17, %56, %55 : vector<8x8xi1>, vector<8x8xf32>
    %cst_35 = arith.constant dense<0xFF800000> : vector<8xf32>
    %58 = vector.multi_reduction <maximumf>, %57, %cst_35 [1] : vector<8x8xf32> to vector<8xf32>
    %59 = vector.shape_cast %58 : vector<8xf32> to vector<8x1xf32>
    %60 = vector.broadcast %59 : vector<8x1xf32> to vector<8x8xf32>
    %61 = arith.subf %57, %60 : vector<8x8xf32>
    %62 = math.exp %61 : vector<8x8xf32>
    %cst_36 = arith.constant dense<0.000000e+00> : vector<8xf32>
    %63 = vector.multi_reduction <add>, %62, %cst_36 [1] : vector<8x8xf32> to vector<8xf32>
    %64 = vector.shape_cast %63 : vector<8xf32> to vector<8x1xf32>
    %65 = tpu.reciprocal %64 {approx = true} : vector<8x1xf32> -> vector<8x1xf32>
    %66 = vector.broadcast %65 : vector<8x1xf32> to vector<8x8xf32>
    %67 = arith.mulf %62, %66 : vector<8x8xf32>
    %68 = arith.truncf %67 : vector<8x8xf32> to vector<8x8xbf16>
    %c1_37 = arith.constant 1 : index
    %c0_38 = arith.constant 0 : index
    %c0_39 = arith.constant 0 : index
    %69 = vector.load %arg13[%c1_37, %c0_38, %c0_39] : memref<4x8x8xbf16, #tpu.memory_space<vmem>>, vector<1x8x8xbf16>
    %70 = vector.shape_cast %69 : vector<1x8x8xbf16> to vector<8x8xbf16>
    %cst_40 = arith.constant dense<0.000000e+00> : vector<8x8xf32>
    %71 = tpu.matmul %68, %70, %cst_40 {dimension_numbers = #tpu.dot_dimension_numbers<[1], [0], [0], [1], [0, 0, 1, 1], [], []>} : vector<8x8xbf16>, vector<8x8xbf16>, vector<8x8xf32> -> vector<8x8xf32>
    %72 = arith.truncf %71 : vector<8x8xf32> to vector<8x8xbf16>
    %c1_41 = arith.constant 1 : index
    %c0_42 = arith.constant 0 : index
    %c0_43 = arith.constant 0 : index
    %73 = vector.load %arg8[%c1_41, %c0_42, %c0_43] : memref<4x8x32xbf16, #tpu.memory_space<vmem>>, vector<1x8x32xbf16>
    %74 = vector.shape_cast %73 : vector<1x8x32xbf16> to vector<8x32xbf16>
    %cst_44 = arith.constant dense<0.000000e+00> : vector<8x32xf32>
    %75 = tpu.matmul %72, %74, %cst_44 {dimension_numbers = #tpu.dot_dimension_numbers<[1], [0], [0], [1], [0, 0, 1, 1], [], []>} : vector<8x8xbf16>, vector<8x32xbf16>, vector<8x32xf32> -> vector<8x32xf32>
    %76 = arith.addf %46, %75 : vector<8x32xf32>
    %c2 = arith.constant 2 : index
    %c0_45 = arith.constant 0 : index
    %c0_46 = arith.constant 0 : index
    %77 = vector.load %arg5[%c2, %c0_45, %c0_46] : memref<4x32x8xbf16, #tpu.memory_space<vmem>>, vector<1x32x8xbf16>
    %78 = vector.shape_cast %77 : vector<1x32x8xbf16> to vector<32x8xbf16>
    %cst_47 = arith.constant dense<0.000000e+00> : vector<8x8xf32>
    %79 = tpu.matmul %5, %78, %cst_47 {dimension_numbers = #tpu.dot_dimension_numbers<[1], [0], [0], [1], [0, 0, 1, 1], [], []>} : vector<8x32xbf16>, vector<32x8xbf16>, vector<8x8xf32> -> vector<8x8xf32>
    %cst_48 = arith.constant 0.353553385 : f32
    %80 = vector.broadcast %cst_48 : f32 to vector<8x8xf32>
    %81 = arith.mulf %79, %80 : vector<8x8xf32>
    %82 = arith.truncf %81 : vector<8x8xf32> to vector<8x8xbf16>
    %c2_49 = arith.constant 2 : index
    %c0_50 = arith.constant 0 : index
    %c0_51 = arith.constant 0 : index
    %83 = vector.load %arg12[%c2_49, %c0_50, %c0_51] : memref<4x8x8xbf16, #tpu.memory_space<vmem>>, vector<1x8x8xbf16>
    %84 = vector.shape_cast %83 : vector<1x8x8xbf16> to vector<8x8xbf16>
    %cst_52 = arith.constant dense<0.000000e+00> : vector<8x8xf32>
    %85 = tpu.matmul %82, %84, %cst_52 {dimension_numbers = #tpu.dot_dimension_numbers<[1], [1], [0], [0], [0, 0, 1, 0], [], []>} : vector<8x8xbf16>, vector<8x8xbf16>, vector<8x8xf32> -> vector<8x8xf32>
    %cst_53 = arith.constant -1.000000e+09 : f32
    %86 = vector.broadcast %cst_53 : f32 to vector<8x8xf32>
    %87 = arith.select %17, %86, %85 : vector<8x8xi1>, vector<8x8xf32>
    %cst_54 = arith.constant dense<0xFF800000> : vector<8xf32>
    %88 = vector.multi_reduction <maximumf>, %87, %cst_54 [1] : vector<8x8xf32> to vector<8xf32>
    %89 = vector.shape_cast %88 : vector<8xf32> to vector<8x1xf32>
    %90 = vector.broadcast %89 : vector<8x1xf32> to vector<8x8xf32>
    %91 = arith.subf %87, %90 : vector<8x8xf32>
    %92 = math.exp %91 : vector<8x8xf32>
    %cst_55 = arith.constant dense<0.000000e+00> : vector<8xf32>
    %93 = vector.multi_reduction <add>, %92, %cst_55 [1] : vector<8x8xf32> to vector<8xf32>
    %94 = vector.shape_cast %93 : vector<8xf32> to vector<8x1xf32>
    %95 = tpu.reciprocal %94 {approx = true} : vector<8x1xf32> -> vector<8x1xf32>
    %96 = vector.broadcast %95 : vector<8x1xf32> to vector<8x8xf32>
    %97 = arith.mulf %92, %96 : vector<8x8xf32>
    %98 = arith.truncf %97 : vector<8x8xf32> to vector<8x8xbf16>
    %c2_56 = arith.constant 2 : index
    %c0_57 = arith.constant 0 : index
    %c0_58 = arith.constant 0 : index
    %99 = vector.load %arg13[%c2_56, %c0_57, %c0_58] : memref<4x8x8xbf16, #tpu.memory_space<vmem>>, vector<1x8x8xbf16>
    %100 = vector.shape_cast %99 : vector<1x8x8xbf16> to vector<8x8xbf16>
    %cst_59 = arith.constant dense<0.000000e+00> : vector<8x8xf32>
    %101 = tpu.matmul %98, %100, %cst_59 {dimension_numbers = #tpu.dot_dimension_numbers<[1], [0], [0], [1], [0, 0, 1, 1], [], []>} : vector<8x8xbf16>, vector<8x8xbf16>, vector<8x8xf32> -> vector<8x8xf32>
    %102 = arith.truncf %101 : vector<8x8xf32> to vector<8x8xbf16>
    %c2_60 = arith.constant 2 : index
    %c0_61 = arith.constant 0 : index
    %c0_62 = arith.constant 0 : index
    %103 = vector.load %arg8[%c2_60, %c0_61, %c0_62] : memref<4x8x32xbf16, #tpu.memory_space<vmem>>, vector<1x8x32xbf16>
    %104 = vector.shape_cast %103 : vector<1x8x32xbf16> to vector<8x32xbf16>
    %cst_63 = arith.constant dense<0.000000e+00> : vector<8x32xf32>
    %105 = tpu.matmul %102, %104, %cst_63 {dimension_numbers = #tpu.dot_dimension_numbers<[1], [0], [0], [1], [0, 0, 1, 1], [], []>} : vector<8x8xbf16>, vector<8x32xbf16>, vector<8x32xf32> -> vector<8x32xf32>
    %106 = arith.addf %76, %105 : vector<8x32xf32>
    %c3 = arith.constant 3 : index
    %c0_64 = arith.constant 0 : index
    %c0_65 = arith.constant 0 : index
    %107 = vector.load %arg5[%c3, %c0_64, %c0_65] : memref<4x32x8xbf16, #tpu.memory_space<vmem>>, vector<1x32x8xbf16>
    %108 = vector.shape_cast %107 : vector<1x32x8xbf16> to vector<32x8xbf16>
    %cst_66 = arith.constant dense<0.000000e+00> : vector<8x8xf32>
    %109 = tpu.matmul %5, %108, %cst_66 {dimension_numbers = #tpu.dot_dimension_numbers<[1], [0], [0], [1], [0, 0, 1, 1], [], []>} : vector<8x32xbf16>, vector<32x8xbf16>, vector<8x8xf32> -> vector<8x8xf32>
    %cst_67 = arith.constant 0.353553385 : f32
    %110 = vector.broadcast %cst_67 : f32 to vector<8x8xf32>
    %111 = arith.mulf %109, %110 : vector<8x8xf32>
    %112 = arith.truncf %111 : vector<8x8xf32> to vector<8x8xbf16>
    %c3_68 = arith.constant 3 : index
    %c0_69 = arith.constant 0 : index
    %c0_70 = arith.constant 0 : index
    %113 = vector.load %arg12[%c3_68, %c0_69, %c0_70] : memref<4x8x8xbf16, #tpu.memory_space<vmem>>, vector<1x8x8xbf16>
    %114 = vector.shape_cast %113 : vector<1x8x8xbf16> to vector<8x8xbf16>
    %cst_71 = arith.constant dense<0.000000e+00> : vector<8x8xf32>
    %115 = tpu.matmul %112, %114, %cst_71 {dimension_numbers = #tpu.dot_dimension_numbers<[1], [1], [0], [0], [0, 0, 1, 0], [], []>} : vector<8x8xbf16>, vector<8x8xbf16>, vector<8x8xf32> -> vector<8x8xf32>
    %cst_72 = arith.constant -1.000000e+09 : f32
    %116 = vector.broadcast %cst_72 : f32 to vector<8x8xf32>
    %117 = arith.select %17, %116, %115 : vector<8x8xi1>, vector<8x8xf32>
    %cst_73 = arith.constant dense<0xFF800000> : vector<8xf32>
    %118 = vector.multi_reduction <maximumf>, %117, %cst_73 [1] : vector<8x8xf32> to vector<8xf32>
    %119 = vector.shape_cast %118 : vector<8xf32> to vector<8x1xf32>
    %120 = vector.broadcast %119 : vector<8x1xf32> to vector<8x8xf32>
    %121 = arith.subf %117, %120 : vector<8x8xf32>
    %122 = math.exp %121 : vector<8x8xf32>
    %cst_74 = arith.constant dense<0.000000e+00> : vector<8xf32>
    %123 = vector.multi_reduction <add>, %122, %cst_74 [1] : vector<8x8xf32> to vector<8xf32>
    %124 = vector.shape_cast %123 : vector<8xf32> to vector<8x1xf32>
    %125 = tpu.reciprocal %124 {approx = true} : vector<8x1xf32> -> vector<8x1xf32>
    %126 = vector.broadcast %125 : vector<8x1xf32> to vector<8x8xf32>
    %127 = arith.mulf %122, %126 : vector<8x8xf32>
    %128 = arith.truncf %127 : vector<8x8xf32> to vector<8x8xbf16>
    %c3_75 = arith.constant 3 : index
    %c0_76 = arith.constant 0 : index
    %c0_77 = arith.constant 0 : index
    %129 = vector.load %arg13[%c3_75, %c0_76, %c0_77] : memref<4x8x8xbf16, #tpu.memory_space<vmem>>, vector<1x8x8xbf16>
    %130 = vector.shape_cast %129 : vector<1x8x8xbf16> to vector<8x8xbf16>
    %cst_78 = arith.constant dense<0.000000e+00> : vector<8x8xf32>
    %131 = tpu.matmul %128, %130, %cst_78 {dimension_numbers = #tpu.dot_dimension_numbers<[1], [0], [0], [1], [0, 0, 1, 1], [], []>} : vector<8x8xbf16>, vector<8x8xbf16>, vector<8x8xf32> -> vector<8x8xf32>
    %132 = arith.truncf %131 : vector<8x8xf32> to vector<8x8xbf16>
    %c3_79 = arith.constant 3 : index
    %c0_80 = arith.constant 0 : index
    %c0_81 = arith.constant 0 : index
    %133 = vector.load %arg8[%c3_79, %c0_80, %c0_81] : memref<4x8x32xbf16, #tpu.memory_space<vmem>>, vector<1x8x32xbf16>
    %134 = vector.shape_cast %133 : vector<1x8x32xbf16> to vector<8x32xbf16>
    %cst_82 = arith.constant dense<0.000000e+00> : vector<8x32xf32>
    %135 = tpu.matmul %132, %134, %cst_82 {dimension_numbers = #tpu.dot_dimension_numbers<[1], [0], [0], [1], [0, 0, 1, 1], [], []>} : vector<8x8xbf16>, vector<8x32xbf16>, vector<8x32xf32> -> vector<8x32xf32>
    %136 = arith.addf %106, %135 : vector<8x32xf32>
    %137 = arith.addf %4, %136 : vector<8x32xf32>
    %cst_83 = arith.constant dense<0.000000e+00> : vector<8xf32>
    %138 = vector.multi_reduction <add>, %137, %cst_83 [1] : vector<8x32xf32> to vector<8xf32>
    %139 = vector.shape_cast %138 : vector<8xf32> to vector<8x1xf32>
    %cst_84 = arith.constant 3.200000e+01 : f32
    %140 = vector.broadcast %cst_84 : f32 to vector<8x1xf32>
    %141 = arith.divf %139, %140 : vector<8x1xf32>
    %142 = vector.broadcast %141 : vector<8x1xf32> to vector<8x32xf32>
    %143 = arith.subf %137, %142 : vector<8x32xf32>
    %144 = arith.mulf %143, %143 : vector<8x32xf32>
    %cst_85 = arith.constant dense<0.000000e+00> : vector<8xf32>
    %145 = vector.multi_reduction <add>, %144, %cst_85 [1] : vector<8x32xf32> to vector<8xf32>
    %146 = vector.shape_cast %145 : vector<8xf32> to vector<8x1xf32>
    %cst_86 = arith.constant 3.200000e+01 : f32
    %147 = vector.broadcast %cst_86 : f32 to vector<8x1xf32>
    %148 = arith.divf %146, %147 : vector<8x1xf32>
    %149 = vector.broadcast %141 : vector<8x1xf32> to vector<8x32xf32>
    %150 = arith.subf %137, %149 : vector<8x32xf32>
    %cst_87 = arith.constant 9.99999974E-6 : f32
    %151 = vector.broadcast %cst_87 : f32 to vector<8x1xf32>
    %152 = arith.addf %148, %151 : vector<8x1xf32>
    %153 = math.rsqrt %152 : vector<8x1xf32>
    %154 = vector.broadcast %153 : vector<8x1xf32> to vector<8x32xf32>
    %155 = arith.mulf %150, %154 : vector<8x32xf32>
    %c0_88 = arith.constant 0 : index
    %c0_89 = arith.constant 0 : index
    %156 = vector.load %arg9[%c0_88, %c0_89] : memref<1x32xf32, #tpu.memory_space<vmem>>, vector<1x32xf32>
    %157 = vector.broadcast %156 : vector<1x32xf32> to vector<8x32xf32>
    %158 = arith.mulf %155, %157 : vector<8x32xf32>
    %c0_90 = arith.constant 0 : index
    %c0_91 = arith.constant 0 : index
    %159 = vector.load %arg10[%c0_90, %c0_91] : memref<1x32xf32, #tpu.memory_space<vmem>>, vector<1x32xf32>
    %160 = vector.broadcast %159 : vector<1x32xf32> to vector<8x32xf32>
    %161 = arith.addf %158, %160 : vector<8x32xf32>
    %c0_92 = arith.constant 0 : index
    %c0_93 = arith.constant 0 : index
    %c0_94 = arith.constant 0 : index
    %162 = vector.load %arg11[%c0_92, %c0_93, %c0_94] : memref<1x8x32xf32, #tpu.memory_space<vmem>>, vector<1x8x32xf32>
    %163 = vector.shape_cast %162 : vector<1x8x32xf32> to vector<8x32xf32>
    %164 = vector.shape_cast %161 : vector<8x32xf32> to vector<1x8x32xf32>
    tpu.vector_store %arg11[%c0_92, %c0_93, %c0_94], %164 {strides = array<i32>} : memref<1x8x32xf32, #tpu.memory_space<vmem>>, vector<1x8x32xf32>,
    return
  }
  func.func @transform_0(%arg0: i32, %arg1: i32) -> (i32, i32, i32) {
    %c0_i32 = arith.constant 0 : i32
    %c0_i32_0 = arith.constant 0 : i32
    return %arg0, %arg1, %c0_i32 : i32, i32, i32
  }
  func.func @transform_1(%arg0: i32, %arg1: i32) -> (i32, i32, i32) {
    %c0_i32 = arith.constant 0 : i32
    %c0_i32_0 = arith.constant 0 : i32
    %c0_i32_1 = arith.constant 0 : i32
    return %arg0, %c0_i32, %c0_i32_0 : i32, i32, i32
  }
  func.func @transform_2(%arg0: i32, %arg1: i32) -> (i32, i32, i32) {
    %c0_i32 = arith.constant 0 : i32
    %c0_i32_0 = arith.constant 0 : i32
    %c0_i32_1 = arith.constant 0 : i32
    return %arg0, %c0_i32, %c0_i32_0 : i32, i32, i32
  }
  func.func @transform_3(%arg0: i32, %arg1: i32) -> (i32, i32, i32) {
    %c0_i32 = arith.constant 0 : i32
    %c0_i32_0 = arith.constant 0 : i32
    %c0_i32_1 = arith.constant 0 : i32
    %c0_i32_2 = arith.constant 0 : i32
    return %c0_i32, %c0_i32_0, %c0_i32_1 : i32, i32, i32
  }
  func.func @transform_4(%arg0: i32, %arg1: i32) -> (i32, i32, i32) {
    %c0_i32 = arith.constant 0 : i32
    %c0_i32_0 = arith.constant 0 : i32
    %c0_i32_1 = arith.constant 0 : i32
    %c0_i32_2 = arith.constant 0 : i32
    return %c0_i32, %c0_i32_0, %c0_i32_1 : i32, i32, i32
  }
  func.func @transform_5(%arg0: i32, %arg1: i32) -> (i32, i32, i32) {
    %c0_i32 = arith.constant 0 : i32
    %c0_i32_0 = arith.constant 0 : i32
    %c0_i32_1 = arith.constant 0 : i32
    %c0_i32_2 = arith.constant 0 : i32
    return %c0_i32, %c0_i32_0, %c0_i32_1 : i32, i32, i32
  }
  func.func @transform_6(%arg0: i32, %arg1: i32) -> (i32, i32, i32) {
    %c0_i32 = arith.constant 0 : i32
    %c0_i32_0 = arith.constant 0 : i32
    %c0_i32_1 = arith.constant 0 : i32
    %c0_i32_2 = arith.constant 0 : i32
    return %c0_i32, %c0_i32_0, %c0_i32_1 : i32, i32, i32
  }
  func.func @transform_7(%arg0: i32, %arg1: i32) -> (i32, i32) {
    %c0_i32 = arith.constant 0 : i32
    %c0_i32_0 = arith.constant 0 : i32
    %c0_i32_1 = arith.constant 0 : i32
    return %c0_i32, %c0_i32_0 : i32, i32
  }
  func.func @transform_8(%arg0: i32, %arg1: i32) -> (i32, i32) {
    %c0_i32 = arith.constant 0 : i32
    %c0_i32_0 = arith.constant 0 : i32
    %c0_i32_1 = arith.constant 0 : i32
    return %c0_i32, %c0_i32_0 : i32, i32
  }
  func.func @transform_9(%arg0: i32, %arg1: i32) -> (i32, i32, i32) {
    %c0_i32 = arith.constant 0 : i32
    %c0_i32_0 = arith.constant 0 : i32
    return %arg0, %arg1, %c0_i32 : i32, i32, i32
  }
}

</mosaic_0001>

<llo_original>
// kernel: transformer_forward.21
$region0: #{transformer_forward.21}
  #allocation0 [shape = 'u32[]', space=smem, size = 0x4, offset = 0x4, fixed_abs, tag = 'smem constant byte address 0x4 - core index']
  #allocation1 [shape = 'u32[72,128]{1,0:T(1,128)}', space=vmem, size = 0x9000, scoped, tag = 'internal scratch']
  #allocation2 [shape = 'f32[16,40]{1,0:T(8,128)}', space=vmem, size = 0x2000, scoped, tag = 'scratch operand']
  %s0 = inlined_call_operand.vmem [shape: f32[16,32], index: 0, kind: input, shape index: {}]
  %s1 = inlined_call_operand.vmem [shape: bf16[32,40], index: 1, kind: input, shape index: {}]
  %s2 = inlined_call_operand.vmem [shape: f32[1,40], index: 2, kind: input, shape index: {}]
  %s3 = inlined_call_operand.hbm [shape: f32[16,40], index: 3, kind: output, shape index: {}]
  %s4 = sld [smem:[#allocation0]]
  $region30: #{transformer_forward.21} parent=0
    _
  %s6 = ssub.s32 1, %s4
  %s7 = scalar_select 0, %s6, %s4
  $region1: #{transformer_forward.21} parent=0
    #allocation3 [shape = 'u8[8192]{0}', space=vmem, size = 0x2000, scoped, tag = 'output window, operand 0, single buffered']
    #allocation4 [shape = 's32[1]{0}', space=sflag, size = 0x4, scoped, tag = 'scoped memory for transformer_forward.21']
    %8 = vsyncpa [#allocation4], 0
    // Predicated region
    $region2: #{transformer_forward.21} parent=1 // pred_check
      _
    $region3: #{transformer_forward.21} parent=1 // pred_check_branch
      %10 = sbr.rel (0) target = $region5
    $region4: #{transformer_forward.21} parent=1 // pred_region
      _
    $region5: #{transformer_forward.21} parent=1 // pred_fallthru
      _
    // Predicated region
    $region6: #{transformer_forward.21} parent=1 // pred_check
      _
    $region7: #{transformer_forward.21} parent=1 // pred_check_branch
      %12 = sbr.rel (0) target = $region9
    $region8: #{transformer_forward.21} parent=1 // pred_region
      _
    $region9: #{transformer_forward.21} parent=1 // pred_fallthru
      _
    // Predicated region
    $region10: #{transformer_forward.21} parent=1 // pred_check
      _
    $region11: #{transformer_forward.21} parent=1 // pred_check_branch
      %14 = sbr.rel (0) target = $region13
    $region12: #{transformer_forward.21} parent=1 // pred_region
      _
    $region13: #{transformer_forward.21} parent=1 // pred_fallthru
      _
    %p16 = scmp.eq.s32.totalorder 0, 0
    // Predicated region
    $region14: #{transformer_forward.21} parent=1 // pred_check
      %p17 = pneg %p16
    $region15: #{transformer_forward.21} parent=1 // pred_check_branch
      %19 = sbr.rel (%p17) target = $region17
    $region16: #{transformer_forward.21} parent=1 // pred_region
      %vm20 = vcmask 326656
      %21 = vst.msk [vmem:[#allocation2] sm:$0xff] %vm20, 0.0
      %22 = vst.msk [vmem:[#allocation2 + $0x8] sm:$0xff] %vm20, 0.0
    $region17: #{transformer_forward.21} parent=1 // pred_fallthru
      _
    %v23 = vld [vmem:[#allocation2] sm:$0xff]
    %v24 = vld [vmem:[#allocation2 + $0x8] sm:$0xff]
    %v25 = vld [vmem:[%s0] sm:$0xff]
    %v26 = vld [vmem:[%s0 + $0x8] sm:$0xff]
    %v27 = vpack.c.bf16 %v26, %v25
    %v28 = vld [vmem:[%s1] sm:$0xf]
    %v29 = vld [vmem:[%s1 + $0x4] sm:$0xf]
    %v30 = vld [vmem:[%s1 + $0x8] sm:$0xf]
    %v31 = vld [vmem:[%s1 + $0xc] sm:$0xf]
    %v36 = vunpack.c.l.b16 %v28
    %v37 = vunpack.c.l.b16 %v29
    %v38 = vunpack.c.l.b16 %v30
    %v39 = vunpack.c.l.b16 %v31
    %v40 = vpack.c.b16 %v37, %v36
    %v41 = vpack.c.b16 %v39, %v38
    %vm44 = vcmask 261120
    %v46 = vsel %vm44, %v27, 0
    %48 = vmatpush.bf16.msra.mxu0 0
    %49 = vmatpush.bf16.msra.mxu0 0
    %50 = vmatpush.bf16.msra.mxu0 0
    %51 = vmatpush.bf16.msra.mxu0 0
    %52 = vmatpush.bf16.msra.mxu0 0
    %53 = vmatpush.bf16.msra.mxu0 0
    %54 = vmatpush.bf16.msra.mxu0 %v41
    %55 = vmatpush.bf16.msra.mxu0 %v40
    %56 = vmatmul.bf16.gmra.mxu0 %v46
    %v57 = vpop.f32.mrf.mxu0
    %v58 = vadd.f32 0.0, %v57
    %v59 = vpop.f32.mrf.mxu0
    %v60 = vadd.f32 0.0, %v59
    %61 = vdwg.mxu0
    %v62 = vadd.f32 %v23, %v58
    %v63 = vadd.f32 %v24, %v60
    %vm64 = vcmask 326656
    %65 = vst.msk [vmem:[#allocation2] sm:$0xff] %vm64, %v62
    %66 = vst.msk [vmem:[#allocation2 + $0x8] sm:$0xff] %vm64, %v63
    // Predicated region
    $region18: #{transformer_forward.21} parent=1 // pred_check
      %p67 = pneg %p16
    $region19: #{transformer_forward.21} parent=1 // pred_check_branch
      %69 = sbr.rel (%p67) target = $region21
    $region20: #{transformer_forward.21} parent=1 // pred_region
      %v70 = vld [vmem:[#allocation2] sm:$0xff]
      %v71 = vld [vmem:[#allocation2 + $0x8] sm:$0xff]
      %v72 = vld [vmem:[%s2] sm:$0x1]
      %v74 = vperm.slane %v72, 0
      %v76 = vadd.f32 %v70, %v74
      %v77 = vadd.f32 %v71, %v74
      %78 = vst.msk [vmem:[#allocation3] sm:$0xff] %vm64, %v76
      %79 = vst.msk [vmem:[#allocation3 + $0x8] sm:$0xff] %vm64, %v77
    $region21: #{transformer_forward.21} parent=1 // pred_fallthru
      _
    // Predicated region
    $region22: #{transformer_forward.21} parent=1 // pred_check
      _
    $region23: #{transformer_forward.21} parent=1 // pred_check_branch
      %81 = sbr.rel (0) target = $region25
    $region24: #{transformer_forward.21} parent=1 // pred_region
      %83 = vsyncadd [#allocation4], 0
      %s84 = sshll.u32 [#allocation3], 4
      %s85 = int_to_ptr.vmem [resolvable:$true] %s84
      %s86 = sshll.u32 %s3, 4
      %s87 = int_to_ptr.hbm [resolvable:$true] %s86
      %92 = dma.vmem_to_hbm [thread:$0]  %s85, 256, %s87, [#allocation4], 128, 128, 8
    $region25: #{transformer_forward.21} parent=1 // pred_fallthru
      _
    // Predicated region
    $region26: #{transformer_forward.21} parent=1 // pred_check
      _
    $region27: #{transformer_forward.21} parent=1 // pred_check_branch
      %94 = sbr.rel (0) target = $region29
    $region28: #{transformer_forward.21} parent=1 // pred_region
      %96 = dma.done [#allocation4], 256
    $region29: #{transformer_forward.21} parent=1 // pred_fallthru
      _
    %97 = vsyncpa [#allocation4], 1

// kernel: transformer_forward.12
$region0: #{transformer_forward.12}
  #allocation0 [shape = 'u32[]', space=smem, size = 0x4, offset = 0x4, fixed_abs, tag = 'smem constant byte address 0x4 - core index']
  #allocation1 [shape = 'u32[72,128]{1,0:T(1,128)}', space=vmem, size = 0x9000, scoped, tag = 'internal scratch']
  #allocation2 [shape = 'f32[16,32]{1,0:T(8,128)}', space=vmem, size = 0x2000, scoped, tag = 'scratch operand']
  %s0 = inlined_call_operand.vmem [shape: f32[16,32], index: 0, kind: input, shape index: {}]
  %s1 = inlined_call_operand.vmem [shape: bf16[32,64], index: 1, kind: input, shape index: {}]
  %s2 = inlined_call_operand.vmem [shape: f32[1,64], index: 2, kind: input, shape index: {}]
  %s3 = inlined_call_operand.vmem [shape: bf16[64,32], index: 3, kind: input, shape index: {}]
  %s4 = inlined_call_operand.vmem [shape: f32[1,32], index: 4, kind: input, shape index: {}]
  %s5 = inlined_call_operand.vmem [shape: f32[1,32], index: 5, kind: input, shape index: {}]
  %s6 = inlined_call_operand.vmem [shape: f32[1,32], index: 6, kind: input, shape index: {}]
  %s7 = inlined_call_operand.vmem [shape: f32[16,32], index: 7, kind: output, shape index: {}]
  %s8 = sld [smem:[#allocation0]]
  $region46: #{transformer_forward.12} parent=0
    _
  %s10 = ssub.s32 1, %s8
  %s11 = scalar_select 0, %s10, %s8
  // Predicated region
  $region2: #{transformer_forward.12} parent=0 // pred_check
    _
  $region3: #{transformer_forward.12} parent=0 // pred_check_branch
    %13 = sbr.rel (0) target = $region5
  $region4: #{transformer_forward.12} parent=0 // pred_region
    _
  $region5: #{transformer_forward.12} parent=0 // pred_fallthru
    _
  // Predicated region
  $region6: #{transformer_forward.12} parent=0 // pred_check
    _
  $region7: #{transformer_forward.12} parent=0 // pred_check_branch
    %15 = sbr.rel (0) target = $region9
  $region8: #{transformer_forward.12} parent=0 // pred_region
    _
  $region9: #{transformer_forward.12} parent=0 // pred_fallthru
    _
  // Predicated region
  $region10: #{transformer_forward.12} parent=0 // pred_check
    _
  $region11: #{transformer_forward.12} parent=0 // pred_check_branch
    %17 = sbr.rel (0) target = $region13
  $region12: #{transformer_forward.12} parent=0 // pred_region
    _
  $region13: #{transformer_forward.12} parent=0 // pred_fallthru
    _
  // Predicated region
  $region14: #{transformer_forward.12} parent=0 // pred_check
    _
  $region15: #{transformer_forward.12} parent=0 // pred_check_branch
    %19 = sbr.rel (0) target = $region17
  $region16: #{transformer_forward.12} parent=0 // pred_region
    _
  $region17: #{transformer_forward.12} parent=0 // pred_fallthru
    _
  // Predicated region
  $region18: #{transformer_forward.12} parent=0 // pred_check
    _
  $region19: #{transformer_forward.12} parent=0 // pred_check_branch
    %21 = sbr.rel (0) target = $region21
  $region20: #{transformer_forward.12} parent=0 // pred_region
    _
  $region21: #{transformer_forward.12} parent=0 // pred_fallthru
    _
  // Predicated region
  $region22: #{transformer_forward.12} parent=0 // pred_check
    _
  $region23: #{transformer_forward.12} parent=0 // pred_check_branch
    %23 = sbr.rel (0) target = $region25
  $region24: #{transformer_forward.12} parent=0 // pred_region
    _
  $region25: #{transformer_forward.12} parent=0 // pred_fallthru
    _
  // Predicated region
  $region26: #{transformer_forward.12} parent=0 // pred_check
    _
  $region27: #{transformer_forward.12} parent=0 // pred_check_branch
    %25 = sbr.rel (0) target = $region29
  $region28: #{transformer_forward.12} parent=0 // pred_region
    _
  $region29: #{transformer_forward.12} parent=0 // pred_fallthru
    _
  %p27 = scmp.eq.s32.totalorder 0, 0
  // Predicated region
  $region30: #{transformer_forward.12} parent=0 // pred_check
    %p28 = pneg %p27
  $region31: #{transformer_forward.12} parent=0 // pred_check_branch
    %30 = sbr.rel (%p28) target = $region33
  $region32: #{transformer_forward.12} parent=0 // pred_region
    %vm31 = vcmask 261120
    %32 = vst.msk [vmem:[#allocation2] sm:$0xff] %vm31, 0.0
    %33 = vst.msk [vmem:[#allocation2 + $0x8] sm:$0xff] %vm31, 0.0
  $region33: #{transformer_forward.12} parent=0 // pred_fallthru
    _
  %v34 = vld [vmem:[%s0] sm:$0xff]
  %v35 = vld [vmem:[%s0 + $0x8] sm:$0xff]
  %v36 = vpack.c.bf16 %v35, %v34
  %v37 = vld [vmem:[%s1] sm:$0xf]
  %v38 = vld [vmem:[%s1 + $0x4] sm:$0xf]
  %v39 = vld [vmem:[%s1 + $0x8] sm:$0xf]
  %v40 = vld [vmem:[%s1 + $0xc] sm:$0xf]
  %v41 = vld [vmem:[%s2] sm:$0x1]
  %v43 = vperm.slane %v41, 0
  %v49 = vunpack.c.l.b16 %v37
  %v50 = vunpack.c.l.b16 %v38
  %v51 = vunpack.c.l.b16 %v39
  %v52 = vunpack.c.l.b16 %v40
  %v53 = vpack.c.b16 %v50, %v49
  %v54 = vpack.c.b16 %v52, %v51
  %vm57 = vcmask 261120
  %v59 = vsel %vm57, %v36, 0
  %61 = vmatpush.bf16.msra.mxu0 0
  %62 = vmatpush.bf16.msra.mxu0 0
  %63 = vmatpush.bf16.msra.mxu0 0
  %64 = vmatpush.bf16.msra.mxu0 0
  %65 = vmatpush.bf16.msra.mxu0 0
  %66 = vmatpush.bf16.msra.mxu0 0
  %67 = vmatpush.bf16.msra.mxu0 %v54
  %68 = vmatpush.bf16.msra.mxu0 %v53
  %69 = vmatmul.bf16.gmra.mxu0 %v59
  %v70 = vpop.f32.mrf.mxu0
  %v71 = vadd.f32 %v43, %v70
  %v72 = vpop.f32.mrf.mxu0
  %v73 = vadd.f32 %v43, %v72
  %74 = vdwg.mxu0
  %v75 = vmax.f32 %v71, 0.0
  %v76 = vmax.f32 %v73, 0.0
  %v77 = vld [vmem:[#allocation2] sm:$0xff]
  %v78 = vld [vmem:[#allocation2 + $0x8] sm:$0xff]
  %v79 = vpack.c.bf16 %v76, %v75
  %v80 = vld [vmem:[%s3] sm:$0xf]
  %v81 = vld [vmem:[%s3 + $0x4] sm:$0xf]
  %v82 = vld [vmem:[%s3 + $0x8] sm:$0xf]
  %v83 = vld [vmem:[%s3 + $0xc] sm:$0xf]
  %v84 = vld [vmem:[%s3 + $0x10] sm:$0xf]
  %v85 = vld [vmem:[%s3 + $0x14] sm:$0xf]
  %v86 = vld [vmem:[%s3 + $0x18] sm:$0xf]
  %v87 = vld [vmem:[%s3 + $0x1c] sm:$0xf]
  %v96 = vunpack.c.l.b16 %v80
  %v97 = vunpack.c.l.b16 %v81
  %v98 = vunpack.c.l.b16 %v82
  %v99 = vunpack.c.l.b16 %v83
  %v100 = vunpack.c.l.b16 %v84
  %v101 = vunpack.c.l.b16 %v85
  %v102 = vunpack.c.l.b16 %v86
  %v103 = vunpack.c.l.b16 %v87
  %v104 = vpack.c.b16 %v97, %v96
  %v105 = vpack.c.b16 %v99, %v98
  %v106 = vpack.c.b16 %v101, %v100
  %v107 = vpack.c.b16 %v103, %v102
  %vm112 = vcmask 523264
  %v114 = vsel %vm112, %v79, 0
  %116 = vmatpush.bf16.msra.mxu0 0
  %117 = vmatpush.bf16.msra.mxu0 0
  %118 = vmatpush.bf16.msra.mxu0 0
  %119 = vmatpush.bf16.msra.mxu0 0
  %120 = vmatpush.bf16.msra.mxu0 %v107
  %121 = vmatpush.bf16.msra.mxu0 %v106
  %122 = vmatpush.bf16.msra.mxu0 %v105
  %123 = vmatpush.bf16.msra.mxu0 %v104
  %124 = vmatmul.bf16.gmra.mxu0 %v114
  %v125 = vpop.f32.mrf.mxu0
  %v126 = vadd.f32 0.0, %v125
  %v127 = vpop.f32.mrf.mxu0
  %v128 = vadd.f32 0.0, %v127
  %129 = vdwg.mxu0
  %v130 = vadd.f32 %v77, %v126
  %v131 = vadd.f32 %v78, %v128
  %132 = vst.msk [vmem:[#allocation2] sm:$0xff] %vm57, %v130
  %133 = vst.msk [vmem:[#allocation2 + $0x8] sm:$0xff] %vm57, %v131
  // Predicated region
  $region34: #{transformer_forward.12} parent=0 // pred_check
    %p134 = pneg %p27
  $region35: #{transformer_forward.12} parent=0 // pred_check_branch
    %136 = sbr.rel (%p134) target = $region37
  $region36: #{transformer_forward.12} parent=0 // pred_region
    %v137 = vld [vmem:[%s0] sm:$0xff]
    %v138 = vld [vmem:[%s0 + $0x8] sm:$0xff]
    %v139 = vld [vmem:[#allocation2] sm:$0xff]
    %v140 = vld [vmem:[#allocation2 + $0x8] sm:$0xff]
    %v141 = vadd.f32 %v137, %v139
    %v142 = vadd.f32 %v138, %v140
    %v143 = vld [vmem:[%s4] sm:$0x1]
    %v145 = vperm.slane %v143, 0
    %v147 = vadd.f32 %v141, %v145
    %v148 = vadd.f32 %v142, %v145
    %v149 = vsel %vm57, %v147, 0.0
    %150 = vadd.xlane.f32.xlu0 %v149
    %v151 = vpop.xlane.xlu0 %150
    %v152 = vsel %vm57, %v148, 0.0
    %153 = vadd.xlane.f32.xlu0 %v152
    %v154 = vpop.xlane.xlu0 %153
    %v155 = vrcp.pop 32.0
    %v156 = vmul.f32 32.0, %v155
    %v157 = vsub.f32 1.0, %v156
    %v158 = vmul.f32 %v155, %v157
    %v159 = vadd.f32 %v155, %v158
    %vm160 = vweird.f32 %v155
    %v161 = vsel %vm160, %v155, %v159
    %v162 = vmul.f32 %v151, %v161
    %v163 = vmul.f32 %v154, %v161
    %v164 = vsub.f32 %v147, %v162
    %v165 = vsub.f32 %v148, %v163
    %v166 = vmul.f32 %v164, %v164
    %v167 = vmul.f32 %v165, %v165
    %v168 = vsel %vm57, %v166, 0.0
    %169 = vadd.xlane.f32.xlu0 %v168
    %v170 = vpop.xlane.xlu0 %169
    %v171 = vsel %vm57, %v167, 0.0
    %172 = vadd.xlane.f32.xlu0 %v171
    %v173 = vpop.xlane.xlu0 %172
    %v174 = vmul.f32 %v170, %v161
    %v175 = vmul.f32 %v173, %v161
    %v176 = vadd.f32 %v174, 1e-05
    %v177 = vadd.f32 %v175, 1e-05
    %v178 = vrsqrt.pop %v176
    %v179 = vmul.f32 %v178, %v176
    %v180 = vmul.f32 %v179, %v178
    %v181 = vmul.f32 0.5, %v180
    %v182 = vsub.f32 1.5, %v181
    %v183 = vmul.f32 %v178, %v182
    %vm184 = vweird.f32 %v176
    %vm185 = vweird.f32 %v178
    %vm186 = vmor %vm184, %vm185
    %v187 = vsel %vm186, %v178, %v183
    %v188 = vrsqrt.pop %v177
    %v189 = vmul.f32 %v188, %v177
    %v190 = vmul.f32 %v189, %v188
    %v191 = vmul.f32 0.5, %v190
    %v192 = vsub.f32 1.5, %v191
    %v193 = vmul.f32 %v188, %v192
    %vm194 = vweird.f32 %v177
    %vm195 = vweird.f32 %v188
    %vm196 = vmor %vm194, %vm195
    %v197 = vsel %vm196, %v188, %v193
    %v198 = vmul.f32 %v164, %v187
    %v199 = vmul.f32 %v165, %v197
    %v200 = vld [vmem:[%s5] sm:$0x1]
    %v202 = vperm.slane %v200, 0
    %v204 = vmul.f32 %v198, %v202
    %v205 = vmul.f32 %v199, %v202
    %v206 = vld [vmem:[%s6] sm:$0x1]
    %v208 = vperm.slane %v206, 0
    %v210 = vadd.f32 %v204, %v208
    %v211 = vadd.f32 %v205, %v208
    %212 = vst.msk [vmem:[%s7] sm:$0xff] %vm57, %v210
    %213 = vst.msk [vmem:[%s7 + $0x8] sm:$0xff] %vm57, %v211
  $region37: #{transformer_forward.12} parent=0 // pred_fallthru
    _
  // Predicated region
  $region38: #{transformer_forward.12} parent=0 // pred_check
    _
  $region39: #{transformer_forward.12} parent=0 // pred_check_branch
    %215 = sbr.rel (0) target = $region41
  $region40: #{transformer_forward.12} parent=0 // pred_region
    _
  $region41: #{transformer_forward.12} parent=0 // pred_fallthru
    _
  // Predicated region
  $region42: #{transformer_forward.12} parent=0 // pred_check
    _
  $region43: #{transformer_forward.12} parent=0 // pred_check_branch
    %217 = sbr.rel (0) target = $region45
  $region44: #{transformer_forward.12} parent=0 // pred_region
    _
  $region45: #{transformer_forward.12} parent=0 // pred_fallthru
    _

// kernel: transformer_forward.15
$region0: #{transformer_forward.15}
  #allocation0 [shape = 'u32[]', space=smem, size = 0x4, offset = 0x4, fixed_abs, tag = 'smem constant byte address 0x4 - core index']
  #allocation1 [shape = 'u32[72,128]{1,0:T(1,128)}', space=vmem, size = 0x9000, scoped, tag = 'internal scratch']
  #allocation2 [shape = 'bf16[4,8,8]{2,1,0:T(8,128)(2,1)}', space=vmem, size = 0x2000, scoped, tag = 'scratch operand']
  #allocation3 [shape = 'bf16[4,8,8]{2,1,0:T(8,128)(2,1)}', space=vmem, size = 0x2000, scoped, tag = 'scratch operand']
  %s0 = inlined_call_operand.vmem [shape: f32[2,8,32], index: 0, kind: input, shape index: {}, may-alias: {0,1}]
  %s1 = inlined_call_operand.vmem [shape: f32[2,8,32], index: 1, kind: input, shape index: {}, may-alias: {0,1}]
  %s2 = inlined_call_operand.vmem [shape: f32[2,1,8], index: 2, kind: input, shape index: {}]
  %s3 = inlined_call_operand.vmem [shape: bf16[4,32,8], index: 3, kind: input, shape index: {}]
  %s4 = inlined_call_operand.vmem [shape: bf16[4,32,8], index: 4, kind: input, shape index: {}]
  %s5 = inlined_call_operand.vmem [shape: bf16[4,32,8], index: 5, kind: input, shape index: {}]
  %s6 = inlined_call_operand.vmem [shape: bf16[4,8,32], index: 6, kind: input, shape index: {}]
  %s7 = inlined_call_operand.vmem [shape: f32[1,32], index: 7, kind: input, shape index: {}]
  %s8 = inlined_call_operand.vmem [shape: f32[1,32], index: 8, kind: input, shape index: {}]
  %s9 = inlined_call_operand.vmem [shape: f32[2,8,32], index: 9, kind: output, shape index: {}]
  %s10 = sld [smem:[#allocation0]]
  $region73: #{transformer_forward.15} parent=0
    _
  %s12 = ssub.s32 1, %s10
  %s13 = scalar_select 0, %s12, %s10
  loop: start=0, step=1, limit=4
  $region2: #{transformer_forward.15} parent=0 // loop_pre_header
    _
  $region3: #{transformer_forward.15} parent=0 // loop_header
    %s15 = sphi 0, %s19
    %p16 = scmp.ge.s32.totalorder %s15, 4
    %s22 = sphi 0, %s34
    %s23 = sphi 0, %s30
    %s24 = sphi 0, %s22
    %s25 = sphi 0, %s23
    %s26 = sphi 0, %s24
    %s27 = sphi 0, %s25
    %s39 = sphi 0, %s41
    %s42 = sphi 0, %s39
    %s43 = sphi 0, %s42
    %s59 = sphi 0, %s43
    %s65 = sphi 0, %s67
    %s68 = sphi 0, %s65
    %s69 = sphi 0, %s68
    %s85 = sphi 0, %s69
    %s91 = sphi 0, %s93
    %s94 = sphi 0, %s91
    %s95 = sphi 0, %s94
    %s111 = sphi 0, %s95
    %s115 = sphi 0, %s115
    %s117 = sphi 0, %s115
    %s118 = sphi 0, %s117
    %s132 = sphi 0, %s118
    %s136 = sphi 0, %s136
    %s138 = sphi 0, %s136
    %s139 = sphi 0, %s138
    %s153 = sphi 0, %s139
    %s157 = sphi 0, %s157
    %s159 = sphi 0, %s157
    %s160 = sphi 0, %s159
    %s174 = sphi 0, %s160
    %s178 = sphi 0, %s178
    %s180 = sphi 0, %s178
    %s181 = sphi 0, %s180
    %s195 = sphi 0, %s181
    %s199 = sphi 0, %s199
    %s201 = sphi 0, %s199
    %s202 = sphi 0, %s201
    %s216 = sphi 0, %s202
    %s220 = sphi 0, %s220
    %s222 = sphi 0, %s220
    %s223 = sphi 0, %s222
    %s237 = sphi 0, %s223
    %s245 = sphi 0, %s247
    %s248 = sphi 0, %s245
    %s249 = sphi 0, %s248
    %s265 = sphi 0, %s249
  $region4: #{transformer_forward.15} parent=0 // loop_header_branch
    %18 = sbr.rel (%p16) target = $region8
  $region5: #{transformer_forward.15} parent=0 // loop_body
    %s20 = ssub.s32 %s15, 1
    %s21 = ssub.s32 %s15, 2
    %s28 = sadd.s32 1, %s23
    %p29 = scmp.ge.s32.totalorder %s28, 1
    %s30 = scalar_select %p29, 0, %s28
    %s31 = sadd.s32 1, %s22
    %s32 = scalar_select %p29, %s31, %s22
    %p33 = scmp.ge.s32.totalorder %s32, 2
    %s34 = scalar_select %p33, 0, %s32
    %s35 = ssub.s32 %s22, %s34
    %s36 = ssub.s32 %s23, %s30
    %s37 = sor.u32 %s35, %s36
    %p38 = scmp.eq.s32.totalorder %s37, 0
    %s40 = sadd.s32 %s39, 1
    %s41 = scalar_select %p38, %s39, %s40
    %p44 = pneg %p38
    %p45 = scmp.eq.s32.totalorder %s15, 1
    %p46 = por %p44, %p45
    %p47 = scmp.ne.s32.totalorder %s39, %s42
    %p48 = scmp.eq.s32.totalorder %s15, 0
    %p49 = por %p47, %p48
    %p50 = scmp.ne.s32.totalorder %s39, %s42
    %p51 = scmp.eq.s32.totalorder %s20, 1
    %p52 = por %p50, %p51
    %p53 = scmp.ne.s32.totalorder %s42, %s43
    %p54 = scmp.eq.s32.totalorder %s20, 0
    %p55 = por %p53, %p54
    %p56 = scmp.ne.s32.totalorder %s42, %s43
    %p57 = scmp.eq.s32.totalorder %s21, 1
    %p58 = por %p56, %p57
    %p60 = scmp.ne.s32.totalorder %s43, %s59
    %p61 = scmp.eq.s32.totalorder %s21, 0
    %p62 = por %p60, %p61
    %s63 = ssub.s32 %s22, %s34
    %p64 = scmp.eq.s32.totalorder %s63, 0
    %s66 = sadd.s32 %s65, 1
    %s67 = scalar_select %p64, %s65, %s66
    %p70 = pneg %p64
    %p71 = scmp.eq.s32.totalorder %s15, 1
    %p72 = por %p70, %p71
    %p73 = scmp.ne.s32.totalorder %s65, %s68
    %p74 = scmp.eq.s32.totalorder %s15, 0
    %p75 = por %p73, %p74
    %p76 = scmp.ne.s32.totalorder %s65, %s68
    %p77 = scmp.eq.s32.totalorder %s20, 1
    %p78 = por %p76, %p77
    %p79 = scmp.ne.s32.totalorder %s68, %s69
    %p80 = scmp.eq.s32.totalorder %s20, 0
    %p81 = por %p79, %p80
    %p82 = scmp.ne.s32.totalorder %s68, %s69
    %p83 = scmp.eq.s32.totalorder %s21, 1
    %p84 = por %p82, %p83
    %p86 = scmp.ne.s32.totalorder %s69, %s85
    %p87 = scmp.eq.s32.totalorder %s21, 0
    %p88 = por %p86, %p87
    %s89 = ssub.s32 %s22, %s34
    %p90 = scmp.eq.s32.totalorder %s89, 0
    %s92 = sadd.s32 %s91, 1
    %s93 = scalar_select %p90, %s91, %s92
    %p96 = pneg %p90
    %p97 = scmp.eq.s32.totalorder %s15, 1
    %p98 = por %p96, %p97
    %p99 = scmp.ne.s32.totalorder %s91, %s94
    %p100 = scmp.eq.s32.totalorder %s15, 0
    %p101 = por %p99, %p100
    %p102 = scmp.ne.s32.totalorder %s91, %s94
    %p103 = scmp.eq.s32.totalorder %s20, 1
    %p104 = por %p102, %p103
    %p105 = scmp.ne.s32.totalorder %s94, %s95
    %p106 = scmp.eq.s32.totalorder %s20, 0
    %p107 = por %p105, %p106
    %p108 = scmp.ne.s32.totalorder %s94, %s95
    %p109 = scmp.eq.s32.totalorder %s21, 1
    %p110 = por %p108, %p109
    %p112 = scmp.ne.s32.totalorder %s95, %s111
    %p113 = scmp.eq.s32.totalorder %s21, 0
    %p114 = por %p112, %p113
    %s116 = sadd.s32 %s115, 1
    %p119 = scmp.eq.s32.totalorder %s15, 1
    %p120 = scmp.ne.s32.totalorder %s115, %s117
    %p121 = scmp.eq.s32.totalorder %s15, 0
    %p122 = por %p120, %p121
    %p123 = scmp.ne.s32.totalorder %s115, %s117
    %p124 = scmp.eq.s32.totalorder %s20, 1
    %p125 = por %p123, %p124
    %p126 = scmp.ne.s32.totalorder %s117, %s118
    %p127 = scmp.eq.s32.totalorder %s20, 0
    %p128 = por %p126, %p127
    %p129 = scmp.ne.s32.totalorder %s117, %s118
    %p130 = scmp.eq.s32.totalorder %s21, 1
    %p131 = por %p129, %p130
    %p133 = scmp.ne.s32.totalorder %s118, %s132
    %p134 = scmp.eq.s32.totalorder %s21, 0
    %p135 = por %p133, %p134
    %s137 = sadd.s32 %s136, 1
    %p140 = scmp.eq.s32.totalorder %s15, 1
    %p141 = scmp.ne.s32.totalorder %s136, %s138
    %p142 = scmp.eq.s32.totalorder %s15, 0
    %p143 = por %p141, %p142
    %p144 = scmp.ne.s32.totalorder %s136, %s138
    %p145 = scmp.eq.s32.totalorder %s20, 1
    %p146 = por %p144, %p145
    %p147 = scmp.ne.s32.totalorder %s138, %s139
    %p148 = scmp.eq.s32.totalorder %s20, 0
    %p149 = por %p147, %p148
    %p150 = scmp.ne.s32.totalorder %s138, %s139
    %p151 = scmp.eq.s32.totalorder %s21, 1
    %p152 = por %p150, %p151
    %p154 = scmp.ne.s32.totalorder %s139, %s153
    %p155 = scmp.eq.s32.totalorder %s21, 0
    %p156 = por %p154, %p155
    %s158 = sadd.s32 %s157, 1
    %p161 = scmp.eq.s32.totalorder %s15, 1
    %p162 = scmp.ne.s32.totalorder %s157, %s159
    %p163 = scmp.eq.s32.totalorder %s15, 0
    %p164 = por %p162, %p163
    %p165 = scmp.ne.s32.totalorder %s157, %s159
    %p166 = scmp.eq.s32.totalorder %s20, 1
    %p167 = por %p165, %p166
    %p168 = scmp.ne.s32.totalorder %s159, %s160
    %p169 = scmp.eq.s32.totalorder %s20, 0
    %p170 = por %p168, %p169
    %p171 = scmp.ne.s32.totalorder %s159, %s160
    %p172 = scmp.eq.s32.totalorder %s21, 1
    %p173 = por %p171, %p172
    %p175 = scmp.ne.s32.totalorder %s160, %s174
    %p176 = scmp.eq.s32.totalorder %s21, 0
    %p177 = por %p175, %p176
    %s179 = sadd.s32 %s178, 1
    %p182 = scmp.eq.s32.totalorder %s15, 1
    %p183 = scmp.ne.s32.totalorder %s178, %s180
    %p184 = scmp.eq.s32.totalorder %s15, 0
    %p185 = por %p183, %p184
    %p186 = scmp.ne.s32.totalorder %s178, %s180
    %p187 = scmp.eq.s32.totalorder %s20, 1
    %p188 = por %p186, %p187
    %p189 = scmp.ne.s32.totalorder %s180, %s181
    %p190 = scmp.eq.s32.totalorder %s20, 0
    %p191 = por %p189, %p190
    %p192 = scmp.ne.s32.totalorder %s180, %s181
    %p193 = scmp.eq.s32.totalorder %s21, 1
    %p194 = por %p192, %p193
    %p196 = scmp.ne.s32.totalorder %s181, %s195
    %p197 = scmp.eq.s32.totalorder %s21, 0
    %p198 = por %p196, %p197
    %s200 = sadd.s32 %s199, 1
    %p203 = scmp.eq.s32.totalorder %s15, 1
    %p204 = scmp.ne.s32.totalorder %s199, %s201
    %p205 = scmp.eq.s32.totalorder %s15, 0
    %p206 = por %p204, %p205
    %p207 = scmp.ne.s32.totalorder %s199, %s201
    %p208 = scmp.eq.s32.totalorder %s20, 1
    %p209 = por %p207, %p208
    %p210 = scmp.ne.s32.totalorder %s201, %s202
    %p211 = scmp.eq.s32.totalorder %s20, 0
    %p212 = por %p210, %p211
    %p213 = scmp.ne.s32.totalorder %s201, %s202
    %p214 = scmp.eq.s32.totalorder %s21, 1
    %p215 = por %p213, %p214
    %p217 = scmp.ne.s32.totalorder %s202, %s216
    %p218 = scmp.eq.s32.totalorder %s21, 0
    %p219 = por %p217, %p218
    %s221 = sadd.s32 %s220, 1
    %p224 = scmp.eq.s32.totalorder %s15, 1
    %p225 = scmp.ne.s32.totalorder %s220, %s222
    %p226 = scmp.eq.s32.totalorder %s15, 0
    %p227 = por %p225, %p226
    %p228 = scmp.ne.s32.totalorder %s220, %s222
    %p229 = scmp.eq.s32.totalorder %s20, 1
    %p230 = por %p228, %p229
    %p231 = scmp.ne.s32.totalorder %s222, %s223
    %p232 = scmp.eq.s32.totalorder %s20, 0
    %p233 = por %p231, %p232
    %p234 = scmp.ne.s32.totalorder %s222, %s223
    %p235 = scmp.eq.s32.totalorder %s21, 1
    %p236 = por %p234, %p235
    %p238 = scmp.ne.s32.totalorder %s223, %s237
    %p239 = scmp.eq.s32.totalorder %s21, 0
    %p240 = por %p238, %p239
    %s241 = ssub.s32 %s22, %s34
    %s242 = ssub.s32 %s23, %s30
    %s243 = sor.u32 %s241, %s242
    %p244 = scmp.eq.s32.totalorder %s243, 0
    %s246 = sadd.s32 %s245, 1
    %s247 = scalar_select %p244, %s245, %s246
    %p250 = pneg %p244
    %p251 = scmp.eq.s32.totalorder %s15, 1
    %p252 = por %p250, %p251
    %p253 = scmp.ne.s32.totalorder %s245, %s248
    %p254 = scmp.eq.s32.totalorder %s15, 0
    %p255 = por %p253, %p254
    %p256 = scmp.ne.s32.totalorder %s245, %s248
    %p257 = scmp.eq.s32.totalorder %s20, 1
    %p258 = por %p256, %p257
    %p259 = scmp.ne.s32.totalorder %s248, %s249
    %p260 = scmp.eq.s32.totalorder %s20, 0
    %p261 = por %p259, %p260
    %p262 = scmp.ne.s32.totalorder %s248, %s249
    %p263 = scmp.eq.s32.totalorder %s21, 1
    %p264 = por %p262, %p263
    %p266 = scmp.ne.s32.totalorder %s249, %s265
    %p267 = scmp.eq.s32.totalorder %s21, 0
    %p268 = por %p266, %p267
    %p269 = scmp.le.s32.totalorder 1, %s15
    %p270 = scmp.lt.s32.totalorder %s15, 3
    %p271 = pnand %p269, %p270
    %p272 = pneg %p271
    // Predicated region
    $region9: #{transformer_forward.15} parent=5 // pred_check
      _
    $region10: #{transformer_forward.15} parent=5 // pred_check_branch
      %274 = sbr.rel (%p271) target = $region12
    $region11: #{transformer_forward.15} parent=5 // pred_region
      %s275 = ssub.s32 %s15, 1
      // Predicated region
      $region13: #{transformer_forward.15} parent=11 // pred_check
        %p276 = pneg %p128
      $region14: #{transformer_forward.15} parent=11 // pred_check_branch
        %278 = sbr.rel (%p276) target = $region16
      $region15: #{transformer_forward.15} parent=11 // pred_region
        _
      $region16: #{transformer_forward.15} parent=11 // pred_fallthru
        _
      // Predicated region
      $region17: #{transformer_forward.15} parent=11 // pred_check
        %p279 = pneg %p149
      $region18: #{transformer_forward.15} parent=11 // pred_check_branch
        %281 = sbr.rel (%p279) target = $region20
      $region19: #{transformer_forward.15} parent=11 // pred_region
        _
      $region20: #{transformer_forward.15} parent=11 // pred_fallthru
        _
      // Predicated region
      $region21: #{transformer_forward.15} parent=11 // pred_check
        %p282 = pneg %p170
      $region22: #{transformer_forward.15} parent=11 // pred_check_branch
        %284 = sbr.rel (%p282) target = $region24
      $region23: #{transformer_forward.15} parent=11 // pred_region
        _
      $region24: #{transformer_forward.15} parent=11 // pred_fallthru
        _
      // Predicated region
      $region25: #{transformer_forward.15} parent=11 // pred_check
        %p285 = pneg %p191
      $region26: #{transformer_forward.15} parent=11 // pred_check_branch
        %287 = sbr.rel (%p285) target = $region28
      $region27: #{transformer_forward.15} parent=11 // pred_region
        _
      $region28: #{transformer_forward.15} parent=11 // pred_fallthru
        _
      // Predicated region
      $region29: #{transformer_forward.15} parent=11 // pred_check
        %p288 = pneg %p212
      $region30: #{transformer_forward.15} parent=11 // pred_check_branch
        %290 = sbr.rel (%p288) target = $region32
      $region31: #{transformer_forward.15} parent=11 // pred_region
        _
      $region32: #{transformer_forward.15} parent=11 // pred_fallthru
        _
      // Predicated region
      $region33: #{transformer_forward.15} parent=11 // pred_check
        %p291 = pneg %p233
      $region34: #{transformer_forward.15} parent=11 // pred_check_branch
        %293 = sbr.rel (%p291) target = $region36
      $region35: #{transformer_forward.15} parent=11 // pred_region
        _
      $region36: #{transformer_forward.15} parent=11 // pred_fallthru
        _
    $region12: #{transformer_forward.15} parent=5 // pred_fallthru
      _
    %p294 = scmp.lt.s32.totalorder %s15, 2
    // Predicated region
    $region37: #{transformer_forward.15} parent=5 // pred_check
      %p295 = pneg %p294
    $region38: #{transformer_forward.15} parent=5 // pred_check_branch
      %297 = sbr.rel (%p295) target = $region40
    $region39: #{transformer_forward.15} parent=5 // pred_region
      // Predicated region
      $region41: #{transformer_forward.15} parent=39 // pred_check
        %p298 = pneg %p49
      $region42: #{transformer_forward.15} parent=39 // pred_check_branch
        %300 = sbr.rel (%p298) target = $region44
      $region43: #{transformer_forward.15} parent=39 // pred_region
        %p301 = scmp.lt.s32.totalorder %s22, 1
        %s302 = scalar_select %p301, %s22, 1
        %p303 = scmp.lt.s32.totalorder %s23, 0
        %s304 = scalar_select %p303, %s23, 0
        %s305 = sadd.s32 %s304, %s302
        %s306 = smul.addr %s305, 8
        %s307 = scalar_lea.vmem %s0, %s306
      $region44: #{transformer_forward.15} parent=39 // pred_fallthru
        _
      // Predicated region
      $region45: #{transformer_forward.15} parent=39 // pred_check
        %p308 = pneg %p75
      $region46: #{transformer_forward.15} parent=39 // pred_check_branch
        %310 = sbr.rel (%p308) target = $region48
      $region47: #{transformer_forward.15} parent=39 // pred_region
        %p311 = scmp.lt.s32.totalorder %s22, 1
        %s312 = scalar_select %p311, %s22, 1
        %s313 = smul.addr %s312, 8
        %s314 = scalar_lea.vmem %s1, %s313
      $region48: #{transformer_forward.15} parent=39 // pred_fallthru
        _
      // Predicated region
      $region49: #{transformer_forward.15} parent=39 // pred_check
        %p315 = pneg %p101
      $region50: #{transformer_forward.15} parent=39 // pred_check_branch
        %317 = sbr.rel (%p315) target = $region52
      $region51: #{transformer_forward.15} parent=39 // pred_region
        %p318 = scmp.lt.s32.totalorder %s22, 1
        %s319 = scalar_select %p318, %s22, 1
        %s320 = scalar_lea.vmem %s2, %s319
      $region52: #{transformer_forward.15} parent=39 // pred_fallthru
        _
    $region40: #{transformer_forward.15} parent=5 // pred_fallthru
      _
    %p321 = scmp.le.s32.totalorder 1, %s15
    %p322 = scmp.lt.s32.totalorder %s15, 3
    %p323 = pnand %p321, %p322
    %p324 = pneg %p323
    // Predicated region
    $region53: #{transformer_forward.15} parent=5 // pred_check
      _
    $region54: #{transformer_forward.15} parent=5 // pred_check_branch
      %326 = sbr.rel (%p323) target = $region56
    $region55: #{transformer_forward.15} parent=5 // pred_region
      %s327 = ssub.s32 %s15, 1
      %p328 = scmp.lt.s32.totalorder %s24, 1
      %s329 = scalar_select %p328, %s24, 1
      %p330 = scmp.lt.s32.totalorder %s25, 0
      %s331 = scalar_select %p330, %s25, 0
      %s332 = sadd.s32 %s331, %s329
      %s333 = smul.addr %s332, 8
      %s334 = scalar_lea.vmem %s0, %s333
      %p335 = pneg %p55
      %p336 = pneg %p52
      %p337 = scmp.lt.s32.totalorder %s24, 1
      %s338 = scalar_select %p337, %s24, 1
      %s339 = smul.addr %s338, 8
      %s340 = scalar_lea.vmem %s1, %s339
      %p341 = pneg %p81
      %p342 = pneg %p78
      %p343 = scmp.lt.s32.totalorder %s24, 1
      %s344 = scalar_select %p343, %s24, 1
      %s345 = scalar_lea.vmem %s2, %s344
      %p346 = pneg %p107
      %p347 = pneg %p104
      %p348 = pneg %p128
      %p349 = pneg %p125
      %p350 = pneg %p149
      %p351 = pneg %p146
      %p352 = pneg %p170
      %p353 = pneg %p167
      %p354 = pneg %p191
      %p355 = pneg %p188
      %p356 = pneg %p212
      %p357 = pneg %p209
      %p358 = pneg %p233
      %p359 = pneg %p230
      %p360 = pneg %p261
      %p361 = pneg %p258
      %p362 = scmp.lt.s32.totalorder %s24, 1
      %s363 = scalar_select %p362, %s24, 1
      %p364 = scmp.lt.s32.totalorder %s25, 0
      %s365 = scalar_select %p364, %s25, 0
      %s366 = sadd.s32 %s365, %s363
      %s367 = smul.addr %s366, 8
      %s368 = scalar_lea.vmem %s9, %s367
      %p369 = scmp.lt.s32.totalorder %s24, 1
      %s370 = scalar_select %p369, %s24, 1
      %p371 = scmp.lt.s32.totalorder %s25, 0
      %s372 = scalar_select %p371, %s25, 0
      %s373 = sadd.s32 %s372, %s370
      %s374 = smul.addr %s373, 8
      %s375 = scalar_lea.vmem %s0, %s374
      %p376 = scmp.lt.s32.totalorder %s24, 1
      %s377 = scalar_select %p376, %s24, 1
      %s378 = smul.addr %s377, 8
      %s379 = scalar_lea.vmem %s1, %s378
      %p380 = scmp.lt.s32.totalorder %s24, 1
      %s381 = scalar_select %p380, %s24, 1
      %s382 = scalar_lea.vmem %s2, %s381
      %p383 = scmp.lt.s32.totalorder %s24, 1
      %s384 = scalar_select %p383, %s24, 1
      %p385 = scmp.lt.s32.totalorder %s25, 0
      %s386 = scalar_select %p385, %s25, 0
      %s387 = sadd.s32 %s386, %s384
      %s388 = smul.addr %s387, 8
      %s389 = scalar_lea.vmem %s9, %s388
      %p391 = scmp.eq.s32.totalorder %s25, 0
      // Predicated region
      $region57: #{transformer_forward.15} parent=55 // pred_check
        %p392 = pneg %p391
      $region58: #{transformer_forward.15} parent=55 // pred_check_branch
        %394 = sbr.rel (%p392) target = $region60
      $region59: #{transformer_forward.15} parent=55 // pred_region
        %v395 = vld [vmem:[%s379] sm:$0xff]
        %v396 = vpack.c.bf16 %v395, %v395
        %v397 = vld [vmem:[%s4] sm:$0xf]
        %v398 = vld [vmem:[%s4 + $0x4] sm:$0xf]
        %v399 = vld [vmem:[%s4 + $0x8] sm:$0xf]
        %v400 = vld [vmem:[%s4 + $0xc] sm:$0xf]
        %v405 = vunpack.c.l.b16 %v397
        %v406 = vunpack.c.l.b16 %v398
        %v407 = vunpack.c.l.b16 %v399
        %v408 = vunpack.c.l.b16 %v400
        %v409 = vpack.c.b16 %v406, %v405
        %v410 = vpack.c.b16 %v408, %v407
        %vm413 = vcmask 261120
        %v415 = vsel %vm413, %v396, 0
        %417 = vmatpush.bf16.msra.mxu0 0
        %418 = vmatpush.bf16.msra.mxu0 0
        %419 = vmatpush.bf16.msra.mxu0 0
        %420 = vmatpush.bf16.msra.mxu0 0
        %421 = vmatpush.bf16.msra.mxu0 0
        %422 = vmatpush.bf16.msra.mxu0 0
        %423 = vmatpush.bf16.msra.mxu0 %v410
        %424 = vmatpush.bf16.msra.mxu0 %v409
        %425 = vmatmul.bf16.gmra.mxu0 %v415
        %v426 = vpop.f32.mrf.mxu0
        %v427 = vadd.f32 0.0, %v426
        %v428 = vpop.f32.mrf.mxu0
        %429 = vdwg.mxu0
        %v430 = vpack.c.bf16 %v427, %v427
        %vm431 = vcmask 60416
        %432 = vst.msk [vmem:[#allocation2] sm:$0xf] %vm431, %v430
        %v433 = vld [vmem:[%s5] sm:$0xf]
        %v434 = vld [vmem:[%s5 + $0x4] sm:$0xf]
        %v435 = vld [vmem:[%s5 + $0x8] sm:$0xf]
        %v436 = vld [vmem:[%s5 + $0xc] sm:$0xf]
        %v441 = vunpack.c.l.b16 %v433
        %v442 = vunpack.c.l.b16 %v434
        %v443 = vunpack.c.l.b16 %v435
        %v444 = vunpack.c.l.b16 %v436
        %v445 = vpack.c.b16 %v442, %v441
        %v446 = vpack.c.b16 %v444, %v443
        %449 = vmatpush.bf16.msra.mxu0 0
        %450 = vmatpush.bf16.msra.mxu0 0
        %451 = vmatpush.bf16.msra.mxu0 0
        %452 = vmatpush.bf16.msra.mxu0 0
        %453 = vmatpush.bf16.msra.mxu0 0
        %454 = vmatpush.bf16.msra.mxu0 0
        %455 = vmatpush.bf16.msra.mxu0 %v446
        %456 = vmatpush.bf16.msra.mxu0 %v445
        %457 = vmatmul.bf16.gmra.mxu0 %v415
        %v458 = vpop.f32.mrf.mxu0
        %v459 = vadd.f32 0.0, %v458
        %v460 = vpop.f32.mrf.mxu0
        %461 = vdwg.mxu0
        %v462 = vpack.c.bf16 %v459, %v459
        %463 = vst.msk [vmem:[#allocation3] sm:$0xf] %vm431, %v462
        %s464 = scalar_lea.vmem %s4, 16
        %v465 = vld [vmem:[%s464] sm:$0xf]
        %v466 = vld [vmem:[%s464 + $0x4] sm:$0xf]
        %v467 = vld [vmem:[%s464 + $0x8] sm:$0xf]
        %v468 = vld [vmem:[%s464 + $0xc] sm:$0xf]
        %v473 = vunpack.c.l.b16 %v465
        %v474 = vunpack.c.l.b16 %v466
        %v475 = vunpack.c.l.b16 %v467
        %v476 = vunpack.c.l.b16 %v468
        %v477 = vpack.c.b16 %v474, %v473
        %v478 = vpack.c.b16 %v476, %v475
        %481 = vmatpush.bf16.msra.mxu0 0
        %482 = vmatpush.bf16.msra.mxu0 0
        %483 = vmatpush.bf16.msra.mxu0 0
        %484 = vmatpush.bf16.msra.mxu0 0
        %485 = vmatpush.bf16.msra.mxu0 0
        %486 = vmatpush.bf16.msra.mxu0 0
        %487 = vmatpush.bf16.msra.mxu0 %v478
        %488 = vmatpush.bf16.msra.mxu0 %v477
        %489 = vmatmul.bf16.gmra.mxu0 %v415
        %v490 = vpop.f32.mrf.mxu0
        %v491 = vadd.f32 0.0, %v490
        %v492 = vpop.f32.mrf.mxu0
        %493 = vdwg.mxu0
        %v494 = vpack.c.bf16 %v491, %v491
        %s495 = scalar_lea.vmem [#allocation2], 4
        %496 = vst.msk [vmem:[%s495] sm:$0xf] %vm431, %v494
        %s497 = scalar_lea.vmem %s5, 16
        %v498 = vld [vmem:[%s497] sm:$0xf]
        %v499 = vld [vmem:[%s497 + $0x4] sm:$0xf]
        %v500 = vld [vmem:[%s497 + $0x8] sm:$0xf]
        %v501 = vld [vmem:[%s497 + $0xc] sm:$0xf]
        %v506 = vunpack.c.l.b16 %v498
        %v507 = vunpack.c.l.b16 %v499
        %v508 = vunpack.c.l.b16 %v500
        %v509 = vunpack.c.l.b16 %v501
        %v510 = vpack.c.b16 %v507, %v506
        %v511 = vpack.c.b16 %v509, %v508
        %514 = vmatpush.bf16.msra.mxu0 0
        %515 = vmatpush.bf16.msra.mxu0 0
        %516 = vmatpush.bf16.msra.mxu0 0
        %517 = vmatpush.bf16.msra.mxu0 0
        %518 = vmatpush.bf16.msra.mxu0 0
        %519 = vmatpush.bf16.msra.mxu0 0
        %520 = vmatpush.bf16.msra.mxu0 %v511
        %521 = vmatpush.bf16.msra.mxu0 %v510
        %522 = vmatmul.bf16.gmra.mxu0 %v415
        %v523 = vpop.f32.mrf.mxu0
        %v524 = vadd.f32 0.0, %v523
        %v525 = vpop.f32.mrf.mxu0
        %526 = vdwg.mxu0
        %v527 = vpack.c.bf16 %v524, %v524
        %s528 = scalar_lea.vmem [#allocation3], 4
        %529 = vst.msk [vmem:[%s528] sm:$0xf] %vm431, %v527
        %s530 = scalar_lea.vmem %s4, 32
        %v531 = vld [vmem:[%s530] sm:$0xf]
        %v532 = vld [vmem:[%s530 + $0x4] sm:$0xf]
        %v533 = vld [vmem:[%s530 + $0x8] sm:$0xf]
        %v534 = vld [vmem:[%s530 + $0xc] sm:$0xf]
        %v539 = vunpack.c.l.b16 %v531
        %v540 = vunpack.c.l.b16 %v532
        %v541 = vunpack.c.l.b16 %v533
        %v542 = vunpack.c.l.b16 %v534
        %v543 = vpack.c.b16 %v540, %v539
        %v544 = vpack.c.b16 %v542, %v541
        %547 = vmatpush.bf16.msra.mxu0 0
        %548 = vmatpush.bf16.msra.mxu0 0
        %549 = vmatpush.bf16.msra.mxu0 0
        %550 = vmatpush.bf16.msra.mxu0 0
        %551 = vmatpush.bf16.msra.mxu0 0
        %552 = vmatpush.bf16.msra.mxu0 0
        %553 = vmatpush.bf16.msra.mxu0 %v544
        %554 = vmatpush.bf16.msra.mxu0 %v543
        %555 = vmatmul.bf16.gmra.mxu0 %v415
        %v556 = vpop.f32.mrf.mxu0
        %v557 = vadd.f32 0.0, %v556
        %v558 = vpop.f32.mrf.mxu0
        %559 = vdwg.mxu0
        %v560 = vpack.c.bf16 %v557, %v557
        %s561 = scalar_lea.vmem [#allocation2], 8
        %562 = vst.msk [vmem:[%s561] sm:$0xf] %vm431, %v560
        %s563 = scalar_lea.vmem %s5, 32
        %v564 = vld [vmem:[%s563] sm:$0xf]
        %v565 = vld [vmem:[%s563 + $0x4] sm:$0xf]
        %v566 = vld [vmem:[%s563 + $0x8] sm:$0xf]
        %v567 = vld [vmem:[%s563 + $0xc] sm:$0xf]
        %v572 = vunpack.c.l.b16 %v564
        %v573 = vunpack.c.l.b16 %v565
        %v574 = vunpack.c.l.b16 %v566
        %v575 = vunpack.c.l.b16 %v567
        %v576 = vpack.c.b16 %v573, %v572
        %v577 = vpack.c.b16 %v575, %v574
        %580 = vmatpush.bf16.msra.mxu0 0
        %581 = vmatpush.bf16.msra.mxu0 0
        %582 = vmatpush.bf16.msra.mxu0 0
        %583 = vmatpush.bf16.msra.mxu0 0
        %584 = vmatpush.bf16.msra.mxu0 0
        %585 = vmatpush.bf16.msra.mxu0 0
        %586 = vmatpush.bf16.msra.mxu0 %v577
        %587 = vmatpush.bf16.msra.mxu0 %v576
        %588 = vmatmul.bf16.gmra.mxu0 %v415
        %v589 = vpop.f32.mrf.mxu0
        %v590 = vadd.f32 0.0, %v589
        %v591 = vpop.f32.mrf.mxu0
        %592 = vdwg.mxu0
        %v593 = vpack.c.bf16 %v590, %v590
        %s594 = scalar_lea.vmem [#allocation3], 8
        %595 = vst.msk [vmem:[%s594] sm:$0xf] %vm431, %v593
        %s596 = scalar_lea.vmem %s4, 48
        %v597 = vld [vmem:[%s596] sm:$0xf]
        %v598 = vld [vmem:[%s596 + $0x4] sm:$0xf]
        %v599 = vld [vmem:[%s596 + $0x8] sm:$0xf]
        %v600 = vld [vmem:[%s596 + $0xc] sm:$0xf]
        %v605 = vunpack.c.l.b16 %v597
        %v606 = vunpack.c.l.b16 %v598
        %v607 = vunpack.c.l.b16 %v599
        %v608 = vunpack.c.l.b16 %v600
        %v609 = vpack.c.b16 %v606, %v605
        %v610 = vpack.c.b16 %v608, %v607
        %613 = vmatpush.bf16.msra.mxu0 0
        %614 = vmatpush.bf16.msra.mxu0 0
        %615 = vmatpush.bf16.msra.mxu0 0
        %616 = vmatpush.bf16.msra.mxu0 0
        %617 = vmatpush.bf16.msra.mxu0 0
        %618 = vmatpush.bf16.msra.mxu0 0
        %619 = vmatpush.bf16.msra.mxu0 %v610
        %620 = vmatpush.bf16.msra.mxu0 %v609
        %621 = vmatmul.bf16.gmra.mxu0 %v415
        %v622 = vpop.f32.mrf.mxu0
        %v623 = vadd.f32 0.0, %v622
        %v624 = vpop.f32.mrf.mxu0
        %625 = vdwg.mxu0
        %v626 = vpack.c.bf16 %v623, %v623
        %s627 = scalar_lea.vmem [#allocation2], 12
        %628 = vst.msk [vmem:[%s627] sm:$0xf] %vm431, %v626
        %s629 = scalar_lea.vmem %s5, 48
        %v630 = vld [vmem:[%s629] sm:$0xf]
        %v631 = vld [vmem:[%s629 + $0x4] sm:$0xf]
        %v632 = vld [vmem:[%s629 + $0x8] sm:$0xf]
        %v633 = vld [vmem:[%s629 + $0xc] sm:$0xf]
        %v638 = vunpack.c.l.b16 %v630
        %v639 = vunpack.c.l.b16 %v631
        %v640 = vunpack.c.l.b16 %v632
        %v641 = vunpack.c.l.b16 %v633
        %v642 = vpack.c.b16 %v639, %v638
        %v643 = vpack.c.b16 %v641, %v640
        %646 = vmatpush.bf16.msra.mxu0 0
        %647 = vmatpush.bf16.msra.mxu0 0
        %648 = vmatpush.bf16.msra.mxu0 0
        %649 = vmatpush.bf16.msra.mxu0 0
        %650 = vmatpush.bf16.msra.mxu0 0
        %651 = vmatpush.bf16.msra.mxu0 0
        %652 = vmatpush.bf16.msra.mxu0 %v643
        %653 = vmatpush.bf16.msra.mxu0 %v642
        %654 = vmatmul.bf16.gmra.mxu0 %v415
        %v655 = vpop.f32.mrf.mxu0
        %v656 = vadd.f32 0.0, %v655
        %v657 = vpop.f32.mrf.mxu0
        %658 = vdwg.mxu0
        %v659 = vpack.c.bf16 %v656, %v656
        %s660 = scalar_lea.vmem [#allocation3], 12
        %661 = vst.msk [vmem:[%s660] sm:$0xf] %vm431, %v659
      $region60: #{transformer_forward.15} parent=55 // pred_fallthru
        _
      %v662 = vld [vmem:[%s375] sm:$0xff]
      %v663 = vpack.c.bf16 %v662, %v662
      %v664 = vld [vmem:[%s382] sm:$0x1]
      %vm665 = vcmp.gt.f32.partialorder %v664, 0.5
      %v666 = vlaneseq
      %v667 = vshrl.u32 %v666, 7
      %s668 = smul.u32 %s25, 8
      %v669 = vstv %s668
      %v670 = vadd.s32 %v667, %v669
      %v671 = vlaneseq
      %v672 = vand.u32 %v671, 127
      %vm673 = vcmp.gt.s32.totalorder %v672, %v670
      %v674 = vsel %vm665, 1, 0
      %v675 = vperm.slane %v674, 0
      %vm676 = vcmp.eq.s32.totalorder %v675, 1
      %vm677 = vmor %vm676, %vm673
      %v678 = vld [vmem:[%s3] sm:$0xf]
      %v679 = vld [vmem:[%s3 + $0x4] sm:$0xf]
      %v680 = vld [vmem:[%s3 + $0x8] sm:$0xf]
      %v681 = vld [vmem:[%s3 + $0xc] sm:$0xf]
      %v686 = vunpack.c.l.b16 %v678
      %v687 = vunpack.c.l.b16 %v679
      %v688 = vunpack.c.l.b16 %v680
      %v689 = vunpack.c.l.b16 %v681
      %v690 = vpack.c.b16 %v687, %v686
      %v691 = vpack.c.b16 %v689, %v688
      %vm694 = vcmask 261120
      %v696 = vsel %vm694, %v663, 0
      %698 = vmatpush.bf16.msra.mxu0 0
      %699 = vmatpush.bf16.msra.mxu0 0
      %700 = vmatpush.bf16.msra.mxu0 0
      %701 = vmatpush.bf16.msra.mxu0 0
      %702 = vmatpush.bf16.msra.mxu0 0
      %703 = vmatpush.bf16.msra.mxu0 0
      %704 = vmatpush.bf16.msra.mxu0 %v691
      %705 = vmatpush.bf16.msra.mxu0 %v690
      %706 = vmatmul.bf16.gmra.mxu0 %v696
      %v707 = vpop.f32.mrf.mxu0
      %v708 = vadd.f32 0.0, %v707
      %v709 = vpop.f32.mrf.mxu0
      %710 = vdwg.mxu0
      %v711 = vmul.f32 %v708, 0.35355338
      %v712 = vpack.c.bf16 %v711, %v711
      %v713 = vld [vmem:[#allocation2] sm:$0xf]
      %vm714 = vcmask 64512
      %v716 = vsel %vm714, %v712, 0
      %v719 = vsel %vm714, %v713, 0
      %721 = vmatpush.bf16.xpose.msra.mxu0 0
      %722 = vmatpush.bf16.xpose.msra.mxu0 0
      %723 = vmatpush.bf16.xpose.msra.mxu0 0
      %724 = vmatpush.bf16.xpose.msra.mxu0 0
      %725 = vmatpush.bf16.xpose.msra.mxu0 0
      %726 = vmatpush.bf16.xpose.msra.mxu0 0
      %727 = vmatpush.bf16.xpose.msra.mxu0 0
      %728 = vmatpush.bf16.xpose.msra.mxu0 %v719
      %729 = vmatmul.bf16.gmra.mxu0 %v716
      %v730 = vpop.f32.mrf.mxu0
      %v731 = vadd.f32 0.0, %v730
      %v732 = vpop.f32.mrf.mxu0
      %733 = vdwg.mxu0
      %v734 = vsel %vm677, -1e+09, %v731
      %v735 = vsel %vm714, %v734, -inf
      %736 = vmax.xlane.f32.xlu0 %v735
      %v737 = vpop.xlane.xlu0 %736
      %v738 = vsub.f32 %v734, %v737
      %v739 = vmul.f32 %v738, 1.442695
      %v740 = vpow.pop %v739
      %v741 = vsel %vm714, %v740, 0.0
      %742 = vadd.xlane.f32.xlu0 %v741
      %v743 = vpop.xlane.xlu0 %742
      %v744 = vrcp.pop %v743
      %v745 = vmul.f32 %v740, %v744
      %v746 = vpack.c.bf16 %v745, %v745
      %v747 = vld [vmem:[#allocation3] sm:$0xf]
      %v749 = vsel %vm714, %v746, 0
      %vm751 = vcmask 1043456
      %v753 = vsel %vm751, %v747, 0
      %755 = vmatpush.bf16.msra.mxu0 0
      %756 = vmatpush.bf16.msra.mxu0 0
      %757 = vmatpush.bf16.msra.mxu0 0
      %758 = vmatpush.bf16.msra.mxu0 0
      %759 = vmatpush.bf16.msra.mxu0 0
      %760 = vmatpush.bf16.msra.mxu0 0
      %761 = vmatpush.bf16.msra.mxu0 0
      %762 = vmatpush.bf16.msra.mxu0 %v753
      %763 = vmatmul.bf16.gmra.mxu0 %v749
      %v764 = vpop.f32.mrf.mxu0
      %v765 = vadd.f32 0.0, %v764
      %v766 = vpop.f32.mrf.mxu0
      %767 = vdwg.mxu0
      %v768 = vpack.c.bf16 %v765, %v765
      %v769 = vld [vmem:[%s6] sm:$0xf]
      %s770 = scalar_lea.vmem %s3, 16
      %v771 = vld [vmem:[%s770] sm:$0xf]
      %v772 = vld [vmem:[%s770 + $0x4] sm:$0xf]
      %v773 = vld [vmem:[%s770 + $0x8] sm:$0xf]
      %v774 = vld [vmem:[%s770 + $0xc] sm:$0xf]
      %v779 = vunpack.c.l.b16 %v771
      %v780 = vunpack.c.l.b16 %v772
      %v781 = vunpack.c.l.b16 %v773
      %v782 = vunpack.c.l.b16 %v774
      %v783 = vpack.c.b16 %v780, %v779
      %v784 = vpack.c.b16 %v782, %v781
      %787 = vmatpush.bf16.msra.mxu0 0
      %788 = vmatpush.bf16.msra.mxu0 0
      %789 = vmatpush.bf16.msra.mxu0 0
      %790 = vmatpush.bf16.msra.mxu0 0
      %791 = vmatpush.bf16.msra.mxu0 0
      %792 = vmatpush.bf16.msra.mxu0 0
      %793 = vmatpush.bf16.msra.mxu0 %v784
      %794 = vmatpush.bf16.msra.mxu0 %v783
      %795 = vmatmul.bf16.gmra.mxu0 %v696
      %v796 = vpop.f32.mrf.mxu0
      %v797 = vadd.f32 0.0, %v796
      %v798 = vpop.f32.mrf.mxu0
      %799 = vdwg.mxu0
      %v800 = vmul.f32 %v797, 0.35355338
      %v801 = vpack.c.bf16 %v800, %v800
      %s802 = scalar_lea.vmem [#allocation2], 4
      %v803 = vld [vmem:[%s802] sm:$0xf]
      %v805 = vsel %vm714, %v801, 0
      %v808 = vsel %vm714, %v803, 0
      %810 = vmatpush.bf16.xpose.msra.mxu0 0
      %811 = vmatpush.bf16.xpose.msra.mxu0 0
      %812 = vmatpush.bf16.xpose.msra.mxu0 0
      %813 = vmatpush.bf16.xpose.msra.mxu0 0
      %814 = vmatpush.bf16.xpose.msra.mxu0 0
      %815 = vmatpush.bf16.xpose.msra.mxu0 0
      %816 = vmatpush.bf16.xpose.msra.mxu0 0
      %817 = vmatpush.bf16.xpose.msra.mxu0 %v808
      %818 = vmatmul.bf16.gmra.mxu0 %v805
      %v819 = vpop.f32.mrf.mxu0
      %v820 = vadd.f32 0.0, %v819
      %v821 = vpop.f32.mrf.mxu0
      %822 = vdwg.mxu0
      %v823 = vsel %vm677, -1e+09, %v820
      %v824 = vsel %vm714, %v823, -inf
      %825 = vmax.xlane.f32.xlu0 %v824
      %v826 = vpop.xlane.xlu0 %825
      %v827 = vsub.f32 %v823, %v826
      %v828 = vmul.f32 %v827, 1.442695
      %v829 = vpow.pop %v828
      %v830 = vsel %vm714, %v829, 0.0
      %831 = vadd.xlane.f32.xlu0 %v830
      %v832 = vpop.xlane.xlu0 %831
      %v833 = vrcp.pop %v832
      %v834 = vmul.f32 %v829, %v833
      %v835 = vpack.c.bf16 %v834, %v834
      %s836 = scalar_lea.vmem [#allocation3], 4
      %v837 = vld [vmem:[%s836] sm:$0xf]
      %v839 = vsel %vm714, %v835, 0
      %v842 = vsel %vm751, %v837, 0
      %844 = vmatpush.bf16.msra.mxu0 0
      %845 = vmatpush.bf16.msra.mxu0 0
      %846 = vmatpush.bf16.msra.mxu0 0
      %847 = vmatpush.bf16.msra.mxu0 0
      %848 = vmatpush.bf16.msra.mxu0 0
      %849 = vmatpush.bf16.msra.mxu0 0
      %850 = vmatpush.bf16.msra.mxu0 0
      %851 = vmatpush.bf16.msra.mxu0 %v842
      %852 = vmatmul.bf16.gmra.mxu0 %v839
      %v853 = vpop.f32.mrf.mxu0
      %v854 = vadd.f32 0.0, %v853
      %v855 = vpop.f32.mrf.mxu0
      %856 = vdwg.mxu0
      %v857 = vpack.c.bf16 %v854, %v854
      %s858 = scalar_lea.vmem %s6, 4
      %v859 = vld [vmem:[%s858] sm:$0xf]
      %v861 = vsel %vm714, %v857, 0
      %v864 = vsel %vm751, %v859, 0
      %866 = vmatpush.bf16.msra.mxu0 0
      %867 = vmatpush.bf16.msra.mxu0 0
      %868 = vmatpush.bf16.msra.mxu0 0
      %869 = vmatpush.bf16.msra.mxu0 0
      %870 = vmatpush.bf16.msra.mxu0 0
      %871 = vmatpush.bf16.msra.mxu0 0
      %872 = vmatpush.bf16.msra.mxu0 0
      %873 = vmatpush.bf16.msra.mxu0 %v864
      %874 = vmatmul.bf16.gmra.mxu0 %v861
      %v875 = vpop.f32.mrf.mxu0
      %v876 = vadd.f32 0.0, %v875
      %v877 = vpop.f32.mrf.mxu0
      %878 = vdwg.mxu0
      %v880 = vsel %vm714, %v768, 0
      %v883 = vsel %vm751, %v769, 0
      %885 = vmatpush.bf16.msra.mxu0 0
      %886 = vmatpush.bf16.msra.mxu0 0
      %887 = vmatpush.bf16.msra.mxu0 0
      %888 = vmatpush.bf16.msra.mxu0 0
      %889 = vmatpush.bf16.msra.mxu0 0
      %890 = vmatpush.bf16.msra.mxu0 0
      %891 = vmatpush.bf16.msra.mxu0 0
      %892 = vmatpush.bf16.msra.mxu0 %v883
      %893 = vmatmul.bf16.gmra.mxu0 %v880
      %v894 = vpop.f32.mrf.mxu0
      %v895 = vadd.f32 %v876, %v894
      %v896 = vpop.f32.mrf.mxu0
      %897 = vdwg.mxu0
      %s898 = scalar_lea.vmem %s3, 32
      %v899 = vld [vmem:[%s898] sm:$0xf]
      %v900 = vld [vmem:[%s898 + $0x4] sm:$0xf]
      %v901 = vld [vmem:[%s898 + $0x8] sm:$0xf]
      %v902 = vld [vmem:[%s898 + $0xc] sm:$0xf]
      %v907 = vunpack.c.l.b16 %v899
      %v908 = vunpack.c.l.b16 %v900
      %v909 = vunpack.c.l.b16 %v901
      %v910 = vunpack.c.l.b16 %v902
      %v911 = vpack.c.b16 %v908, %v907
      %v912 = vpack.c.b16 %v910, %v909
      %915 = vmatpush.bf16.msra.mxu0 0
      %916 = vmatpush.bf16.msra.mxu0 0
      %917 = vmatpush.bf16.msra.mxu0 0
      %918 = vmatpush.bf16.msra.mxu0 0
      %919 = vmatpush.bf16.msra.mxu0 0
      %920 = vmatpush.bf16.msra.mxu0 0
      %921 = vmatpush.bf16.msra.mxu0 %v912
      %922 = vmatpush.bf16.msra.mxu0 %v911
      %923 = vmatmul.bf16.gmra.mxu0 %v696
      %v924 = vpop.f32.mrf.mxu0
      %v925 = vadd.f32 0.0, %v924
      %v926 = vpop.f32.mrf.mxu0
      %927 = vdwg.mxu0
      %v928 = vmul.f32 %v925, 0.35355338
      %v929 = vpack.c.bf16 %v928, %v928
      %s930 = scalar_lea.vmem [#allocation2], 8
      %v931 = vld [vmem:[%s930] sm:$0xf]
      %v933 = vsel %vm714, %v929, 0
      %v936 = vsel %vm714, %v931, 0
      %938 = vmatpush.bf16.xpose.msra.mxu0 0
      %939 = vmatpush.bf16.xpose.msra.mxu0 0
      %940 = vmatpush.bf16.xpose.msra.mxu0 0
      %941 = vmatpush.bf16.xpose.msra.mxu0 0
      %942 = vmatpush.bf16.xpose.msra.mxu0 0
      %943 = vmatpush.bf16.xpose.msra.mxu0 0
      %944 = vmatpush.bf16.xpose.msra.mxu0 0
      %945 = vmatpush.bf16.xpose.msra.mxu0 %v936
      %946 = vmatmul.bf16.gmra.mxu0 %v933
      %v947 = vpop.f32.mrf.mxu0
      %v948 = vadd.f32 0.0, %v947
      %v949 = vpop.f32.mrf.mxu0
      %950 = vdwg.mxu0
      %v951 = vsel %vm677, -1e+09, %v948
      %v952 = vsel %vm714, %v951, -inf
      %953 = vmax.xlane.f32.xlu0 %v952
      %v954 = vpop.xlane.xlu0 %953
      %v955 = vsub.f32 %v951, %v954
      %v956 = vmul.f32 %v955, 1.442695
      %v957 = vpow.pop %v956
      %v958 = vsel %vm714, %v957, 0.0
      %959 = vadd.xlane.f32.xlu0 %v958
      %v960 = vpop.xlane.xlu0 %959
      %v961 = vrcp.pop %v960
      %v962 = vmul.f32 %v957, %v961
      %v963 = vpack.c.bf16 %v962, %v962
      %s964 = scalar_lea.vmem [#allocation3], 8
      %v965 = vld [vmem:[%s964] sm:$0xf]
      %v967 = vsel %vm714, %v963, 0
      %v970 = vsel %vm751, %v965, 0
      %972 = vmatpush.bf16.msra.mxu0 0
      %973 = vmatpush.bf16.msra.mxu0 0
      %974 = vmatpush.bf16.msra.mxu0 0
      %975 = vmatpush.bf16.msra.mxu0 0
      %976 = vmatpush.bf16.msra.mxu0 0
      %977 = vmatpush.bf16.msra.mxu0 0
      %978 = vmatpush.bf16.msra.mxu0 0
      %979 = vmatpush.bf16.msra.mxu0 %v970
      %980 = vmatmul.bf16.gmra.mxu0 %v967
      %v981 = vpop.f32.mrf.mxu0
      %v982 = vadd.f32 0.0, %v981
      %v983 = vpop.f32.mrf.mxu0
      %984 = vdwg.mxu0
      %v985 = vpack.c.bf16 %v982, %v982
      %s986 = scalar_lea.vmem %s6, 8
      %v987 = vld [vmem:[%s986] sm:$0xf]
      %v989 = vsel %vm714, %v985, 0
      %v992 = vsel %vm751, %v987, 0
      %994 = vmatpush.bf16.msra.mxu0 0
      %995 = vmatpush.bf16.msra.mxu0 0
      %996 = vmatpush.bf16.msra.mxu0 0
      %997 = vmatpush.bf16.msra.mxu0 0
      %998 = vmatpush.bf16.msra.mxu0 0
      %999 = vmatpush.bf16.msra.mxu0 0
      %1000 = vmatpush.bf16.msra.mxu0 0
      %1001 = vmatpush.bf16.msra.mxu0 %v992
      %1002 = vmatmul.bf16.gmra.mxu0 %v989
      %v1003 = vpop.f32.mrf.mxu0
      %v1004 = vadd.f32 0.0, %v1003
      %v1005 = vpop.f32.mrf.mxu0
      %1006 = vdwg.mxu0
      %v1007 = vadd.f32 %v895, %v1004
      %s1008 = scalar_lea.vmem %s3, 48
      %v1009 = vld [vmem:[%s1008] sm:$0xf]
      %v1010 = vld [vmem:[%s1008 + $0x4] sm:$0xf]
      %v1011 = vld [vmem:[%s1008 + $0x8] sm:$0xf]
      %v1012 = vld [vmem:[%s1008 + $0xc] sm:$0xf]
      %v1017 = vunpack.c.l.b16 %v1009
      %v1018 = vunpack.c.l.b16 %v1010
      %v1019 = vunpack.c.l.b16 %v1011
      %v1020 = vunpack.c.l.b16 %v1012
      %v1021 = vpack.c.b16 %v1018, %v1017
      %v1022 = vpack.c.b16 %v1020, %v1019
      %1025 = vmatpush.bf16.msra.mxu0 0
      %1026 = vmatpush.bf16.msra.mxu0 0
      %1027 = vmatpush.bf16.msra.mxu0 0
      %1028 = vmatpush.bf16.msra.mxu0 0
      %1029 = vmatpush.bf16.msra.mxu0 0
      %1030 = vmatpush.bf16.msra.mxu0 0
      %1031 = vmatpush.bf16.msra.mxu0 %v1022
      %1032 = vmatpush.bf16.msra.mxu0 %v1021
      %1033 = vmatmul.bf16.gmra.mxu0 %v696
      %v1034 = vpop.f32.mrf.mxu0
      %v1035 = vadd.f32 0.0, %v1034
      %v1036 = vpop.f32.mrf.mxu0
      %1037 = vdwg.mxu0
      %v1038 = vmul.f32 %v1035, 0.35355338
      %v1039 = vpack.c.bf16 %v1038, %v1038
      %s1040 = scalar_lea.vmem [#allocation2], 12
      %v1041 = vld [vmem:[%s1040] sm:$0xf]
      %v1043 = vsel %vm714, %v1039, 0
      %v1046 = vsel %vm714, %v1041, 0
      %1048 = vmatpush.bf16.xpose.msra.mxu0 0
      %1049 = vmatpush.bf16.xpose.msra.mxu0 0
      %1050 = vmatpush.bf16.xpose.msra.mxu0 0
      %1051 = vmatpush.bf16.xpose.msra.mxu0 0
      %1052 = vmatpush.bf16.xpose.msra.mxu0 0
      %1053 = vmatpush.bf16.xpose.msra.mxu0 0
      %1054 = vmatpush.bf16.xpose.msra.mxu0 0
      %1055 = vmatpush.bf16.xpose.msra.mxu0 %v1046
      %1056 = vmatmul.bf16.gmra.mxu0 %v1043
      %v1057 = vpop.f32.mrf.mxu0
      %v1058 = vadd.f32 0.0, %v1057
      %v1059 = vpop.f32.mrf.mxu0
      %1060 = vdwg.mxu0
      %v1061 = vsel %vm677, -1e+09, %v1058
      %v1062 = vsel %vm714, %v1061, -inf
      %1063 = vmax.xlane.f32.xlu0 %v1062
      %v1064 = vpop.xlane.xlu0 %1063
      %v1065 = vsub.f32 %v1061, %v1064
      %v1066 = vmul.f32 %v1065, 1.442695
      %v1067 = vpow.pop %v1066
      %v1068 = vsel %vm714, %v1067, 0.0
      %1069 = vadd.xlane.f32.xlu0 %v1068
      %v1070 = vpop.xlane.xlu0 %1069
      %v1071 = vrcp.pop %v1070
      %v1072 = vmul.f32 %v1067, %v1071
      %v1073 = vpack.c.bf16 %v1072, %v1072
      %s1074 = scalar_lea.vmem [#allocation3], 12
      %v1075 = vld [vmem:[%s1074] sm:$0xf]
      %v1077 = vsel %vm714, %v1073, 0
      %v1080 = vsel %vm751, %v1075, 0
      %1082 = vmatpush.bf16.msra.mxu0 0
      %1083 = vmatpush.bf16.msra.mxu0 0
      %1084 = vmatpush.bf16.msra.mxu0 0
      %1085 = vmatpush.bf16.msra.mxu0 0
      %1086 = vmatpush.bf16.msra.mxu0 0
      %1087 = vmatpush.bf16.msra.mxu0 0
      %1088 = vmatpush.bf16.msra.mxu0 0
      %1089 = vmatpush.bf16.msra.mxu0 %v1080
      %1090 = vmatmul.bf16.gmra.mxu0 %v1077
      %v1091 = vpop.f32.mrf.mxu0
      %v1092 = vadd.f32 0.0, %v1091
      %v1093 = vpop.f32.mrf.mxu0
      %1094 = vdwg.mxu0
      %v1095 = vpack.c.bf16 %v1092, %v1092
      %s1096 = scalar_lea.vmem %s6, 12
      %v1097 = vld [vmem:[%s1096] sm:$0xf]
      %v1099 = vsel %vm714, %v1095, 0
      %v1102 = vsel %vm751, %v1097, 0
      %1104 = vmatpush.bf16.msra.mxu0 0
      %1105 = vmatpush.bf16.msra.mxu0 0
      %1106 = vmatpush.bf16.msra.mxu0 0
      %1107 = vmatpush.bf16.msra.mxu0 0
      %1108 = vmatpush.bf16.msra.mxu0 0
      %1109 = vmatpush.bf16.msra.mxu0 0
      %1110 = vmatpush.bf16.msra.mxu0 0
      %1111 = vmatpush.bf16.msra.mxu0 %v1102
      %1112 = vmatmul.bf16.gmra.mxu0 %v1099
      %v1113 = vpop.f32.mrf.mxu0
      %v1114 = vadd.f32 0.0, %v1113
      %v1115 = vpop.f32.mrf.mxu0
      %1116 = vdwg.mxu0
      %v1117 = vadd.f32 %v1007, %v1114
      %v1118 = vadd.f32 %v662, %v1117
      %v1119 = vsel %vm694, %v1118, 0.0
      %1120 = vadd.xlane.f32.xlu0 %v1119
      %v1121 = vpop.xlane.xlu0 %1120
      %v1122 = vrcp.pop 32.0
      %v1123 = vmul.f32 32.0, %v1122
      %v1124 = vsub.f32 1.0, %v1123
      %v1125 = vmul.f32 %v1122, %v1124
      %v1126 = vadd.f32 %v1122, %v1125
      %vm1127 = vweird.f32 %v1122
      %v1128 = vsel %vm1127, %v1122, %v1126
      %v1129 = vmul.f32 %v1121, %v1128
      %v1130 = vsub.f32 %v1118, %v1129
      %v1131 = vmul.f32 %v1130, %v1130
      %v1132 = vsel %vm694, %v1131, 0.0
      %1133 = vadd.xlane.f32.xlu0 %v1132
      %v1134 = vpop.xlane.xlu0 %1133
      %v1135 = vmul.f32 %v1134, %v1128
      %v1136 = vadd.f32 %v1135, 1e-05
      %v1137 = vrsqrt.pop %v1136
      %v1138 = vmul.f32 %v1137, %v1136
      %v1139 = vmul.f32 %v1138, %v1137
      %v1140 = vmul.f32 0.5, %v1139
      %v1141 = vsub.f32 1.5, %v1140
      %v1142 = vmul.f32 %v1137, %v1141
      %vm1143 = vweird.f32 %v1136
      %vm1144 = vweird.f32 %v1137
      %vm1145 = vmor %vm1143, %vm1144
      %v1146 = vsel %vm1145, %v1137, %v1142
      %v1147 = vmul.f32 %v1130, %v1146
      %v1148 = vld [vmem:[%s7] sm:$0x1]
      %v1150 = vperm.slane %v1148, 0
      %v1152 = vmul.f32 %v1147, %v1150
      %v1153 = vld [vmem:[%s8] sm:$0x1]
      %v1155 = vperm.slane %v1153, 0
      %v1157 = vadd.f32 %v1152, %v1155
      %1158 = vst.msk [vmem:[%s389] sm:$0xff] %vm694, %v1157
      %p1159 = scmp.lt.s32.totalorder %s24, 1
      %s1160 = scalar_select %p1159, %s24, 1
      %p1161 = scmp.lt.s32.totalorder %s25, 0
      %s1162 = scalar_select %p1161, %s25, 0
      %s1163 = sadd.s32 %s1162, %s1160
      %s1164 = smul.addr %s1163, 8
      %s1165 = scalar_lea.vmem %s9, %s1164
      // Predicated region
      $region61: #{transformer_forward.15} parent=55 // pred_check
        %p1166 = pneg %p258
      $region62: #{transformer_forward.15} parent=55 // pred_check_branch
        %1168 = sbr.rel (%p1166) target = $region64
      $region63: #{transformer_forward.15} parent=55 // pred_region
        _
      $region64: #{transformer_forward.15} parent=55 // pred_fallthru
        _
    $region56: #{transformer_forward.15} parent=5 // pred_fallthru
      _
    %p1169 = scmp.le.s32.totalorder 2, %s15
    // Predicated region
    $region65: #{transformer_forward.15} parent=5 // pred_check
      %p1170 = pneg %p1169
    $region66: #{transformer_forward.15} parent=5 // pred_check_branch
      %1172 = sbr.rel (%p1170) target = $region68
    $region67: #{transformer_forward.15} parent=5 // pred_region
      %s1173 = ssub.s32 %s15, 2
      // Predicated region
      $region69: #{transformer_forward.15} parent=67 // pred_check
        %p1174 = pneg %p264
      $region70: #{transformer_forward.15} parent=67 // pred_check_branch
        %1176 = sbr.rel (%p1174) target = $region72
      $region71: #{transformer_forward.15} parent=67 // pred_region
        %p1177 = scmp.lt.s32.totalorder %s26, 1
        %s1178 = scalar_select %p1177, %s26, 1
        %p1179 = scmp.lt.s32.totalorder %s27, 0
        %s1180 = scalar_select %p1179, %s27, 0
        %s1181 = sadd.s32 %s1180, %s1178
        %s1182 = smul.addr %s1181, 8
        %s1183 = scalar_lea.vmem %s9, %s1182
      $region72: #{transformer_forward.15} parent=67 // pred_fallthru
        _
    $region68: #{transformer_forward.15} parent=5 // pred_fallthru
      _
  $region6: #{transformer_forward.15} parent=0 // loop_footer
    %s19 = sadd.s32 1, %s15
  $region7: #{transformer_forward.15} parent=0 // loop_footer_branch
    %14 = sbr.rel target = $region3
  $region8: #{transformer_forward.15} parent=0 // loop_exit
    _

// kernel: transformer_forward.11
$region0: #{transformer_forward.11}
  #allocation0 [shape = 'u32[]', space=smem, size = 0x4, offset = 0x4, fixed_abs, tag = 'smem constant byte address 0x4 - core index']
  #allocation1 [shape = 'u32[72,128]{1,0:T(1,128)}', space=vmem, size = 0x9000, scoped, tag = 'internal scratch']
  #allocation2 [shape = 'bf16[4,8,8]{2,1,0:T(8,128)(2,1)}', space=vmem, size = 0x2000, scoped, tag = 'scratch operand']
  #allocation3 [shape = 'bf16[4,8,8]{2,1,0:T(8,128)(2,1)}', space=vmem, size = 0x2000, scoped, tag = 'scratch operand']
  %s0 = inlined_call_operand.vmem [shape: f32[2,8,32], index: 0, kind: input, shape index: {}, may-alias: {0,1}]
  %s1 = inlined_call_operand.vmem [shape: f32[2,8,32], index: 1, kind: input, shape index: {}, may-alias: {0,1}]
  %s2 = inlined_call_operand.vmem [shape: f32[2,1,8], index: 2, kind: input, shape index: {}]
  %s3 = inlined_call_operand.vmem [shape: bf16[4,32,8], index: 3, kind: input, shape index: {}]
  %s4 = inlined_call_operand.vmem [shape: bf16[4,32,8], index: 4, kind: input, shape index: {}]
  %s5 = inlined_call_operand.vmem [shape: bf16[4,32,8], index: 5, kind: input, shape index: {}]
  %s6 = inlined_call_operand.vmem [shape: bf16[4,8,32], index: 6, kind: input, shape index: {}]
  %s7 = inlined_call_operand.vmem [shape: f32[1,32], index: 7, kind: input, shape index: {}]
  %s8 = inlined_call_operand.vmem [shape: f32[1,32], index: 8, kind: input, shape index: {}]
  %s9 = inlined_call_operand.vmem [shape: f32[2,8,32], index: 9, kind: output, shape index: {}]
  %s10 = sld [smem:[#allocation0]]
  $region73: #{transformer_forward.11} parent=0
    _
  %s12 = ssub.s32 1, %s10
  %s13 = scalar_select 0, %s12, %s10
  loop: start=0, step=1, limit=4
  $region2: #{transformer_forward.11} parent=0 // loop_pre_header
    _
  $region3: #{transformer_forward.11} parent=0 // loop_header
    %s15 = sphi 0, %s19
    %p16 = scmp.ge.s32.totalorder %s15, 4
    %s22 = sphi 0, %s34
    %s23 = sphi 0, %s30
    %s24 = sphi 0, %s22
    %s25 = sphi 0, %s23
    %s26 = sphi 0, %s24
    %s27 = sphi 0, %s25
    %s39 = sphi 0, %s41
    %s42 = sphi 0, %s39
    %s43 = sphi 0, %s42
    %s59 = sphi 0, %s43
    %s65 = sphi 0, %s67
    %s68 = sphi 0, %s65
    %s69 = sphi 0, %s68
    %s85 = sphi 0, %s69
    %s91 = sphi 0, %s93
    %s94 = sphi 0, %s91
    %s95 = sphi 0, %s94
    %s111 = sphi 0, %s95
    %s115 = sphi 0, %s115
    %s117 = sphi 0, %s115
    %s118 = sphi 0, %s117
    %s132 = sphi 0, %s118
    %s136 = sphi 0, %s136
    %s138 = sphi 0, %s136
    %s139 = sphi 0, %s138
    %s153 = sphi 0, %s139
    %s157 = sphi 0, %s157
    %s159 = sphi 0, %s157
    %s160 = sphi 0, %s159
    %s174 = sphi 0, %s160
    %s178 = sphi 0, %s178
    %s180 = sphi 0, %s178
    %s181 = sphi 0, %s180
    %s195 = sphi 0, %s181
    %s199 = sphi 0, %s199
    %s201 = sphi 0, %s199
    %s202 = sphi 0, %s201
    %s216 = sphi 0, %s202
    %s220 = sphi 0, %s220
    %s222 = sphi 0, %s220
    %s223 = sphi 0, %s222
    %s237 = sphi 0, %s223
    %s245 = sphi 0, %s247
    %s248 = sphi 0, %s245
    %s249 = sphi 0, %s248
    %s265 = sphi 0, %s249
  $region4: #{transformer_forward.11} parent=0 // loop_header_branch
    %18 = sbr.rel (%p16) target = $region8
  $region5: #{transformer_forward.11} parent=0 // loop_body
    %s20 = ssub.s32 %s15, 1
    %s21 = ssub.s32 %s15, 2
    %s28 = sadd.s32 1, %s23
    %p29 = scmp.ge.s32.totalorder %s28, 1
    %s30 = scalar_select %p29, 0, %s28
    %s31 = sadd.s32 1, %s22
    %s32 = scalar_select %p29, %s31, %s22
    %p33 = scmp.ge.s32.totalorder %s32, 2
    %s34 = scalar_select %p33, 0, %s32
    %s35 = ssub.s32 %s22, %s34
    %s36 = ssub.s32 %s23, %s30
    %s37 = sor.u32 %s35, %s36
    %p38 = scmp.eq.s32.totalorder %s37, 0
    %s40 = sadd.s32 %s39, 1
    %s41 = scalar_select %p38, %s39, %s40
    %p44 = pneg %p38
    %p45 = scmp.eq.s32.totalorder %s15, 1
    %p46 = por %p44, %p45
    %p47 = scmp.ne.s32.totalorder %s39, %s42
    %p48 = scmp.eq.s32.totalorder %s15, 0
    %p49 = por %p47, %p48
    %p50 = scmp.ne.s32.totalorder %s39, %s42
    %p51 = scmp.eq.s32.totalorder %s20, 1
    %p52 = por %p50, %p51
    %p53 = scmp.ne.s32.totalorder %s42, %s43
    %p54 = scmp.eq.s32.totalorder %s20, 0
    %p55 = por %p53, %p54
    %p56 = scmp.ne.s32.totalorder %s42, %s43
    %p57 = scmp.eq.s32.totalorder %s21, 1
    %p58 = por %p56, %p57
    %p60 = scmp.ne.s32.totalorder %s43, %s59
    %p61 = scmp.eq.s32.totalorder %s21, 0
    %p62 = por %p60, %p61
    %s63 = ssub.s32 %s22, %s34
    %p64 = scmp.eq.s32.totalorder %s63, 0
    %s66 = sadd.s32 %s65, 1
    %s67 = scalar_select %p64, %s65, %s66
    %p70 = pneg %p64
    %p71 = scmp.eq.s32.totalorder %s15, 1
    %p72 = por %p70, %p71
    %p73 = scmp.ne.s32.totalorder %s65, %s68
    %p74 = scmp.eq.s32.totalorder %s15, 0
    %p75 = por %p73, %p74
    %p76 = scmp.ne.s32.totalorder %s65, %s68
    %p77 = scmp.eq.s32.totalorder %s20, 1
    %p78 = por %p76, %p77
    %p79 = scmp.ne.s32.totalorder %s68, %s69
    %p80 = scmp.eq.s32.totalorder %s20, 0
    %p81 = por %p79, %p80
    %p82 = scmp.ne.s32.totalorder %s68, %s69
    %p83 = scmp.eq.s32.totalorder %s21, 1
    %p84 = por %p82, %p83
    %p86 = scmp.ne.s32.totalorder %s69, %s85
    %p87 = scmp.eq.s32.totalorder %s21, 0
    %p88 = por %p86, %p87
    %s89 = ssub.s32 %s22, %s34
    %p90 = scmp.eq.s32.totalorder %s89, 0
    %s92 = sadd.s32 %s91, 1
    %s93 = scalar_select %p90, %s91, %s92
    %p96 = pneg %p90
    %p97 = scmp.eq.s32.totalorder %s15, 1
    %p98 = por %p96, %p97
    %p99 = scmp.ne.s32.totalorder %s91, %s94
    %p100 = scmp.eq.s32.totalorder %s15, 0
    %p101 = por %p99, %p100
    %p102 = scmp.ne.s32.totalorder %s91, %s94
    %p103 = scmp.eq.s32.totalorder %s20, 1
    %p104 = por %p102, %p103
    %p105 = scmp.ne.s32.totalorder %s94, %s95
    %p106 = scmp.eq.s32.totalorder %s20, 0
    %p107 = por %p105, %p106
    %p108 = scmp.ne.s32.totalorder %s94, %s95
    %p109 = scmp.eq.s32.totalorder %s21, 1
    %p110 = por %p108, %p109
    %p112 = scmp.ne.s32.totalorder %s95, %s111
    %p113 = scmp.eq.s32.totalorder %s21, 0
    %p114 = por %p112, %p113
    %s116 = sadd.s32 %s115, 1
    %p119 = scmp.eq.s32.totalorder %s15, 1
    %p120 = scmp.ne.s32.totalorder %s115, %s117
    %p121 = scmp.eq.s32.totalorder %s15, 0
    %p122 = por %p120, %p121
    %p123 = scmp.ne.s32.totalorder %s115, %s117
    %p124 = scmp.eq.s32.totalorder %s20, 1
    %p125 = por %p123, %p124
    %p126 = scmp.ne.s32.totalorder %s117, %s118
    %p127 = scmp.eq.s32.totalorder %s20, 0
    %p128 = por %p126, %p127
    %p129 = scmp.ne.s32.totalorder %s117, %s118
    %p130 = scmp.eq.s32.totalorder %s21, 1
    %p131 = por %p129, %p130
    %p133 = scmp.ne.s32.totalorder %s118, %s132
    %p134 = scmp.eq.s32.totalorder %s21, 0
    %p135 = por %p133, %p134
    %s137 = sadd.s32 %s136, 1
    %p140 = scmp.eq.s32.totalorder %s15, 1
    %p141 = scmp.ne.s32.totalorder %s136, %s138
    %p142 = scmp.eq.s32.totalorder %s15, 0
    %p143 = por %p141, %p142
    %p144 = scmp.ne.s32.totalorder %s136, %s138
    %p145 = scmp.eq.s32.totalorder %s20, 1
    %p146 = por %p144, %p145
    %p147 = scmp.ne.s32.totalorder %s138, %s139
    %p148 = scmp.eq.s32.totalorder %s20, 0
    %p149 = por %p147, %p148
    %p150 = scmp.ne.s32.totalorder %s138, %s139
    %p151 = scmp.eq.s32.totalorder %s21, 1
    %p152 = por %p150, %p151
    %p154 = scmp.ne.s32.totalorder %s139, %s153
    %p155 = scmp.eq.s32.totalorder %s21, 0
    %p156 = por %p154, %p155
    %s158 = sadd.s32 %s157, 1
    %p161 = scmp.eq.s32.totalorder %s15, 1
    %p162 = scmp.ne.s32.totalorder %s157, %s159
    %p163 = scmp.eq.s32.totalorder %s15, 0
    %p164 = por %p162, %p163
    %p165 = scmp.ne.s32.totalorder %s157, %s159
    %p166 = scmp.eq.s32.totalorder %s20, 1
    %p167 = por %p165, %p166
    %p168 = scmp.ne.s32.totalorder %s159, %s160
    %p169 = scmp.eq.s32.totalorder %s20, 0
    %p170 = por %p168, %p169
    %p171 = scmp.ne.s32.totalorder %s159, %s160
    %p172 = scmp.eq.s32.totalorder %s21, 1
    %p173 = por %p171, %p172
    %p175 = scmp.ne.s32.totalorder %s160, %s174
    %p176 = scmp.eq.s32.totalorder %s21, 0
    %p177 = por %p175, %p176
    %s179 = sadd.s32 %s178, 1
    %p182 = scmp.eq.s32.totalorder %s15, 1
    %p183 = scmp.ne.s32.totalorder %s178, %s180
    %p184 = scmp.eq.s32.totalorder %s15, 0
    %p185 = por %p183, %p184
    %p186 = scmp.ne.s32.totalorder %s178, %s180
    %p187 = scmp.eq.s32.totalorder %s20, 1
    %p188 = por %p186, %p187
    %p189 = scmp.ne.s32.totalorder %s180, %s181
    %p190 = scmp.eq.s32.totalorder %s20, 0
    %p191 = por %p189, %p190
    %p192 = scmp.ne.s32.totalorder %s180, %s181
    %p193 = scmp.eq.s32.totalorder %s21, 1
    %p194 = por %p192, %p193
    %p196 = scmp.ne.s32.totalorder %s181, %s195
    %p197 = scmp.eq.s32.totalorder %s21, 0
    %p198 = por %p196, %p197
    %s200 = sadd.s32 %s199, 1
    %p203 = scmp.eq.s32.totalorder %s15, 1
    %p204 = scmp.ne.s32.totalorder %s199, %s201
    %p205 = scmp.eq.s32.totalorder %s15, 0
    %p206 = por %p204, %p205
    %p207 = scmp.ne.s32.totalorder %s199, %s201
    %p208 = scmp.eq.s32.totalorder %s20, 1
    %p209 = por %p207, %p208
    %p210 = scmp.ne.s32.totalorder %s201, %s202
    %p211 = scmp.eq.s32.totalorder %s20, 0
    %p212 = por %p210, %p211
    %p213 = scmp.ne.s32.totalorder %s201, %s202
    %p214 = scmp.eq.s32.totalorder %s21, 1
    %p215 = por %p213, %p214
    %p217 = scmp.ne.s32.totalorder %s202, %s216
    %p218 = scmp.eq.s32.totalorder %s21, 0
    %p219 = por %p217, %p218
    %s221 = sadd.s32 %s220, 1
    %p224 = scmp.eq.s32.totalorder %s15, 1
    %p225 = scmp.ne.s32.totalorder %s220, %s222
    %p226 = scmp.eq.s32.totalorder %s15, 0
    %p227 = por %p225, %p226
    %p228 = scmp.ne.s32.totalorder %s220, %s222
    %p229 = scmp.eq.s32.totalorder %s20, 1
    %p230 = por %p228, %p229
    %p231 = scmp.ne.s32.totalorder %s222, %s223
    %p232 = scmp.eq.s32.totalorder %s20, 0
    %p233 = por %p231, %p232
    %p234 = scmp.ne.s32.totalorder %s222, %s223
    %p235 = scmp.eq.s32.totalorder %s21, 1
    %p236 = por %p234, %p235
    %p238 = scmp.ne.s32.totalorder %s223, %s237
    %p239 = scmp.eq.s32.totalorder %s21, 0
    %p240 = por %p238, %p239
    %s241 = ssub.s32 %s22, %s34
    %s242 = ssub.s32 %s23, %s30
    %s243 = sor.u32 %s241, %s242
    %p244 = scmp.eq.s32.totalorder %s243, 0
    %s246 = sadd.s32 %s245, 1
    %s247 = scalar_select %p244, %s245, %s246
    %p250 = pneg %p244
    %p251 = scmp.eq.s32.totalorder %s15, 1
    %p252 = por %p250, %p251
    %p253 = scmp.ne.s32.totalorder %s245, %s248
    %p254 = scmp.eq.s32.totalorder %s15, 0
    %p255 = por %p253, %p254
    %p256 = scmp.ne.s32.totalorder %s245, %s248
    %p257 = scmp.eq.s32.totalorder %s20, 1
    %p258 = por %p256, %p257
    %p259 = scmp.ne.s32.totalorder %s248, %s249
    %p260 = scmp.eq.s32.totalorder %s20, 0
    %p261 = por %p259, %p260
    %p262 = scmp.ne.s32.totalorder %s248, %s249
    %p263 = scmp.eq.s32.totalorder %s21, 1
    %p264 = por %p262, %p263
    %p266 = scmp.ne.s32.totalorder %s249, %s265
    %p267 = scmp.eq.s32.totalorder %s21, 0
    %p268 = por %p266, %p267
    %p269 = scmp.le.s32.totalorder 1, %s15
    %p270 = scmp.lt.s32.totalorder %s15, 3
    %p271 = pnand %p269, %p270
    %p272 = pneg %p271
    // Predicated region
    $region9: #{transformer_forward.11} parent=5 // pred_check
      _
    $region10: #{transformer_forward.11} parent=5 // pred_check_branch
      %274 = sbr.rel (%p271) target = $region12
    $region11: #{transformer_forward.11} parent=5 // pred_region
      %s275 = ssub.s32 %s15, 1
      // Predicated region
      $region13: #{transformer_forward.11} parent=11 // pred_check
        %p276 = pneg %p128
      $region14: #{transformer_forward.11} parent=11 // pred_check_branch
        %278 = sbr.rel (%p276) target = $region16
      $region15: #{transformer_forward.11} parent=11 // pred_region
        _
      $region16: #{transformer_forward.11} parent=11 // pred_fallthru
        _
      // Predicated region
      $region17: #{transformer_forward.11} parent=11 // pred_check
        %p279 = pneg %p149
      $region18: #{transformer_forward.11} parent=11 // pred_check_branch
        %281 = sbr.rel (%p279) target = $region20
      $region19: #{transformer_forward.11} parent=11 // pred_region
        _
      $region20: #{transformer_forward.11} parent=11 // pred_fallthru
        _
      // Predicated region
      $region21: #{transformer_forward.11} parent=11 // pred_check
        %p282 = pneg %p170
      $region22: #{transformer_forward.11} parent=11 // pred_check_branch
        %284 = sbr.rel (%p282) target = $region24
      $region23: #{transformer_forward.11} parent=11 // pred_region
        _
      $region24: #{transformer_forward.11} parent=11 // pred_fallthru
        _
      // Predicated region
      $region25: #{transformer_forward.11} parent=11 // pred_check
        %p285 = pneg %p191
      $region26: #{transformer_forward.11} parent=11 // pred_check_branch
        %287 = sbr.rel (%p285) target = $region28
      $region27: #{transformer_forward.11} parent=11 // pred_region
        _
      $region28: #{transformer_forward.11} parent=11 // pred_fallthru
        _
      // Predicated region
      $region29: #{transformer_forward.11} parent=11 // pred_check
        %p288 = pneg %p212
      $region30: #{transformer_forward.11} parent=11 // pred_check_branch
        %290 = sbr.rel (%p288) target = $region32
      $region31: #{transformer_forward.11} parent=11 // pred_region
        _
      $region32: #{transformer_forward.11} parent=11 // pred_fallthru
        _
      // Predicated region
      $region33: #{transformer_forward.11} parent=11 // pred_check
        %p291 = pneg %p233
      $region34: #{transformer_forward.11} parent=11 // pred_check_branch
        %293 = sbr.rel (%p291) target = $region36
      $region35: #{transformer_forward.11} parent=11 // pred_region
        _
      $region36: #{transformer_forward.11} parent=11 // pred_fallthru
        _
    $region12: #{transformer_forward.11} parent=5 // pred_fallthru
      _
    %p294 = scmp.lt.s32.totalorder %s15, 2
    // Predicated region
    $region37: #{transformer_forward.11} parent=5 // pred_check
      %p295 = pneg %p294
    $region38: #{transformer_forward.11} parent=5 // pred_check_branch
      %297 = sbr.rel (%p295) target = $region40
    $region39: #{transformer_forward.11} parent=5 // pred_region
      // Predicated region
      $region41: #{transformer_forward.11} parent=39 // pred_check
        %p298 = pneg %p49
      $region42: #{transformer_forward.11} parent=39 // pred_check_branch
        %300 = sbr.rel (%p298) target = $region44
      $region43: #{transformer_forward.11} parent=39 // pred_region
        %p301 = scmp.lt.s32.totalorder %s22, 1
        %s302 = scalar_select %p301, %s22, 1
        %p303 = scmp.lt.s32.totalorder %s23, 0
        %s304 = scalar_select %p303, %s23, 0
        %s305 = sadd.s32 %s304, %s302
        %s306 = smul.addr %s305, 8
        %s307 = scalar_lea.vmem %s0, %s306
      $region44: #{transformer_forward.11} parent=39 // pred_fallthru
        _
      // Predicated region
      $region45: #{transformer_forward.11} parent=39 // pred_check
        %p308 = pneg %p75
      $region46: #{transformer_forward.11} parent=39 // pred_check_branch
        %310 = sbr.rel (%p308) target = $region48
      $region47: #{transformer_forward.11} parent=39 // pred_region
        %p311 = scmp.lt.s32.totalorder %s22, 1
        %s312 = scalar_select %p311, %s22, 1
        %s313 = smul.addr %s312, 8
        %s314 = scalar_lea.vmem %s1, %s313
      $region48: #{transformer_forward.11} parent=39 // pred_fallthru
        _
      // Predicated region
      $region49: #{transformer_forward.11} parent=39 // pred_check
        %p315 = pneg %p101
      $region50: #{transformer_forward.11} parent=39 // pred_check_branch
        %317 = sbr.rel (%p315) target = $region52
      $region51: #{transformer_forward.11} parent=39 // pred_region
        %p318 = scmp.lt.s32.totalorder %s22, 1
        %s319 = scalar_select %p318, %s22, 1
        %s320 = scalar_lea.vmem %s2, %s319
      $region52: #{transformer_forward.11} parent=39 // pred_fallthru
        _
    $region40: #{transformer_forward.11} parent=5 // pred_fallthru
      _
    %p321 = scmp.le.s32.totalorder 1, %s15
    %p322 = scmp.lt.s32.totalorder %s15, 3
    %p323 = pnand %p321, %p322
    %p324 = pneg %p323
    // Predicated region
    $region53: #{transformer_forward.11} parent=5 // pred_check
      _
    $region54: #{transformer_forward.11} parent=5 // pred_check_branch
      %326 = sbr.rel (%p323) target = $region56
    $region55: #{transformer_forward.11} parent=5 // pred_region
      %s327 = ssub.s32 %s15, 1
      %p328 = scmp.lt.s32.totalorder %s24, 1
      %s329 = scalar_select %p328, %s24, 1
      %p330 = scmp.lt.s32.totalorder %s25, 0
      %s331 = scalar_select %p330, %s25, 0
      %s332 = sadd.s32 %s331, %s329
      %s333 = smul.addr %s332, 8
      %s334 = scalar_lea.vmem %s0, %s333
      %p335 = pneg %p55
      %p336 = pneg %p52
      %p337 = scmp.lt.s32.totalorder %s24, 1
      %s338 = scalar_select %p337, %s24, 1
      %s339 = smul.addr %s338, 8
      %s340 = scalar_lea.vmem %s1, %s339
      %p341 = pneg %p81
      %p342 = pneg %p78
      %p343 = scmp.lt.s32.totalorder %s24, 1
      %s344 = scalar_select %p343, %s24, 1
      %s345 = scalar_lea.vmem %s2, %s344
      %p346 = pneg %p107
      %p347 = pneg %p104
      %p348 = pneg %p128
      %p349 = pneg %p125
      %p350 = pneg %p149
      %p351 = pneg %p146
      %p352 = pneg %p170
      %p353 = pneg %p167
      %p354 = pneg %p191
      %p355 = pneg %p188
      %p356 = pneg %p212
      %p357 = pneg %p209
      %p358 = pneg %p233
      %p359 = pneg %p230
      %p360 = pneg %p261
      %p361 = pneg %p258
      %p362 = scmp.lt.s32.totalorder %s24, 1
      %s363 = scalar_select %p362, %s24, 1
      %p364 = scmp.lt.s32.totalorder %s25, 0
      %s365 = scalar_select %p364, %s25, 0
      %s366 = sadd.s32 %s365, %s363
      %s367 = smul.addr %s366, 8
      %s368 = scalar_lea.vmem %s9, %s367
      %p369 = scmp.lt.s32.totalorder %s24, 1
      %s370 = scalar_select %p369, %s24, 1
      %p371 = scmp.lt.s32.totalorder %s25, 0
      %s372 = scalar_select %p371, %s25, 0
      %s373 = sadd.s32 %s372, %s370
      %s374 = smul.addr %s373, 8
      %s375 = scalar_lea.vmem %s0, %s374
      %p376 = scmp.lt.s32.totalorder %s24, 1
      %s377 = scalar_select %p376, %s24, 1
      %s378 = smul.addr %s377, 8
      %s379 = scalar_lea.vmem %s1, %s378
      %p380 = scmp.lt.s32.totalorder %s24, 1
      %s381 = scalar_select %p380, %s24, 1
      %s382 = scalar_lea.vmem %s2, %s381
      %p383 = scmp.lt.s32.totalorder %s24, 1
      %s384 = scalar_select %p383, %s24, 1
      %p385 = scmp.lt.s32.totalorder %s25, 0
      %s386 = scalar_select %p385, %s25, 0
      %s387 = sadd.s32 %s386, %s384
      %s388 = smul.addr %s387, 8
      %s389 = scalar_lea.vmem %s9, %s388
      %p391 = scmp.eq.s32.totalorder %s25, 0
      // Predicated region
      $region57: #{transformer_forward.11} parent=55 // pred_check
        %p392 = pneg %p391
      $region58: #{transformer_forward.11} parent=55 // pred_check_branch
        %394 = sbr.rel (%p392) target = $region60
      $region59: #{transformer_forward.11} parent=55 // pred_region
        %v395 = vld [vmem:[%s379] sm:$0xff]
        %v396 = vpack.c.bf16 %v395, %v395
        %v397 = vld [vmem:[%s4] sm:$0xf]
        %v398 = vld [vmem:[%s4 + $0x4] sm:$0xf]
        %v399 = vld [vmem:[%s4 + $0x8] sm:$0xf]
        %v400 = vld [vmem:[%s4 + $0xc] sm:$0xf]
        %v405 = vunpack.c.l.b16 %v397
        %v406 = vunpack.c.l.b16 %v398
        %v407 = vunpack.c.l.b16 %v399
        %v408 = vunpack.c.l.b16 %v400
        %v409 = vpack.c.b16 %v406, %v405
        %v410 = vpack.c.b16 %v408, %v407
        %vm413 = vcmask 261120
        %v415 = vsel %vm413, %v396, 0
        %417 = vmatpush.bf16.msra.mxu0 0
        %418 = vmatpush.bf16.msra.mxu0 0
        %419 = vmatpush.bf16.msra.mxu0 0
        %420 = vmatpush.bf16.msra.mxu0 0
        %421 = vmatpush.bf16.msra.mxu0 0
        %422 = vmatpush.bf16.msra.mxu0 0
        %423 = vmatpush.bf16.msra.mxu0 %v410
        %424 = vmatpush.bf16.msra.mxu0 %v409
        %425 = vmatmul.bf16.gmra.mxu0 %v415
        %v426 = vpop.f32.mrf.mxu0
        %v427 = vadd.f32 0.0, %v426
        %v428 = vpop.f32.mrf.mxu0
        %429 = vdwg.mxu0
        %v430 = vpack.c.bf16 %v427, %v427
        %vm431 = vcmask 60416
        %432 = vst.msk [vmem:[#allocation2] sm:$0xf] %vm431, %v430
        %v433 = vld [vmem:[%s5] sm:$0xf]
        %v434 = vld [vmem:[%s5 + $0x4] sm:$0xf]
        %v435 = vld [vmem:[%s5 + $0x8] sm:$0xf]
        %v436 = vld [vmem:[%s5 + $0xc] sm:$0xf]
        %v441 = vunpack.c.l.b16 %v433
        %v442 = vunpack.c.l.b16 %v434
        %v443 = vunpack.c.l.b16 %v435
        %v444 = vunpack.c.l.b16 %v436
        %v445 = vpack.c.b16 %v442, %v441
        %v446 = vpack.c.b16 %v444, %v443
        %449 = vmatpush.bf16.msra.mxu0 0
        %450 = vmatpush.bf16.msra.mxu0 0
        %451 = vmatpush.bf16.msra.mxu0 0
        %452 = vmatpush.bf16.msra.mxu0 0
        %453 = vmatpush.bf16.msra.mxu0 0
        %454 = vmatpush.bf16.msra.mxu0 0
        %455 = vmatpush.bf16.msra.mxu0 %v446
        %456 = vmatpush.bf16.msra.mxu0 %v445
        %457 = vmatmul.bf16.gmra.mxu0 %v415
        %v458 = vpop.f32.mrf.mxu0
        %v459 = vadd.f32 0.0, %v458
        %v460 = vpop.f32.mrf.mxu0
        %461 = vdwg.mxu0
        %v462 = vpack.c.bf16 %v459, %v459
        %463 = vst.msk [vmem:[#allocation3] sm:$0xf] %vm431, %v462
        %s464 = scalar_lea.vmem %s4, 16
        %v465 = vld [vmem:[%s464] sm:$0xf]
        %v466 = vld [vmem:[%s464 + $0x4] sm:$0xf]
        %v467 = vld [vmem:[%s464 + $0x8] sm:$0xf]
        %v468 = vld [vmem:[%s464 + $0xc] sm:$0xf]
        %v473 = vunpack.c.l.b16 %v465
        %v474 = vunpack.c.l.b16 %v466
        %v475 = vunpack.c.l.b16 %v467
        %v476 = vunpack.c.l.b16 %v468
        %v477 = vpack.c.b16 %v474, %v473
        %v478 = vpack.c.b16 %v476, %v475
        %481 = vmatpush.bf16.msra.mxu0 0
        %482 = vmatpush.bf16.msra.mxu0 0
        %483 = vmatpush.bf16.msra.mxu0 0
        %484 = vmatpush.bf16.msra.mxu0 0
        %485 = vmatpush.bf16.msra.mxu0 0
        %486 = vmatpush.bf16.msra.mxu0 0
        %487 = vmatpush.bf16.msra.mxu0 %v478
        %488 = vmatpush.bf16.msra.mxu0 %v477
        %489 = vmatmul.bf16.gmra.mxu0 %v415
        %v490 = vpop.f32.mrf.mxu0
        %v491 = vadd.f32 0.0, %v490
        %v492 = vpop.f32.mrf.mxu0
        %493 = vdwg.mxu0
        %v494 = vpack.c.bf16 %v491, %v491
        %s495 = scalar_lea.vmem [#allocation2], 4
        %496 = vst.msk [vmem:[%s495] sm:$0xf] %vm431, %v494
        %s497 = scalar_lea.vmem %s5, 16
        %v498 = vld [vmem:[%s497] sm:$0xf]
        %v499 = vld [vmem:[%s497 + $0x4] sm:$0xf]
        %v500 = vld [vmem:[%s497 + $0x8] sm:$0xf]
        %v501 = vld [vmem:[%s497 + $0xc] sm:$0xf]
        %v506 = vunpack.c.l.b16 %v498
        %v507 = vunpack.c.l.b16 %v499
        %v508 = vunpack.c.l.b16 %v500
        %v509 = vunpack.c.l.b16 %v501
        %v510 = vpack.c.b16 %v507, %v506
        %v511 = vpack.c.b16 %v509, %v508
        %514 = vmatpush.bf16.msra.mxu0 0
        %515 = vmatpush.bf16.msra.mxu0 0
        %516 = vmatpush.bf16.msra.mxu0 0
        %517 = vmatpush.bf16.msra.mxu0 0
        %518 = vmatpush.bf16.msra.mxu0 0
        %519 = vmatpush.bf16.msra.mxu0 0
        %520 = vmatpush.bf16.msra.mxu0 %v511
        %521 = vmatpush.bf16.msra.mxu0 %v510
        %522 = vmatmul.bf16.gmra.mxu0 %v415
        %v523 = vpop.f32.mrf.mxu0
        %v524 = vadd.f32 0.0, %v523
        %v525 = vpop.f32.mrf.mxu0
        %526 = vdwg.mxu0
        %v527 = vpack.c.bf16 %v524, %v524
        %s528 = scalar_lea.vmem [#allocation3], 4
        %529 = vst.msk [vmem:[%s528] sm:$0xf] %vm431, %v527
        %s530 = scalar_lea.vmem %s4, 32
        %v531 = vld [vmem:[%s530] sm:$0xf]
        %v532 = vld [vmem:[%s530 + $0x4] sm:$0xf]
        %v533 = vld [vmem:[%s530 + $0x8] sm:$0xf]
        %v534 = vld [vmem:[%s530 + $0xc] sm:$0xf]
        %v539 = vunpack.c.l.b16 %v531
        %v540 = vunpack.c.l.b16 %v532
        %v541 = vunpack.c.l.b16 %v533
        %v542 = vunpack.c.l.b16 %v534
        %v543 = vpack.c.b16 %v540, %v539
        %v544 = vpack.c.b16 %v542, %v541
        %547 = vmatpush.bf16.msra.mxu0 0
        %548 = vmatpush.bf16.msra.mxu0 0
        %549 = vmatpush.bf16.msra.mxu0 0
        %550 = vmatpush.bf16.msra.mxu0 0
        %551 = vmatpush.bf16.msra.mxu0 0
        %552 = vmatpush.bf16.msra.mxu0 0
        %553 = vmatpush.bf16.msra.mxu0 %v544
        %554 = vmatpush.bf16.msra.mxu0 %v543
        %555 = vmatmul.bf16.gmra.mxu0 %v415
        %v556 = vpop.f32.mrf.mxu0
        %v557 = vadd.f32 0.0, %v556
        %v558 = vpop.f32.mrf.mxu0
        %559 = vdwg.mxu0
        %v560 = vpack.c.bf16 %v557, %v557
        %s561 = scalar_lea.vmem [#allocation2], 8
        %562 = vst.msk [vmem:[%s561] sm:$0xf] %vm431, %v560
        %s563 = scalar_lea.vmem %s5, 32
        %v564 = vld [vmem:[%s563] sm:$0xf]
        %v565 = vld [vmem:[%s563 + $0x4] sm:$0xf]
        %v566 = vld [vmem:[%s563 + $0x8] sm:$0xf]
        %v567 = vld [vmem:[%s563 + $0xc] sm:$0xf]
        %v572 = vunpack.c.l.b16 %v564
        %v573 = vunpack.c.l.b16 %v565
        %v574 = vunpack.c.l.b16 %v566
        %v575 = vunpack.c.l.b16 %v567
        %v576 = vpack.c.b16 %v573, %v572
        %v577 = vpack.c.b16 %v575, %v574
        %580 = vmatpush.bf16.msra.mxu0 0
        %581 = vmatpush.bf16.msra.mxu0 0
        %582 = vmatpush.bf16.msra.mxu0 0
        %583 = vmatpush.bf16.msra.mxu0 0
        %584 = vmatpush.bf16.msra.mxu0 0
        %585 = vmatpush.bf16.msra.mxu0 0
        %586 = vmatpush.bf16.msra.mxu0 %v577
        %587 = vmatpush.bf16.msra.mxu0 %v576
        %588 = vmatmul.bf16.gmra.mxu0 %v415
        %v589 = vpop.f32.mrf.mxu0
        %v590 = vadd.f32 0.0, %v589
        %v591 = vpop.f32.mrf.mxu0
        %592 = vdwg.mxu0
        %v593 = vpack.c.bf16 %v590, %v590
        %s594 = scalar_lea.vmem [#allocation3], 8
        %595 = vst.msk [vmem:[%s594] sm:$0xf] %vm431, %v593
        %s596 = scalar_lea.vmem %s4, 48
        %v597 = vld [vmem:[%s596] sm:$0xf]
        %v598 = vld [vmem:[%s596 + $0x4] sm:$0xf]
        %v599 = vld [vmem:[%s596 + $0x8] sm:$0xf]
        %v600 = vld [vmem:[%s596 + $0xc] sm:$0xf]
        %v605 = vunpack.c.l.b16 %v597
        %v606 = vunpack.c.l.b16 %v598
        %v607 = vunpack.c.l.b16 %v599
        %v608 = vunpack.c.l.b16 %v600
        %v609 = vpack.c.b16 %v606, %v605
        %v610 = vpack.c.b16 %v608, %v607
        %613 = vmatpush.bf16.msra.mxu0 0
        %614 = vmatpush.bf16.msra.mxu0 0
        %615 = vmatpush.bf16.msra.mxu0 0
        %616 = vmatpush.bf16.msra.mxu0 0
        %617 = vmatpush.bf16.msra.mxu0 0
        %618 = vmatpush.bf16.msra.mxu0 0
        %619 = vmatpush.bf16.msra.mxu0 %v610
        %620 = vmatpush.bf16.msra.mxu0 %v609
        %621 = vmatmul.bf16.gmra.mxu0 %v415
        %v622 = vpop.f32.mrf.mxu0
        %v623 = vadd.f32 0.0, %v622
        %v624 = vpop.f32.mrf.mxu0
        %625 = vdwg.mxu0
        %v626 = vpack.c.bf16 %v623, %v623
        %s627 = scalar_lea.vmem [#allocation2], 12
        %628 = vst.msk [vmem:[%s627] sm:$0xf] %vm431, %v626
        %s629 = scalar_lea.vmem %s5, 48
        %v630 = vld [vmem:[%s629] sm:$0xf]
        %v631 = vld [vmem:[%s629 + $0x4] sm:$0xf]
        %v632 = vld [vmem:[%s629 + $0x8] sm:$0xf]
        %v633 = vld [vmem:[%s629 + $0xc] sm:$0xf]
        %v638 = vunpack.c.l.b16 %v630
        %v639 = vunpack.c.l.b16 %v631
        %v640 = vunpack.c.l.b16 %v632
        %v641 = vunpack.c.l.b16 %v633
        %v642 = vpack.c.b16 %v639, %v638
        %v643 = vpack.c.b16 %v641, %v640
        %646 = vmatpush.bf16.msra.mxu0 0
        %647 = vmatpush.bf16.msra.mxu0 0
        %648 = vmatpush.bf16.msra.mxu0 0
        %649 = vmatpush.bf16.msra.mxu0 0
        %650 = vmatpush.bf16.msra.mxu0 0
        %651 = vmatpush.bf16.msra.mxu0 0
        %652 = vmatpush.bf16.msra.mxu0 %v643
        %653 = vmatpush.bf16.msra.mxu0 %v642
        %654 = vmatmul.bf16.gmra.mxu0 %v415
        %v655 = vpop.f32.mrf.mxu0
        %v656 = vadd.f32 0.0, %v655
        %v657 = vpop.f32.mrf.mxu0
        %658 = vdwg.mxu0
        %v659 = vpack.c.bf16 %v656, %v656
        %s660 = scalar_lea.vmem [#allocation3], 12
        %661 = vst.msk [vmem:[%s660] sm:$0xf] %vm431, %v659
      $region60: #{transformer_forward.11} parent=55 // pred_fallthru
        _
      %v662 = vld [vmem:[%s375] sm:$0xff]
      %v663 = vpack.c.bf16 %v662, %v662
      %v664 = vld [vmem:[%s382] sm:$0x1]
      %vm665 = vcmp.gt.f32.partialorder %v664, 0.5
      %v666 = vld [vmem:[%s3] sm:$0xf]
      %v667 = vld [vmem:[%s3 + $0x4] sm:$0xf]
      %v668 = vld [vmem:[%s3 + $0x8] sm:$0xf]
      %v669 = vld [vmem:[%s3 + $0xc] sm:$0xf]
      %v674 = vunpack.c.l.b16 %v666
      %v675 = vunpack.c.l.b16 %v667
      %v676 = vunpack.c.l.b16 %v668
      %v677 = vunpack.c.l.b16 %v669
      %v678 = vpack.c.b16 %v675, %v674
      %v679 = vpack.c.b16 %v677, %v676
      %vm682 = vcmask 261120
      %v684 = vsel %vm682, %v663, 0
      %686 = vmatpush.bf16.msra.mxu0 0
      %687 = vmatpush.bf16.msra.mxu0 0
      %688 = vmatpush.bf16.msra.mxu0 0
      %689 = vmatpush.bf16.msra.mxu0 0
      %690 = vmatpush.bf16.msra.mxu0 0
      %691 = vmatpush.bf16.msra.mxu0 0
      %692 = vmatpush.bf16.msra.mxu0 %v679
      %693 = vmatpush.bf16.msra.mxu0 %v678
      %694 = vmatmul.bf16.gmra.mxu0 %v684
      %v695 = vpop.f32.mrf.mxu0
      %v696 = vadd.f32 0.0, %v695
      %v697 = vpop.f32.mrf.mxu0
      %698 = vdwg.mxu0
      %v699 = vmul.f32 %v696, 0.35355338
      %v700 = vpack.c.bf16 %v699, %v699
      %v701 = vld [vmem:[#allocation2] sm:$0xf]
      %vm702 = vcmask 64512
      %v704 = vsel %vm702, %v700, 0
      %v707 = vsel %vm702, %v701, 0
      %709 = vmatpush.bf16.xpose.msra.mxu0 0
      %710 = vmatpush.bf16.xpose.msra.mxu0 0
      %711 = vmatpush.bf16.xpose.msra.mxu0 0
      %712 = vmatpush.bf16.xpose.msra.mxu0 0
      %713 = vmatpush.bf16.xpose.msra.mxu0 0
      %714 = vmatpush.bf16.xpose.msra.mxu0 0
      %715 = vmatpush.bf16.xpose.msra.mxu0 0
      %716 = vmatpush.bf16.xpose.msra.mxu0 %v707
      %717 = vmatmul.bf16.gmra.mxu0 %v704
      %v718 = vpop.f32.mrf.mxu0
      %v719 = vadd.f32 0.0, %v718
      %v720 = vpop.f32.mrf.mxu0
      %721 = vdwg.mxu0
      %v722 = vsel %vm665, 1, 0
      %v723 = vperm.slane %v722, 0
      %vm724 = vcmp.eq.s32.totalorder %v723, 1
      %v725 = vsel %vm724, -1e+09, %v719
      %v726 = vsel %vm702, %v725, -inf
      %727 = vmax.xlane.f32.xlu0 %v726
      %v728 = vpop.xlane.xlu0 %727
      %v729 = vsub.f32 %v725, %v728
      %v730 = vmul.f32 %v729, 1.442695
      %v731 = vpow.pop %v730
      %v732 = vsel %vm702, %v731, 0.0
      %733 = vadd.xlane.f32.xlu0 %v732
      %v734 = vpop.xlane.xlu0 %733
      %v735 = vrcp.pop %v734
      %v736 = vmul.f32 %v731, %v735
      %v737 = vpack.c.bf16 %v736, %v736
      %v738 = vld [vmem:[#allocation3] sm:$0xf]
      %v740 = vsel %vm702, %v737, 0
      %vm742 = vcmask 1043456
      %v744 = vsel %vm742, %v738, 0
      %746 = vmatpush.bf16.msra.mxu0 0
      %747 = vmatpush.bf16.msra.mxu0 0
      %748 = vmatpush.bf16.msra.mxu0 0
      %749 = vmatpush.bf16.msra.mxu0 0
      %750 = vmatpush.bf16.msra.mxu0 0
      %751 = vmatpush.bf16.msra.mxu0 0
      %752 = vmatpush.bf16.msra.mxu0 0
      %753 = vmatpush.bf16.msra.mxu0 %v744
      %754 = vmatmul.bf16.gmra.mxu0 %v740
      %v755 = vpop.f32.mrf.mxu0
      %v756 = vadd.f32 0.0, %v755
      %v757 = vpop.f32.mrf.mxu0
      %758 = vdwg.mxu0
      %v759 = vpack.c.bf16 %v756, %v756
      %v760 = vld [vmem:[%s6] sm:$0xf]
      %s761 = scalar_lea.vmem %s3, 16
      %v762 = vld [vmem:[%s761] sm:$0xf]
      %v763 = vld [vmem:[%s761 + $0x4] sm:$0xf]
      %v764 = vld [vmem:[%s761 + $0x8] sm:$0xf]
      %v765 = vld [vmem:[%s761 + $0xc] sm:$0xf]
      %v770 = vunpack.c.l.b16 %v762
      %v771 = vunpack.c.l.b16 %v763
      %v772 = vunpack.c.l.b16 %v764
      %v773 = vunpack.c.l.b16 %v765
      %v774 = vpack.c.b16 %v771, %v770
      %v775 = vpack.c.b16 %v773, %v772
      %778 = vmatpush.bf16.msra.mxu0 0
      %779 = vmatpush.bf16.msra.mxu0 0
      %780 = vmatpush.bf16.msra.mxu0 0
      %781 = vmatpush.bf16.msra.mxu0 0
      %782 = vmatpush.bf16.msra.mxu0 0
      %783 = vmatpush.bf16.msra.mxu0 0
      %784 = vmatpush.bf16.msra.mxu0 %v775
      %785 = vmatpush.bf16.msra.mxu0 %v774
      %786 = vmatmul.bf16.gmra.mxu0 %v684
      %v787 = vpop.f32.mrf.mxu0
      %v788 = vadd.f32 0.0, %v787
      %v789 = vpop.f32.mrf.mxu0
      %790 = vdwg.mxu0
      %v791 = vmul.f32 %v788, 0.35355338
      %v792 = vpack.c.bf16 %v791, %v791
      %s793 = scalar_lea.vmem [#allocation2], 4
      %v794 = vld [vmem:[%s793] sm:$0xf]
      %v796 = vsel %vm702, %v792, 0
      %v799 = vsel %vm702, %v794, 0
      %801 = vmatpush.bf16.xpose.msra.mxu0 0
      %802 = vmatpush.bf16.xpose.msra.mxu0 0
      %803 = vmatpush.bf16.xpose.msra.mxu0 0
      %804 = vmatpush.bf16.xpose.msra.mxu0 0
      %805 = vmatpush.bf16.xpose.msra.mxu0 0
      %806 = vmatpush.bf16.xpose.msra.mxu0 0
      %807 = vmatpush.bf16.xpose.msra.mxu0 0
      %808 = vmatpush.bf16.xpose.msra.mxu0 %v799
      %809 = vmatmul.bf16.gmra.mxu0 %v796
      %v810 = vpop.f32.mrf.mxu0
      %v811 = vadd.f32 0.0, %v810
      %v812 = vpop.f32.mrf.mxu0
      %813 = vdwg.mxu0
      %v814 = vsel %vm724, -1e+09, %v811
      %v815 = vsel %vm702, %v814, -inf
      %816 = vmax.xlane.f32.xlu0 %v815
      %v817 = vpop.xlane.xlu0 %816
      %v818 = vsub.f32 %v814, %v817
      %v819 = vmul.f32 %v818, 1.442695
      %v820 = vpow.pop %v819
      %v821 = vsel %vm702, %v820, 0.0
      %822 = vadd.xlane.f32.xlu0 %v821
      %v823 = vpop.xlane.xlu0 %822
      %v824 = vrcp.pop %v823
      %v825 = vmul.f32 %v820, %v824
      %v826 = vpack.c.bf16 %v825, %v825
      %s827 = scalar_lea.vmem [#allocation3], 4
      %v828 = vld [vmem:[%s827] sm:$0xf]
      %v830 = vsel %vm702, %v826, 0
      %v833 = vsel %vm742, %v828, 0
      %835 = vmatpush.bf16.msra.mxu0 0
      %836 = vmatpush.bf16.msra.mxu0 0
      %837 = vmatpush.bf16.msra.mxu0 0
      %838 = vmatpush.bf16.msra.mxu0 0
      %839 = vmatpush.bf16.msra.mxu0 0
      %840 = vmatpush.bf16.msra.mxu0 0
      %841 = vmatpush.bf16.msra.mxu0 0
      %842 = vmatpush.bf16.msra.mxu0 %v833
      %843 = vmatmul.bf16.gmra.mxu0 %v830
      %v844 = vpop.f32.mrf.mxu0
      %v845 = vadd.f32 0.0, %v844
      %v846 = vpop.f32.mrf.mxu0
      %847 = vdwg.mxu0
      %v848 = vpack.c.bf16 %v845, %v845
      %s849 = scalar_lea.vmem %s6, 4
      %v850 = vld [vmem:[%s849] sm:$0xf]
      %v852 = vsel %vm702, %v848, 0
      %v855 = vsel %vm742, %v850, 0
      %857 = vmatpush.bf16.msra.mxu0 0
      %858 = vmatpush.bf16.msra.mxu0 0
      %859 = vmatpush.bf16.msra.mxu0 0
      %860 = vmatpush.bf16.msra.mxu0 0
      %861 = vmatpush.bf16.msra.mxu0 0
      %862 = vmatpush.bf16.msra.mxu0 0
      %863 = vmatpush.bf16.msra.mxu0 0
      %864 = vmatpush.bf16.msra.mxu0 %v855
      %865 = vmatmul.bf16.gmra.mxu0 %v852
      %v866 = vpop.f32.mrf.mxu0
      %v867 = vadd.f32 0.0, %v866
      %v868 = vpop.f32.mrf.mxu0
      %869 = vdwg.mxu0
      %v871 = vsel %vm702, %v759, 0
      %v874 = vsel %vm742, %v760, 0
      %876 = vmatpush.bf16.msra.mxu0 0
      %877 = vmatpush.bf16.msra.mxu0 0
      %878 = vmatpush.bf16.msra.mxu0 0
      %879 = vmatpush.bf16.msra.mxu0 0
      %880 = vmatpush.bf16.msra.mxu0 0
      %881 = vmatpush.bf16.msra.mxu0 0
      %882 = vmatpush.bf16.msra.mxu0 0
      %883 = vmatpush.bf16.msra.mxu0 %v874
      %884 = vmatmul.bf16.gmra.mxu0 %v871
      %v885 = vpop.f32.mrf.mxu0
      %v886 = vadd.f32 %v867, %v885
      %v887 = vpop.f32.mrf.mxu0
      %888 = vdwg.mxu0
      %s889 = scalar_lea.vmem %s3, 32
      %v890 = vld [vmem:[%s889] sm:$0xf]
      %v891 = vld [vmem:[%s889 + $0x4] sm:$0xf]
      %v892 = vld [vmem:[%s889 + $0x8] sm:$0xf]
      %v893 = vld [vmem:[%s889 + $0xc] sm:$0xf]
      %v898 = vunpack.c.l.b16 %v890
      %v899 = vunpack.c.l.b16 %v891
      %v900 = vunpack.c.l.b16 %v892
      %v901 = vunpack.c.l.b16 %v893
      %v902 = vpack.c.b16 %v899, %v898
      %v903 = vpack.c.b16 %v901, %v900
      %906 = vmatpush.bf16.msra.mxu0 0
      %907 = vmatpush.bf16.msra.mxu0 0
      %908 = vmatpush.bf16.msra.mxu0 0
      %909 = vmatpush.bf16.msra.mxu0 0
      %910 = vmatpush.bf16.msra.mxu0 0
      %911 = vmatpush.bf16.msra.mxu0 0
      %912 = vmatpush.bf16.msra.mxu0 %v903
      %913 = vmatpush.bf16.msra.mxu0 %v902
      %914 = vmatmul.bf16.gmra.mxu0 %v684
      %v915 = vpop.f32.mrf.mxu0
      %v916 = vadd.f32 0.0, %v915
      %v917 = vpop.f32.mrf.mxu0
      %918 = vdwg.mxu0
      %v919 = vmul.f32 %v916, 0.35355338
      %v920 = vpack.c.bf16 %v919, %v919
      %s921 = scalar_lea.vmem [#allocation2], 8
      %v922 = vld [vmem:[%s921] sm:$0xf]
      %v924 = vsel %vm702, %v920, 0
      %v927 = vsel %vm702, %v922, 0
      %929 = vmatpush.bf16.xpose.msra.mxu0 0
      %930 = vmatpush.bf16.xpose.msra.mxu0 0
      %931 = vmatpush.bf16.xpose.msra.mxu0 0
      %932 = vmatpush.bf16.xpose.msra.mxu0 0
      %933 = vmatpush.bf16.xpose.msra.mxu0 0
      %934 = vmatpush.bf16.xpose.msra.mxu0 0
      %935 = vmatpush.bf16.xpose.msra.mxu0 0
      %936 = vmatpush.bf16.xpose.msra.mxu0 %v927
      %937 = vmatmul.bf16.gmra.mxu0 %v924
      %v938 = vpop.f32.mrf.mxu0
      %v939 = vadd.f32 0.0, %v938
      %v940 = vpop.f32.mrf.mxu0
      %941 = vdwg.mxu0
      %v942 = vsel %vm724, -1e+09, %v939
      %v943 = vsel %vm702, %v942, -inf
      %944 = vmax.xlane.f32.xlu0 %v943
      %v945 = vpop.xlane.xlu0 %944
      %v946 = vsub.f32 %v942, %v945
      %v947 = vmul.f32 %v946, 1.442695
      %v948 = vpow.pop %v947
      %v949 = vsel %vm702, %v948, 0.0
      %950 = vadd.xlane.f32.xlu0 %v949
      %v951 = vpop.xlane.xlu0 %950
      %v952 = vrcp.pop %v951
      %v953 = vmul.f32 %v948, %v952
      %v954 = vpack.c.bf16 %v953, %v953
      %s955 = scalar_lea.vmem [#allocation3], 8
      %v956 = vld [vmem:[%s955] sm:$0xf]
      %v958 = vsel %vm702, %v954, 0
      %v961 = vsel %vm742, %v956, 0
      %963 = vmatpush.bf16.msra.mxu0 0
      %964 = vmatpush.bf16.msra.mxu0 0
      %965 = vmatpush.bf16.msra.mxu0 0
      %966 = vmatpush.bf16.msra.mxu0 0
      %967 = vmatpush.bf16.msra.mxu0 0
      %968 = vmatpush.bf16.msra.mxu0 0
      %969 = vmatpush.bf16.msra.mxu0 0
      %970 = vmatpush.bf16.msra.mxu0 %v961
      %971 = vmatmul.bf16.gmra.mxu0 %v958
      %v972 = vpop.f32.mrf.mxu0
      %v973 = vadd.f32 0.0, %v972
      %v974 = vpop.f32.mrf.mxu0
      %975 = vdwg.mxu0
      %v976 = vpack.c.bf16 %v973, %v973
      %s977 = scalar_lea.vmem %s6, 8
      %v978 = vld [vmem:[%s977] sm:$0xf]
      %v980 = vsel %vm702, %v976, 0
      %v983 = vsel %vm742, %v978, 0
      %985 = vmatpush.bf16.msra.mxu0 0
      %986 = vmatpush.bf16.msra.mxu0 0
      %987 = vmatpush.bf16.msra.mxu0 0
      %988 = vmatpush.bf16.msra.mxu0 0
      %989 = vmatpush.bf16.msra.mxu0 0
      %990 = vmatpush.bf16.msra.mxu0 0
      %991 = vmatpush.bf16.msra.mxu0 0
      %992 = vmatpush.bf16.msra.mxu0 %v983
      %993 = vmatmul.bf16.gmra.mxu0 %v980
      %v994 = vpop.f32.mrf.mxu0
      %v995 = vadd.f32 0.0, %v994
      %v996 = vpop.f32.mrf.mxu0
      %997 = vdwg.mxu0
      %v998 = vadd.f32 %v886, %v995
      %s999 = scalar_lea.vmem %s3, 48
      %v1000 = vld [vmem:[%s999] sm:$0xf]
      %v1001 = vld [vmem:[%s999 + $0x4] sm:$0xf]
      %v1002 = vld [vmem:[%s999 + $0x8] sm:$0xf]
      %v1003 = vld [vmem:[%s999 + $0xc] sm:$0xf]
      %v1008 = vunpack.c.l.b16 %v1000
      %v1009 = vunpack.c.l.b16 %v1001
      %v1010 = vunpack.c.l.b16 %v1002
      %v1011 = vunpack.c.l.b16 %v1003
      %v1012 = vpack.c.b16 %v1009, %v1008
      %v1013 = vpack.c.b16 %v1011, %v1010
      %1016 = vmatpush.bf16.msra.mxu0 0
      %1017 = vmatpush.bf16.msra.mxu0 0
      %1018 = vmatpush.bf16.msra.mxu0 0
      %1019 = vmatpush.bf16.msra.mxu0 0
      %1020 = vmatpush.bf16.msra.mxu0 0
      %1021 = vmatpush.bf16.msra.mxu0 0
      %1022 = vmatpush.bf16.msra.mxu0 %v1013
      %1023 = vmatpush.bf16.msra.mxu0 %v1012
      %1024 = vmatmul.bf16.gmra.mxu0 %v684
      %v1025 = vpop.f32.mrf.mxu0
      %v1026 = vadd.f32 0.0, %v1025
      %v1027 = vpop.f32.mrf.mxu0
      %1028 = vdwg.mxu0
      %v1029 = vmul.f32 %v1026, 0.35355338
      %v1030 = vpack.c.bf16 %v1029, %v1029
      %s1031 = scalar_lea.vmem [#allocation2], 12
      %v1032 = vld [vmem:[%s1031] sm:$0xf]
      %v1034 = vsel %vm702, %v1030, 0
      %v1037 = vsel %vm702, %v1032, 0
      %1039 = vmatpush.bf16.xpose.msra.mxu0 0
      %1040 = vmatpush.bf16.xpose.msra.mxu0 0
      %1041 = vmatpush.bf16.xpose.msra.mxu0 0
      %1042 = vmatpush.bf16.xpose.msra.mxu0 0
      %1043 = vmatpush.bf16.xpose.msra.mxu0 0
      %1044 = vmatpush.bf16.xpose.msra.mxu0 0
      %1045 = vmatpush.bf16.xpose.msra.mxu0 0
      %1046 = vmatpush.bf16.xpose.msra.mxu0 %v1037
      %1047 = vmatmul.bf16.gmra.mxu0 %v1034
      %v1048 = vpop.f32.mrf.mxu0
      %v1049 = vadd.f32 0.0, %v1048
      %v1050 = vpop.f32.mrf.mxu0
      %1051 = vdwg.mxu0
      %v1052 = vsel %vm724, -1e+09, %v1049
      %v1053 = vsel %vm702, %v1052, -inf
      %1054 = vmax.xlane.f32.xlu0 %v1053
      %v1055 = vpop.xlane.xlu0 %1054
      %v1056 = vsub.f32 %v1052, %v1055
      %v1057 = vmul.f32 %v1056, 1.442695
      %v1058 = vpow.pop %v1057
      %v1059 = vsel %vm702, %v1058, 0.0
      %1060 = vadd.xlane.f32.xlu0 %v1059
      %v1061 = vpop.xlane.xlu0 %1060
      %v1062 = vrcp.pop %v1061
      %v1063 = vmul.f32 %v1058, %v1062
      %v1064 = vpack.c.bf16 %v1063, %v1063
      %s1065 = scalar_lea.vmem [#allocation3], 12
      %v1066 = vld [vmem:[%s1065] sm:$0xf]
      %v1068 = vsel %vm702, %v1064, 0
      %v1071 = vsel %vm742, %v1066, 0
      %1073 = vmatpush.bf16.msra.mxu0 0
      %1074 = vmatpush.bf16.msra.mxu0 0
      %1075 = vmatpush.bf16.msra.mxu0 0
      %1076 = vmatpush.bf16.msra.mxu0 0
      %1077 = vmatpush.bf16.msra.mxu0 0
      %1078 = vmatpush.bf16.msra.mxu0 0
      %1079 = vmatpush.bf16.msra.mxu0 0
      %1080 = vmatpush.bf16.msra.mxu0 %v1071
      %1081 = vmatmul.bf16.gmra.mxu0 %v1068
      %v1082 = vpop.f32.mrf.mxu0
      %v1083 = vadd.f32 0.0, %v1082
      %v1084 = vpop.f32.mrf.mxu0
      %1085 = vdwg.mxu0
      %v1086 = vpack.c.bf16 %v1083, %v1083
      %s1087 = scalar_lea.vmem %s6, 12
      %v1088 = vld [vmem:[%s1087] sm:$0xf]
      %v1090 = vsel %vm702, %v1086, 0
      %v1093 = vsel %vm742, %v1088, 0
      %1095 = vmatpush.bf16.msra.mxu0 0
      %1096 = vmatpush.bf16.msra.mxu0 0
      %1097 = vmatpush.bf16.msra.mxu0 0
      %1098 = vmatpush.bf16.msra.mxu0 0
      %1099 = vmatpush.bf16.msra.mxu0 0
      %1100 = vmatpush.bf16.msra.mxu0 0
      %1101 = vmatpush.bf16.msra.mxu0 0
      %1102 = vmatpush.bf16.msra.mxu0 %v1093
      %1103 = vmatmul.bf16.gmra.mxu0 %v1090
      %v1104 = vpop.f32.mrf.mxu0
      %v1105 = vadd.f32 0.0, %v1104
      %v1106 = vpop.f32.mrf.mxu0
      %1107 = vdwg.mxu0
      %v1108 = vadd.f32 %v998, %v1105
      %v1109 = vadd.f32 %v662, %v1108
      %v1110 = vsel %vm682, %v1109, 0.0
      %1111 = vadd.xlane.f32.xlu0 %v1110
      %v1112 = vpop.xlane.xlu0 %1111
      %v1113 = vrcp.pop 32.0
      %v1114 = vmul.f32 32.0, %v1113
      %v1115 = vsub.f32 1.0, %v1114
      %v1116 = vmul.f32 %v1113, %v1115
      %v1117 = vadd.f32 %v1113, %v1116
      %vm1118 = vweird.f32 %v1113
      %v1119 = vsel %vm1118, %v1113, %v1117
      %v1120 = vmul.f32 %v1112, %v1119
      %v1121 = vsub.f32 %v1109, %v1120
      %v1122 = vmul.f32 %v1121, %v1121
      %v1123 = vsel %vm682, %v1122, 0.0
      %1124 = vadd.xlane.f32.xlu0 %v1123
      %v1125 = vpop.xlane.xlu0 %1124
      %v1126 = vmul.f32 %v1125, %v1119
      %v1127 = vadd.f32 %v1126, 1e-05
      %v1128 = vrsqrt.pop %v1127
      %v1129 = vmul.f32 %v1128, %v1127
      %v1130 = vmul.f32 %v1129, %v1128
      %v1131 = vmul.f32 0.5, %v1130
      %v1132 = vsub.f32 1.5, %v1131
      %v1133 = vmul.f32 %v1128, %v1132
      %vm1134 = vweird.f32 %v1127
      %vm1135 = vweird.f32 %v1128
      %vm1136 = vmor %vm1134, %vm1135
      %v1137 = vsel %vm1136, %v1128, %v1133
      %v1138 = vmul.f32 %v1121, %v1137
      %v1139 = vld [vmem:[%s7] sm:$0x1]
      %v1141 = vperm.slane %v1139, 0
      %v1143 = vmul.f32 %v1138, %v1141
      %v1144 = vld [vmem:[%s8] sm:$0x1]
      %v1146 = vperm.slane %v1144, 0
      %v1148 = vadd.f32 %v1143, %v1146
      %1149 = vst.msk [vmem:[%s389] sm:$0xff] %vm682, %v1148
      %p1150 = scmp.lt.s32.totalorder %s24, 1
      %s1151 = scalar_select %p1150, %s24, 1
      %p1152 = scmp.lt.s32.totalorder %s25, 0
      %s1153 = scalar_select %p1152, %s25, 0
      %s1154 = sadd.s32 %s1153, %s1151
      %s1155 = smul.addr %s1154, 8
      %s1156 = scalar_lea.vmem %s9, %s1155
      // Predicated region
      $region61: #{transformer_forward.11} parent=55 // pred_check
        %p1157 = pneg %p258
      $region62: #{transformer_forward.11} parent=55 // pred_check_branch
        %1159 = sbr.rel (%p1157) target = $region64
      $region63: #{transformer_forward.11} parent=55 // pred_region
        _
      $region64: #{transformer_forward.11} parent=55 // pred_fallthru
        _
    $region56: #{transformer_forward.11} parent=5 // pred_fallthru
      _
    %p1160 = scmp.le.s32.totalorder 2, %s15
    // Predicated region
    $region65: #{transformer_forward.11} parent=5 // pred_check
      %p1161 = pneg %p1160
    $region66: #{transformer_forward.11} parent=5 // pred_check_branch
      %1163 = sbr.rel (%p1161) target = $region68
    $region67: #{transformer_forward.11} parent=5 // pred_region
      %s1164 = ssub.s32 %s15, 2
      // Predicated region
      $region69: #{transformer_forward.11} parent=67 // pred_check
        %p1165 = pneg %p264
      $region70: #{transformer_forward.11} parent=67 // pred_check_branch
        %1167 = sbr.rel (%p1165) target = $region72
      $region71: #{transformer_forward.11} parent=67 // pred_region
        %p1168 = scmp.lt.s32.totalorder %s26, 1
        %s1169 = scalar_select %p1168, %s26, 1
        %p1170 = scmp.lt.s32.totalorder %s27, 0
        %s1171 = scalar_select %p1170, %s27, 0
        %s1172 = sadd.s32 %s1171, %s1169
        %s1173 = smul.addr %s1172, 8
        %s1174 = scalar_lea.vmem %s9, %s1173
      $region72: #{transformer_forward.11} parent=67 // pred_fallthru
        _
    $region68: #{transformer_forward.11} parent=5 // pred_fallthru
      _
  $region6: #{transformer_forward.11} parent=0 // loop_footer
    %s19 = sadd.s32 1, %s15
  $region7: #{transformer_forward.11} parent=0 // loop_footer_branch
    %14 = sbr.rel target = $region3
  $region8: #{transformer_forward.11} parent=0 // loop_exit
    _

</llo_original>
